<compile_context>
chip_gen: v7x
topology: tpu7x:2x2x1
jax: 0.10.0
libtpu: 0.0.40
codegen_flags: <defaults>
</compile_context>

<pallas_src>
import math

import jax
import jax.numpy as jnp
from jax.experimental import pallas as pl
from jax.experimental.pallas import tpu as pltpu

NEG_SLOPE = 0.01
HIDDEN = (1024, 512, 512, 512)


def _leaky_relu(x, slope=NEG_SLOPE):
    return jnp.where(x > 0, x, slope * x)


def critic_kernel(s_ref, a_ref, p_ref,
                  w0s_ref, w0a_ref, w0p_ref, b0_ref,
                  w1_ref, b1_ref,
                  w2_ref, b2_ref,
                  w3_ref, b3_ref,
                  w4_ref, b4_ref,
                  out_ref):
    """Fused 5-layer MLP for one batch tile (weights VMEM-resident)."""

    def dot(x, w_ref):
        # bf16 x bf16 on the MXU, f32 accumulate.
        return jnp.dot(x.astype(jnp.bfloat16), w_ref[...],
                       preferred_element_type=jnp.float32)

    # Layer 0: concat([s, a, p]) @ W0 == s @ W0s + a @ W0a + p @ W0p
    h = (dot(s_ref[...], w0s_ref) + dot(a_ref[...], w0a_ref)
         + dot(p_ref[...], w0p_ref) + b0_ref[...])
    h = _leaky_relu(h)
    h = _leaky_relu(dot(h, w1_ref) + b1_ref[...])
    h = _leaky_relu(dot(h, w2_ref) + b2_ref[...])
    h = _leaky_relu(dot(h, w3_ref) + b3_ref[...])

    # Final 512 -> 1 layer: elementwise multiply + lane reduction (XLU),
    # avoids DMA-ing a zero-padded (512, 128) weight matrix.
    w4 = w4_ref[...].astype(jnp.float32)               # (1, 512)
    out_ref[...] = jnp.sum(h * w4, axis=-1, keepdims=True) + b4_ref[...]


def init_critic_params(key, state_dim, action_dim, param_dim):
    """kaiming_normal_(nonlinearity='leaky_relu'), zero biases (f32 master)."""
    dims_in = [state_dim + action_dim + param_dim] + list(HIDDEN)
    dims_out = list(HIDDEN) + [1]
    gain = math.sqrt(2.0 / (1.0 + NEG_SLOPE ** 2))
    params = []
    for din, dout in zip(dims_in, dims_out):
        key, sub = jax.random.split(key)
        w = jax.random.normal(sub, (din, dout), dtype=jnp.float32) * (gain / math.sqrt(din))
        b = jnp.zeros((1, dout), dtype=jnp.float32)
        params.append((w, b))
    return params


def prepare_kernel_params(params, state_dim, action_dim, param_dim):
    """Split W0 by input segment, turn the last layer into a (1, 512) row,
    and store all weight matrices as bf16 (biases stay f32)."""
    (w0, b0), (w1, b1), (w2, b2), (w3, b3), (w4, b4) = params
    bf = jnp.bfloat16
    w0s = w0[:state_dim].astype(bf)
    w0a = w0[state_dim:state_dim + action_dim].astype(bf)
    w0p = w0[state_dim + action_dim:].astype(bf)
    w4row = w4.T.astype(bf)                              # (1, 512)
    b4s = b4.reshape(1, 1).astype(jnp.float32)           # (1, 1)
    return (w0s, w0a, w0p, b0,
            w1.astype(bf), b1,
            w2.astype(bf), b2,
            w3.astype(bf), b3,
            w4row, b4s)


def _round_up(x, m):
    return ((x + m - 1) // m) * m


@jax.jit
def critic_forward(s, a, p, kparams):
    (w0s, w0a, w0p, b0, w1, b1, w2, b2, w3, b3, w4row, b4) = kparams
    s = s.astype(jnp.float32)
    a = a.astype(jnp.float32)
    p = p.astype(jnp.float32)

    batch = s.shape[0]
    sd, ad, pd = s.shape[1], a.shape[1], p.shape[1]

    # Batch tile: 256 rows for real batches, rounded-up-to-8 for tiny ones.
    tb = min(256, _round_up(batch, 8))
    grid = (pl.cdiv(batch, tb),)

    def tiled(feat):
        return pl.BlockSpec((tb, feat), lambda i: (i, 0))

    def resident(arr):
        # Full-array block, constant index -> fetched once, stays in VMEM.
        return pl.BlockSpec(arr.shape, lambda i: (0, 0))

    in_specs = [
        tiled(sd), tiled(ad), tiled(pd),
        resident(w0s), resident(w0a), resident(w0p), resident(b0),
        resident(w1), resident(b1),
        resident(w2), resident(b2),
        resident(w3), resident(b3),
        resident(w4row), resident(b4),
    ]
    out_spec = pl.BlockSpec((tb, 1), lambda i: (i, 0))

    return pl.pallas_call(
        critic_kernel,
        out_shape=jax.ShapeDtypeStruct((batch, 1), jnp.float32),
        grid=grid,
        in_specs=in_specs,
        out_specs=out_spec,
        compiler_params=pltpu.CompilerParams(
            dimension_semantics=("parallel",)),
    )(s, a, p, w0s, w0a, w0p, b0, w1, b1, w2, b2, w3, b3, w4row, b4)


def critic_reference(s, a, p, kparams):
    """Pure-JAX reference mirroring the kernel's bf16/f32 numerics."""
    (w0s, w0a, w0p, b0, w1, b1, w2, b2, w3, b3, w4row, b4) = kparams
    f32 = jnp.float32

    def dot(x, w):
        return jnp.dot(x.astype(jnp.bfloat16), w, preferred_element_type=f32)

    h = _leaky_relu(dot(s, w0s) + dot(a, w0a) + dot(p, w0p) + b0)
    h = _leaky_relu(dot(h, w1) + b1)
    h = _leaky_relu(dot(h, w2) + b2)
    h = _leaky_relu(dot(h, w3) + b3)
    return jnp.sum(h * w4row.astype(f32), axis=-1, keepdims=True) + b4


if __name__ == "__main__":
    key = jax.random.PRNGKey(0)

    batch = 8
    state_dim, action_dim, param_dim = 16, 4, 4

    key, ks, ka, kp, kw = jax.random.split(key, 5)
    s = jax.random.normal(ks, (batch, state_dim), dtype=jnp.float32)
    a = jax.random.normal(ka, (batch, action_dim), dtype=jnp.float32)
    p = jax.random.normal(kp, (batch, param_dim), dtype=jnp.float32)

    params = init_critic_params(kw, state_dim, action_dim, param_dim)
    kparams = prepare_kernel_params(params, state_dim, action_dim, param_dim)

    out = critic_forward(s, a, p, kparams)
    out = jax.block_until_ready(out)

    ref = critic_reference(s, a, p, kparams)
    assert out.shape == (batch, 1), out.shape
    max_err = float(jnp.max(jnp.abs(out - ref)))
    assert jnp.allclose(out, ref, atol=1e-2, rtol=1e-2), max_err

    print("KERNEL_OK")
</pallas_src>

<mosaic_0001>
module attributes {stable_mosaic.version = 11 : i64} {
  func.func @critic_kernel(%arg0: i32, %arg1: memref<8x16xf32, #tpu.memory_space<vmem>>, %arg2: memref<8x4xf32, #tpu.memory_space<vmem>>, %arg3: memref<8x4xf32, #tpu.memory_space<vmem>>, %arg4: memref<16x1024xbf16, #tpu.memory_space<vmem>>, %arg5: memref<4x1024xbf16, #tpu.memory_space<vmem>>, %arg6: memref<4x1024xbf16, #tpu.memory_space<vmem>>, %arg7: memref<1x1024xf32, #tpu.memory_space<vmem>>, %arg8: memref<1024x512xbf16, #tpu.memory_space<vmem>>, %arg9: memref<1x512xf32, #tpu.memory_space<vmem>>, %arg10: memref<512x512xbf16, #tpu.memory_space<vmem>>, %arg11: memref<1x512xf32, #tpu.memory_space<vmem>>, %arg12: memref<512x512xbf16, #tpu.memory_space<vmem>>, %arg13: memref<1x512xf32, #tpu.memory_space<vmem>>, %arg14: memref<1x512xbf16, #tpu.memory_space<vmem>>, %arg15: memref<1x1xf32, #tpu.memory_space<vmem>>, %arg16: memref<8x1xf32, #tpu.memory_space<vmem>>) attributes {dimension_semantics = [#tpu.dimension_semantics<parallel>], iteration_bounds = array<i64: 1>, scalar_prefetch = 0 : i64, scratch_operands = 0 : i64, tpu.core_type = #tpu.core_type<tc>, window_params = [{transform_indices = @transform_0, window_bounds = array<i64: 8, 16>}, {transform_indices = @transform_1, window_bounds = array<i64: 8, 4>}, {transform_indices = @transform_2, window_bounds = array<i64: 8, 4>}, {pipeline_mode = #tpu.pipeline_mode<synchronous>, transform_indices = @transform_3, window_bounds = array<i64: 16, 1024>}, {pipeline_mode = #tpu.pipeline_mode<synchronous>, transform_indices = @transform_4, window_bounds = array<i64: 4, 1024>}, {pipeline_mode = #tpu.pipeline_mode<synchronous>, transform_indices = @transform_5, window_bounds = array<i64: 4, 1024>}, {pipeline_mode = #tpu.pipeline_mode<synchronous>, transform_indices = @transform_6, window_bounds = array<i64: 1, 1024>}, {pipeline_mode = #tpu.pipeline_mode<synchronous>, transform_indices = @transform_7, window_bounds = array<i64: 1024, 512>}, {pipeline_mode = #tpu.pipeline_mode<synchronous>, transform_indices = @transform_8, window_bounds = array<i64: 1, 512>}, {pipeline_mode = #tpu.pipeline_mode<synchronous>, transform_indices = @transform_9, window_bounds = array<i64: 512, 512>}, {pipeline_mode = #tpu.pipeline_mode<synchronous>, transform_indices = @transform_10, window_bounds = array<i64: 1, 512>}, {pipeline_mode = #tpu.pipeline_mode<synchronous>, transform_indices = @transform_11, window_bounds = array<i64: 512, 512>}, {pipeline_mode = #tpu.pipeline_mode<synchronous>, transform_indices = @transform_12, window_bounds = array<i64: 1, 512>}, {pipeline_mode = #tpu.pipeline_mode<synchronous>, transform_indices = @transform_13, window_bounds = array<i64: 1, 512>}, {pipeline_mode = #tpu.pipeline_mode<synchronous>, transform_indices = @transform_14, window_bounds = array<i64: 1, 1>}, {transform_indices = @transform_15, window_bounds = array<i64: 8, 1>}]} {
    %c0 = arith.constant 0 : index
    %c0_0 = arith.constant 0 : index
    %0 = vector.load %arg1[%c0, %c0_0] : memref<8x16xf32, #tpu.memory_space<vmem>>, vector<8x16xf32>
    %1 = arith.truncf %0 : vector<8x16xf32> to vector<8x16xbf16>
    %c0_1 = arith.constant 0 : index
    %c0_2 = arith.constant 0 : index
    %2 = vector.load %arg4[%c0_1, %c0_2] : memref<16x1024xbf16, #tpu.memory_space<vmem>>, vector<16x1024xbf16>
    %cst = arith.constant dense<0.000000e+00> : vector<8x1024xf32>
    %3 = tpu.matmul %1, %2, %cst {dimension_numbers = #tpu.dot_dimension_numbers<[1], [0], [0], [1], [0, 0, 1, 1], [], []>} : vector<8x16xbf16>, vector<16x1024xbf16>, vector<8x1024xf32> -> vector<8x1024xf32>
    %c0_3 = arith.constant 0 : index
    %c0_4 = arith.constant 0 : index
    %4 = vector.load %arg2[%c0_3, %c0_4] : memref<8x4xf32, #tpu.memory_space<vmem>>, vector<8x4xf32>
    %5 = arith.truncf %4 : vector<8x4xf32> to vector<8x4xbf16>
    %c0_5 = arith.constant 0 : index
    %c0_6 = arith.constant 0 : index
    %6 = vector.load %arg5[%c0_5, %c0_6] : memref<4x1024xbf16, #tpu.memory_space<vmem>>, vector<4x1024xbf16>
    %cst_7 = arith.constant dense<0.000000e+00> : vector<8x1024xf32>
    %7 = tpu.matmul %5, %6, %cst_7 {dimension_numbers = #tpu.dot_dimension_numbers<[1], [0], [0], [1], [0, 0, 1, 1], [], []>} : vector<8x4xbf16>, vector<4x1024xbf16>, vector<8x1024xf32> -> vector<8x1024xf32>
    %8 = arith.addf %3, %7 : vector<8x1024xf32>
    %c0_8 = arith.constant 0 : index
    %c0_9 = arith.constant 0 : index
    %9 = vector.load %arg3[%c0_8, %c0_9] : memref<8x4xf32, #tpu.memory_space<vmem>>, vector<8x4xf32>
    %10 = arith.truncf %9 : vector<8x4xf32> to vector<8x4xbf16>
    %c0_10 = arith.constant 0 : index
    %c0_11 = arith.constant 0 : index
    %11 = vector.load %arg6[%c0_10, %c0_11] : memref<4x1024xbf16, #tpu.memory_space<vmem>>, vector<4x1024xbf16>
    %cst_12 = arith.constant dense<0.000000e+00> : vector<8x1024xf32>
    %12 = tpu.matmul %10, %11, %cst_12 {dimension_numbers = #tpu.dot_dimension_numbers<[1], [0], [0], [1], [0, 0, 1, 1], [], []>} : vector<8x4xbf16>, vector<4x1024xbf16>, vector<8x1024xf32> -> vector<8x1024xf32>
    %13 = arith.addf %8, %12 : vector<8x1024xf32>
    %c0_13 = arith.constant 0 : index
    %c0_14 = arith.constant 0 : index
    %14 = vector.load %arg7[%c0_13, %c0_14] : memref<1x1024xf32, #tpu.memory_space<vmem>>, vector<1x1024xf32>
    %15 = vector.broadcast %14 : vector<1x1024xf32> to vector<8x1024xf32>
    %16 = arith.addf %13, %15 : vector<8x1024xf32>
    %cst_15 = arith.constant 0.000000e+00 : f32
    %17 = vector.broadcast %cst_15 : f32 to vector<8x1024xf32>
    %18 = arith.cmpf ogt, %16, %17 : vector<8x1024xf32>
    %cst_16 = arith.constant 0.00999999977 : f32
    %19 = vector.broadcast %cst_16 : f32 to vector<8x1024xf32>
    %20 = arith.mulf %19, %16 : vector<8x1024xf32>
    %21 = arith.select %18, %16, %20 : vector<8x1024xi1>, vector<8x1024xf32>
    %22 = arith.truncf %21 : vector<8x1024xf32> to vector<8x1024xbf16>
    %c0_17 = arith.constant 0 : index
    %c0_18 = arith.constant 0 : index
    %23 = vector.load %arg8[%c0_17, %c0_18] : memref<1024x512xbf16, #tpu.memory_space<vmem>>, vector<1024x512xbf16>
    %cst_19 = arith.constant dense<0.000000e+00> : vector<8x512xf32>
    %24 = tpu.matmul %22, %23, %cst_19 {dimension_numbers = #tpu.dot_dimension_numbers<[1], [0], [0], [1], [0, 0, 1, 1], [], []>} : vector<8x1024xbf16>, vector<1024x512xbf16>, vector<8x512xf32> -> vector<8x512xf32>
    %c0_20 = arith.constant 0 : index
    %c0_21 = arith.constant 0 : index
    %25 = vector.load %arg9[%c0_20, %c0_21] : memref<1x512xf32, #tpu.memory_space<vmem>>, vector<1x512xf32>
    %26 = vector.broadcast %25 : vector<1x512xf32> to vector<8x512xf32>
    %27 = arith.addf %24, %26 : vector<8x512xf32>
    %cst_22 = arith.constant 0.000000e+00 : f32
    %28 = vector.broadcast %cst_22 : f32 to vector<8x512xf32>
    %29 = arith.cmpf ogt, %27, %28 : vector<8x512xf32>
    %cst_23 = arith.constant 0.00999999977 : f32
    %30 = vector.broadcast %cst_23 : f32 to vector<8x512xf32>
    %31 = arith.mulf %30, %27 : vector<8x512xf32>
    %32 = arith.select %29, %27, %31 : vector<8x512xi1>, vector<8x512xf32>
    %33 = arith.truncf %32 : vector<8x512xf32> to vector<8x512xbf16>
    %c0_24 = arith.constant 0 : index
    %c0_25 = arith.constant 0 : index
    %34 = vector.load %arg10[%c0_24, %c0_25] : memref<512x512xbf16, #tpu.memory_space<vmem>>, vector<512x512xbf16>
    %cst_26 = arith.constant dense<0.000000e+00> : vector<8x512xf32>
    %35 = tpu.matmul %33, %34, %cst_26 {dimension_numbers = #tpu.dot_dimension_numbers<[1], [0], [0], [1], [0, 0, 1, 1], [], []>} : vector<8x512xbf16>, vector<512x512xbf16>, vector<8x512xf32> -> vector<8x512xf32>
    %c0_27 = arith.constant 0 : index
    %c0_28 = arith.constant 0 : index
    %36 = vector.load %arg11[%c0_27, %c0_28] : memref<1x512xf32, #tpu.memory_space<vmem>>, vector<1x512xf32>
    %37 = vector.broadcast %36 : vector<1x512xf32> to vector<8x512xf32>
    %38 = arith.addf %35, %37 : vector<8x512xf32>
    %cst_29 = arith.constant 0.000000e+00 : f32
    %39 = vector.broadcast %cst_29 : f32 to vector<8x512xf32>
    %40 = arith.cmpf ogt, %38, %39 : vector<8x512xf32>
    %cst_30 = arith.constant 0.00999999977 : f32
    %41 = vector.broadcast %cst_30 : f32 to vector<8x512xf32>
    %42 = arith.mulf %41, %38 : vector<8x512xf32>
    %43 = arith.select %40, %38, %42 : vector<8x512xi1>, vector<8x512xf32>
    %44 = arith.truncf %43 : vector<8x512xf32> to vector<8x512xbf16>
    %c0_31 = arith.constant 0 : index
    %c0_32 = arith.constant 0 : index
    %45 = vector.load %arg12[%c0_31, %c0_32] : memref<512x512xbf16, #tpu.memory_space<vmem>>, vector<512x512xbf16>
    %cst_33 = arith.constant dense<0.000000e+00> : vector<8x512xf32>
    %46 = tpu.matmul %44, %45, %cst_33 {dimension_numbers = #tpu.dot_dimension_numbers<[1], [0], [0], [1], [0, 0, 1, 1], [], []>} : vector<8x512xbf16>, vector<512x512xbf16>, vector<8x512xf32> -> vector<8x512xf32>
    %c0_34 = arith.constant 0 : index
    %c0_35 = arith.constant 0 : index
    %47 = vector.load %arg13[%c0_34, %c0_35] : memref<1x512xf32, #tpu.memory_space<vmem>>, vector<1x512xf32>
    %48 = vector.broadcast %47 : vector<1x512xf32> to vector<8x512xf32>
    %49 = arith.addf %46, %48 : vector<8x512xf32>
    %cst_36 = arith.constant 0.000000e+00 : f32
    %50 = vector.broadcast %cst_36 : f32 to vector<8x512xf32>
    %51 = arith.cmpf ogt, %49, %50 : vector<8x512xf32>
    %cst_37 = arith.constant 0.00999999977 : f32
    %52 = vector.broadcast %cst_37 : f32 to vector<8x512xf32>
    %53 = arith.mulf %52, %49 : vector<8x512xf32>
    %54 = arith.select %51, %49, %53 : vector<8x512xi1>, vector<8x512xf32>
    %c0_38 = arith.constant 0 : index
    %c0_39 = arith.constant 0 : index
    %55 = vector.load %arg14[%c0_38, %c0_39] : memref<1x512xbf16, #tpu.memory_space<vmem>>, vector<1x512xbf16>
    %56 = arith.extf %55 : vector<1x512xbf16> to vector<1x512xf32>
    %57 = vector.broadcast %56 : vector<1x512xf32> to vector<8x512xf32>
    %58 = arith.mulf %54, %57 : vector<8x512xf32>
    %cst_40 = arith.constant dense<0.000000e+00> : vector<8xf32>
    %59 = vector.multi_reduction <add>, %58, %cst_40 [1] : vector<8x512xf32> to vector<8xf32>
    %60 = vector.shape_cast %59 : vector<8xf32> to vector<8x1xf32>
    %c0_41 = arith.constant 0 : index
    %c0_42 = arith.constant 0 : index
    %61 = vector.load %arg15[%c0_41, %c0_42] : memref<1x1xf32, #tpu.memory_space<vmem>>, vector<1x1xf32>
    %62 = vector.broadcast %61 : vector<1x1xf32> to vector<8x1xf32>
    %63 = arith.addf %60, %62 : vector<8x1xf32>
    %c0_43 = arith.constant 0 : index
    %c0_44 = arith.constant 0 : index
    %64 = vector.load %arg16[%c0_43, %c0_44] : memref<8x1xf32, #tpu.memory_space<vmem>>, vector<8x1xf32>
    tpu.vector_store %arg16[%c0_43, %c0_44], %63 {strides = array<i32>} : memref<8x1xf32, #tpu.memory_space<vmem>>, vector<8x1xf32>,
    return
  }
  func.func @transform_0(%arg0: i32) -> (i32, i32) {
    %c0_i32 = arith.constant 0 : i32
    %c0_i32_0 = arith.constant 0 : i32
    return %arg0, %c0_i32 : i32, i32
  }
  func.func @transform_1(%arg0: i32) -> (i32, i32) {
    %c0_i32 = arith.constant 0 : i32
    %c0_i32_0 = arith.constant 0 : i32
    return %arg0, %c0_i32 : i32, i32
  }
  func.func @transform_2(%arg0: i32) -> (i32, i32) {
    %c0_i32 = arith.constant 0 : i32
    %c0_i32_0 = arith.constant 0 : i32
    return %arg0, %c0_i32 : i32, i32
  }
  func.func @transform_3(%arg0: i32) -> (i32, i32) {
    %c0_i32 = arith.constant 0 : i32
    %c0_i32_0 = arith.constant 0 : i32
    %c0_i32_1 = arith.constant 0 : i32
    return %c0_i32, %c0_i32_0 : i32, i32
  }
  func.func @transform_4(%arg0: i32) -> (i32, i32) {
    %c0_i32 = arith.constant 0 : i32
    %c0_i32_0 = arith.constant 0 : i32
    %c0_i32_1 = arith.constant 0 : i32
    return %c0_i32, %c0_i32_0 : i32, i32
  }
  func.func @transform_5(%arg0: i32) -> (i32, i32) {
    %c0_i32 = arith.constant 0 : i32
    %c0_i32_0 = arith.constant 0 : i32
    %c0_i32_1 = arith.constant 0 : i32
    return %c0_i32, %c0_i32_0 : i32, i32
  }
  func.func @transform_6(%arg0: i32) -> (i32, i32) {
    %c0_i32 = arith.constant 0 : i32
    %c0_i32_0 = arith.constant 0 : i32
    %c0_i32_1 = arith.constant 0 : i32
    return %c0_i32, %c0_i32_0 : i32, i32
  }
  func.func @transform_7(%arg0: i32) -> (i32, i32) {
    %c0_i32 = arith.constant 0 : i32
    %c0_i32_0 = arith.constant 0 : i32
    %c0_i32_1 = arith.constant 0 : i32
    return %c0_i32, %c0_i32_0 : i32, i32
  }
  func.func @transform_8(%arg0: i32) -> (i32, i32) {
    %c0_i32 = arith.constant 0 : i32
    %c0_i32_0 = arith.constant 0 : i32
    %c0_i32_1 = arith.constant 0 : i32
    return %c0_i32, %c0_i32_0 : i32, i32
  }
  func.func @transform_9(%arg0: i32) -> (i32, i32) {
    %c0_i32 = arith.constant 0 : i32
    %c0_i32_0 = arith.constant 0 : i32
    %c0_i32_1 = arith.constant 0 : i32
    return %c0_i32, %c0_i32_0 : i32, i32
  }
  func.func @transform_10(%arg0: i32) -> (i32, i32) {
    %c0_i32 = arith.constant 0 : i32
    %c0_i32_0 = arith.constant 0 : i32
    %c0_i32_1 = arith.constant 0 : i32
    return %c0_i32, %c0_i32_0 : i32, i32
  }
  func.func @transform_11(%arg0: i32) -> (i32, i32) {
    %c0_i32 = arith.constant 0 : i32
    %c0_i32_0 = arith.constant 0 : i32
    %c0_i32_1 = arith.constant 0 : i32
    return %c0_i32, %c0_i32_0 : i32, i32
  }
  func.func @transform_12(%arg0: i32) -> (i32, i32) {
    %c0_i32 = arith.constant 0 : i32
    %c0_i32_0 = arith.constant 0 : i32
    %c0_i32_1 = arith.constant 0 : i32
    return %c0_i32, %c0_i32_0 : i32, i32
  }
  func.func @transform_13(%arg0: i32) -> (i32, i32) {
    %c0_i32 = arith.constant 0 : i32
    %c0_i32_0 = arith.constant 0 : i32
    %c0_i32_1 = arith.constant 0 : i32
    return %c0_i32, %c0_i32_0 : i32, i32
  }
  func.func @transform_14(%arg0: i32) -> (i32, i32) {
    %c0_i32 = arith.constant 0 : i32
    %c0_i32_0 = arith.constant 0 : i32
    %c0_i32_1 = arith.constant 0 : i32
    return %c0_i32, %c0_i32_0 : i32, i32
  }
  func.func @transform_15(%arg0: i32) -> (i32, i32) {
    %c0_i32 = arith.constant 0 : i32
    %c0_i32_0 = arith.constant 0 : i32
    return %arg0, %c0_i32 : i32, i32
  }
}

</mosaic_0001>

<llo_original>
// kernel: critic_forward.1
$region0: #{critic_forward.1}
  #allocation0 [shape = 'u32[]', space=smem, size = 0x4, offset = 0x4, fixed_abs, tag = 'smem constant byte address 0x4 - core index']
  #allocation1 [shape = 'u32[144,128]{1,0:T(1,128)}', space=vmem, size = 0x12000, scoped, tag = 'internal scratch']
  #allocation2 [shape = 'f32[1,1]{1,0:T(1,128)S(1)}', space=vmem, size = 0x200, scoped, tag = 'scoped memory for critic_forward.1']
  %s0 = inlined_call_operand.hbm [shape: f32[8,16], index: 0, kind: input, shape index: {}]
  %s1 = inlined_call_operand.vmem [shape: f32[8,4], index: 1, kind: input, shape index: {}]
  %s2 = inlined_call_operand.vmem [shape: f32[8,4], index: 2, kind: input, shape index: {}]
  %s3 = inlined_call_operand.hbm [shape: bf16[16,1024], index: 3, kind: input, shape index: {}]
  %s4 = inlined_call_operand.vmem [shape: bf16[4,1024], index: 4, kind: input, shape index: {}]
  %s5 = inlined_call_operand.vmem [shape: bf16[4,1024], index: 5, kind: input, shape index: {}]
  %s6 = inlined_call_operand.vmem [shape: f32[1,1024], index: 6, kind: input, shape index: {}]
  %s7 = inlined_call_operand.hbm [shape: bf16[1024,512], index: 7, kind: input, shape index: {}]
  %s8 = inlined_call_operand.vmem [shape: f32[1,512], index: 8, kind: input, shape index: {}]
  %s9 = inlined_call_operand.hbm [shape: bf16[512,512], index: 9, kind: input, shape index: {}]
  %s10 = inlined_call_operand.vmem [shape: f32[1,512], index: 10, kind: input, shape index: {}]
  %s11 = inlined_call_operand.hbm [shape: bf16[512,512], index: 11, kind: input, shape index: {}]
  %s12 = inlined_call_operand.vmem [shape: f32[1,512], index: 12, kind: input, shape index: {}]
  %s13 = inlined_call_operand.vmem [shape: bf16[1,512], index: 13, kind: input, shape index: {}]
  %s14 = inlined_call_operand.<no memory space> [shape: f32[1,1], index: 14, kind: input, shape index: {}]
  %s15 = inlined_call_operand.vmem [shape: f32[8,1], index: 15, kind: output, shape index: {}]
  %s16 = sld [smem:[#allocation0]]
  $region90: #{critic_forward.1} parent=0
    _
  %s18 = ssub.s32 1, %s16
  %s19 = scalar_select 0, %s18, %s16
  %v20 = vstv %s14
  %21 = vst [vmem:[#allocation2] sm:$0x1] %v20
  $region1: #{critic_forward.1} parent=0
    #allocation3 [shape = 'u8[4096]{0}', space=vmem, size = 0x1000, scoped, tag = 'input window, operand 0, single buffered']
    #allocation4 [shape = 's32[1]{0}', space=sflag, size = 0x4, scoped, tag = 'scoped memory for critic_forward.1']
    #allocation5 [shape = 'u8[32768]{0}', space=vmem, size = 0x8000, scoped, tag = 'input window, operand 3, single buffered']
    #allocation6 [shape = 's32[1]{0}', space=sflag, size = 0x4, scoped, tag = 'scoped memory for critic_forward.1']
    #allocation7 [shape = 'u8[1048576]{0}', space=vmem, size = 0x100000, scoped, tag = 'input window, operand 7, single buffered']
    #allocation8 [shape = 'u8[524288]{0}', space=vmem, size = 0x80000, scoped, tag = 'input window, operand 9, single buffered']
    #allocation9 [shape = 's32[1]{0}', space=sflag, size = 0x4, scoped, tag = 'scoped memory for critic_forward.1']
    #allocation10 [shape = 'u8[524288]{0}', space=vmem, size = 0x80000, scoped, tag = 'input window, operand 11, single buffered']
    %22 = vsyncpa [#allocation4], 0
    %23 = vsyncpa [#allocation6], 0
    %24 = vsyncpa [#allocation9], 0
    // Predicated region
    $region2: #{critic_forward.1} parent=1 // pred_check
      _
    $region3: #{critic_forward.1} parent=1 // pred_check_branch
      %26 = sbr.rel (0) target = $region5
    $region4: #{critic_forward.1} parent=1 // pred_region
      %s28 = ssub.s32 128, 128
      %29 = vsyncadd [#allocation4], %s28
      %s31 = sshll.u32 [#allocation3], 4
      %s32 = int_to_ptr.vmem [resolvable:$true] %s31
      %34 = dma.hbm_to_vmem [thread:$0]  %s0, 128, %s32, [#allocation4]
    $region5: #{critic_forward.1} parent=1 // pred_fallthru
      _
    // Predicated region
    $region6: #{critic_forward.1} parent=1 // pred_check
      _
    $region7: #{critic_forward.1} parent=1 // pred_check_branch
      %36 = sbr.rel (0) target = $region9
    $region8: #{critic_forward.1} parent=1 // pred_region
      _
    $region9: #{critic_forward.1} parent=1 // pred_fallthru
      _
    // Predicated region
    $region10: #{critic_forward.1} parent=1 // pred_check
      _
    $region11: #{critic_forward.1} parent=1 // pred_check_branch
      %38 = sbr.rel (0) target = $region13
    $region12: #{critic_forward.1} parent=1 // pred_region
      _
    $region13: #{critic_forward.1} parent=1 // pred_fallthru
      _
    // Predicated region
    $region14: #{critic_forward.1} parent=1 // pred_check
      _
    $region15: #{critic_forward.1} parent=1 // pred_check_branch
      %40 = sbr.rel (0) target = $region17
    $region16: #{critic_forward.1} parent=1 // pred_region
      %s42 = ssub.s32 1024, 1024
      %43 = vsyncadd [#allocation6], %s42
      %s44 = sshll.u32 [#allocation5], 4
      %s45 = int_to_ptr.vmem [resolvable:$true] %s44
      %50 = dma.hbm_to_vmem [thread:$0]  %s3, 1024, %s45, [#allocation6], 512, 512, 32
    $region17: #{critic_forward.1} parent=1 // pred_fallthru
      _
    // Predicated region
    $region18: #{critic_forward.1} parent=1 // pred_check
      _
    $region19: #{critic_forward.1} parent=1 // pred_check_branch
      %52 = sbr.rel (0) target = $region21
    $region20: #{critic_forward.1} parent=1 // pred_region
      _
    $region21: #{critic_forward.1} parent=1 // pred_fallthru
      _
    // Predicated region
    $region22: #{critic_forward.1} parent=1 // pred_check
      _
    $region23: #{critic_forward.1} parent=1 // pred_check_branch
      %54 = sbr.rel (0) target = $region25
    $region24: #{critic_forward.1} parent=1 // pred_region
      _
    $region25: #{critic_forward.1} parent=1 // pred_fallthru
      _
    // Predicated region
    $region26: #{critic_forward.1} parent=1 // pred_check
      _
    $region27: #{critic_forward.1} parent=1 // pred_check_branch
      %56 = sbr.rel (0) target = $region29
    $region28: #{critic_forward.1} parent=1 // pred_region
      _
    $region29: #{critic_forward.1} parent=1 // pred_fallthru
      _
    // Predicated region
    $region30: #{critic_forward.1} parent=1 // pred_check
      _
    $region31: #{critic_forward.1} parent=1 // pred_check_branch
      %58 = sbr.rel (0) target = $region33
    $region32: #{critic_forward.1} parent=1 // pred_region
      %s60 = ssub.s32 32768, 32768
      %61 = vsyncadd [#allocation6], %s60
      %s62 = sshll.u32 [#allocation7], 4
      %s63 = int_to_ptr.vmem [resolvable:$true] %s62
      %68 = dma.hbm_to_vmem [thread:$0]  %s7, 32768, %s63, [#allocation6], 256, 256, 16
    $region33: #{critic_forward.1} parent=1 // pred_fallthru
      _
    // Predicated region
    $region34: #{critic_forward.1} parent=1 // pred_check
      _
    $region35: #{critic_forward.1} parent=1 // pred_check_branch
      %70 = sbr.rel (0) target = $region37
    $region36: #{critic_forward.1} parent=1 // pred_region
      _
    $region37: #{critic_forward.1} parent=1 // pred_fallthru
      _
    // Predicated region
    $region38: #{critic_forward.1} parent=1 // pred_check
      _
    $region39: #{critic_forward.1} parent=1 // pred_check_branch
      %72 = sbr.rel (0) target = $region41
    $region40: #{critic_forward.1} parent=1 // pred_region
      %s74 = ssub.s32 16384, 16384
      %75 = vsyncadd [#allocation9], %s74
      %s76 = sshll.u32 [#allocation8], 4
      %s77 = int_to_ptr.vmem [resolvable:$true] %s76
      %82 = dma.hbm_to_vmem [thread:$0]  %s9, 16384, %s77, [#allocation9], 256, 256, 16
    $region41: #{critic_forward.1} parent=1 // pred_fallthru
      _
    // Predicated region
    $region42: #{critic_forward.1} parent=1 // pred_check
      _
    $region43: #{critic_forward.1} parent=1 // pred_check_branch
      %84 = sbr.rel (0) target = $region45
    $region44: #{critic_forward.1} parent=1 // pred_region
      _
    $region45: #{critic_forward.1} parent=1 // pred_fallthru
      _
    // Predicated region
    $region46: #{critic_forward.1} parent=1 // pred_check
      _
    $region47: #{critic_forward.1} parent=1 // pred_check_branch
      %86 = sbr.rel (0) target = $region49
    $region48: #{critic_forward.1} parent=1 // pred_region
      %s88 = ssub.s32 16384, 16384
      %89 = vsyncadd [#allocation9], %s88
      %s90 = sshll.u32 [#allocation10], 4
      %s91 = int_to_ptr.vmem [resolvable:$true] %s90
      %96 = dma.hbm_to_vmem [thread:$0]  %s11, 16384, %s91, [#allocation9], 256, 256, 16
    $region49: #{critic_forward.1} parent=1 // pred_fallthru
      _
    // Predicated region
    $region50: #{critic_forward.1} parent=1 // pred_check
      _
    $region51: #{critic_forward.1} parent=1 // pred_check_branch
      %98 = sbr.rel (0) target = $region53
    $region52: #{critic_forward.1} parent=1 // pred_region
      _
    $region53: #{critic_forward.1} parent=1 // pred_fallthru
      _
    // Predicated region
    $region54: #{critic_forward.1} parent=1 // pred_check
      _
    $region55: #{critic_forward.1} parent=1 // pred_check_branch
      %100 = sbr.rel (0) target = $region57
    $region56: #{critic_forward.1} parent=1 // pred_region
      _
    $region57: #{critic_forward.1} parent=1 // pred_fallthru
      _
    // Predicated region
    $region58: #{critic_forward.1} parent=1 // pred_check
      _
    $region59: #{critic_forward.1} parent=1 // pred_check_branch
      %102 = sbr.rel (0) target = $region61
    $region60: #{critic_forward.1} parent=1 // pred_region
      _
    $region61: #{critic_forward.1} parent=1 // pred_fallthru
      _
    // Predicated region
    $region62: #{critic_forward.1} parent=1 // pred_check
      _
    $region63: #{critic_forward.1} parent=1 // pred_check_branch
      %104 = sbr.rel (0) target = $region65
    $region64: #{critic_forward.1} parent=1 // pred_region
      %105 = dma.done [#allocation4], 128
    $region65: #{critic_forward.1} parent=1 // pred_fallthru
      _
    // Predicated region
    $region66: #{critic_forward.1} parent=1 // pred_check
      _
    $region67: #{critic_forward.1} parent=1 // pred_check_branch
      %107 = sbr.rel (0) target = $region69
    $region68: #{critic_forward.1} parent=1 // pred_region
      %108 = dma.done [#allocation6], 1024
    $region69: #{critic_forward.1} parent=1 // pred_fallthru
      _
    // Predicated region
    $region70: #{critic_forward.1} parent=1 // pred_check
      _
    $region71: #{critic_forward.1} parent=1 // pred_check_branch
      %110 = sbr.rel (0) target = $region73
    $region72: #{critic_forward.1} parent=1 // pred_region
      %111 = dma.done [#allocation6], 32768
    $region73: #{critic_forward.1} parent=1 // pred_fallthru
      _
    // Predicated region
    $region74: #{critic_forward.1} parent=1 // pred_check
      _
    $region75: #{critic_forward.1} parent=1 // pred_check_branch
      %113 = sbr.rel (0) target = $region77
    $region76: #{critic_forward.1} parent=1 // pred_region
      %114 = dma.done [#allocation9], 16384
    $region77: #{critic_forward.1} parent=1 // pred_fallthru
      _
    // Predicated region
    $region78: #{critic_forward.1} parent=1 // pred_check
      _
    $region79: #{critic_forward.1} parent=1 // pred_check_branch
      %116 = sbr.rel (0) target = $region81
    $region80: #{critic_forward.1} parent=1 // pred_region
      %117 = dma.done [#allocation9], 16384
    $region81: #{critic_forward.1} parent=1 // pred_fallthru
      _
    %v119 = vld [vmem:[#allocation3] sm:$0xff]
    %v120 = vpack.c.bf16 %v119, %v119
    %v121 = vld [vmem:[#allocation5] sm:$0xff]
    %v122 = vld [vmem:[#allocation5 + $0x8] sm:$0xff]
    %v123 = vld [vmem:[#allocation5 + $0x10] sm:$0xff]
    %v124 = vld [vmem:[#allocation5 + $0x18] sm:$0xff]
    %v125 = vld [vmem:[#allocation5 + $0x20] sm:$0xff]
    %v126 = vld [vmem:[#allocation5 + $0x28] sm:$0xff]
    %v127 = vld [vmem:[#allocation5 + $0x30] sm:$0xff]
    %v128 = vld [vmem:[#allocation5 + $0x38] sm:$0xff]
    %v129 = vld [vmem:[%s1] sm:$0xff]
    %v130 = vpack.c.bf16 %v129, %v129
    %v131 = vld [vmem:[%s4] sm:$0xff]
    %v132 = vld [vmem:[%s4 + $0x8] sm:$0xff]
    %v135 = vcombine.high %v131, %v131
    %v137 = vunpack.c.l.s4 1983009808
    %v138 = vunpack.c.0.s8 %v137
    %v139 = vlaneseq
    %v140 = vshrl.u32 %v139, 7
    %v141 = vsub.s32 %v138, %v140
    %v142 = vrot.slane %v131, %v141
    %v144 = vunpack.c.l.s4 1983009808
    %v145 = vunpack.c.0.s8 %v144
    %v146 = vlaneseq
    %v147 = vshrl.u32 %v146, 7
    %v148 = vsub.s32 %v145, %v147
    %v149 = vrot.slane %v135, %v148
    %v150 = vcombine.high %v142, %v142
    %v151 = vcombine.high %v149, %v149
    %v152 = vcombine.high %v132, %v132
    %v154 = vunpack.c.l.s4 1983009808
    %v155 = vunpack.c.0.s8 %v154
    %v156 = vlaneseq
    %v157 = vshrl.u32 %v156, 7
    %v158 = vsub.s32 %v155, %v157
    %v159 = vrot.slane %v132, %v158
    %v161 = vunpack.c.l.s4 1983009808
    %v162 = vunpack.c.0.s8 %v161
    %v163 = vlaneseq
    %v164 = vshrl.u32 %v163, 7
    %v165 = vsub.s32 %v162, %v164
    %v166 = vrot.slane %v152, %v165
    %v167 = vcombine.high %v159, %v159
    %v168 = vcombine.high %v166, %v166
    %vm169 = vcmask 31744
    %v171 = vsel %vm169, %v130, 0
    %vm173 = vcmask 1041408
    %v175 = vsel %vm173, %v142, 0
    %v178 = vsel %vm173, %v150, 0
    %v181 = vsel %vm173, %v149, 0
    %v184 = vsel %vm173, %v151, 0
    %v187 = vsel %vm173, %v159, 0
    %v190 = vsel %vm173, %v167, 0
    %v193 = vsel %vm173, %v166, 0
    %v196 = vsel %vm173, %v168, 0
    %198 = vmatprep.subr.bf16.mxu0 %v178
    %199 = vmatpush1.bf16.msra.mxu0 %v175
    %200 = vmatprep.subr.bf16.mxu0 0
    %201 = vmatpush1.bf16.msra.mxu0 0
    %202 = vmatprep.subr.bf16.mxu0 0
    %203 = vmatpush1.bf16.msra.mxu0 0
    %204 = vmatprep.subr.bf16.mxu0 0
    %205 = vmatpush1.bf16.msra.mxu0 0
    %206 = vmatprep.subr.bf16.mxu0 0
    %207 = vmatpush1.bf16.msra.mxu0 0
    %208 = vmatprep.subr.bf16.mxu0 0
    %209 = vmatpush1.bf16.msra.mxu0 0
    %210 = vmatprep.subr.bf16.mxu0 0
    %211 = vmatpush1.bf16.msra.mxu0 0
    %212 = vmatprep.subr.bf16.mxu0 0
    %213 = vmatpush1.bf16.msra.mxu0 0
    %214 = vmatprep.subr.bf16.mxu0 0
    %215 = vmatpush1.bf16.msra.mxu0 0
    %216 = vmatprep.subr.bf16.mxu0 0
    %217 = vmatpush1.bf16.msra.mxu0 0
    %218 = vmatprep.subr.bf16.mxu0 0
    %219 = vmatpush1.bf16.msra.mxu0 0
    %220 = vmatprep.subr.bf16.mxu0 0
    %221 = vmatpush1.bf16.msra.mxu0 0
    %222 = vmatprep.subr.bf16.mxu0 0
    %223 = vmatpush1.bf16.msra.mxu0 0
    %224 = vmatprep.subr.bf16.mxu0 0
    %225 = vmatpush1.bf16.msra.mxu0 0
    %226 = vmatprep.subr.bf16.mxu0 0
    %227 = vmatpush1.bf16.msra.mxu0 0
    %228 = vmatprep.subr.bf16.mxu0 0
    %229 = vmatpush1.bf16.msra.mxu0 0
    %230 = vmatprep.mubr.bf16.mxu0 0
    %231 = vmatmul.mubr.bf16.gmra.mrb[0].mxu0 %v171
    %v232 = vpop.f32.mrb[0].mxu0
    %v233 = vadd.f32 0.0, %v232
    %v234 = vpop.f32.mrb[0].mxu0
    %v235 = vadd.f32 0.0, %v234
    %v236 = vpop.f32.mrb[0].mxu0
    %v237 = vpop.f32.mrb[0].mxu0
    %238 = vdwg.mxu0
    %239 = vmatprep.subr.bf16.mxu0 %v184
    %240 = vmatpush1.bf16.msra.mxu0 %v181
    %241 = vmatprep.subr.bf16.mxu0 0
    %242 = vmatpush1.bf16.msra.mxu0 0
    %243 = vmatprep.subr.bf16.mxu0 0
    %244 = vmatpush1.bf16.msra.mxu0 0
    %245 = vmatprep.subr.bf16.mxu0 0
    %246 = vmatpush1.bf16.msra.mxu0 0
    %247 = vmatprep.subr.bf16.mxu0 0
    %248 = vmatpush1.bf16.msra.mxu0 0
    %249 = vmatprep.subr.bf16.mxu0 0
    %250 = vmatpush1.bf16.msra.mxu0 0
    %251 = vmatprep.subr.bf16.mxu0 0
    %252 = vmatpush1.bf16.msra.mxu0 0
    %253 = vmatprep.subr.bf16.mxu0 0
    %254 = vmatpush1.bf16.msra.mxu0 0
    %255 = vmatprep.subr.bf16.mxu0 0
    %256 = vmatpush1.bf16.msra.mxu0 0
    %257 = vmatprep.subr.bf16.mxu0 0
    %258 = vmatpush1.bf16.msra.mxu0 0
    %259 = vmatprep.subr.bf16.mxu0 0
    %260 = vmatpush1.bf16.msra.mxu0 0
    %261 = vmatprep.subr.bf16.mxu0 0
    %262 = vmatpush1.bf16.msra.mxu0 0
    %263 = vmatprep.subr.bf16.mxu0 0
    %264 = vmatpush1.bf16.msra.mxu0 0
    %265 = vmatprep.subr.bf16.mxu0 0
    %266 = vmatpush1.bf16.msra.mxu0 0
    %267 = vmatprep.subr.bf16.mxu0 0
    %268 = vmatpush1.bf16.msra.mxu0 0
    %269 = vmatprep.subr.bf16.mxu0 0
    %270 = vmatpush1.bf16.msra.mxu0 0
    %271 = vmatprep.mubr.bf16.mxu0 0
    %272 = vmatmul.mubr.bf16.gmra.mrb[0].mxu0 %v171
    %v273 = vpop.f32.mrb[0].mxu0
    %v274 = vadd.f32 0.0, %v273
    %v275 = vpop.f32.mrb[0].mxu0
    %v276 = vadd.f32 0.0, %v275
    %v277 = vpop.f32.mrb[0].mxu0
    %v278 = vpop.f32.mrb[0].mxu0
    %279 = vdwg.mxu0
    %280 = vmatprep.subr.bf16.mxu0 %v190
    %281 = vmatpush1.bf16.msra.mxu0 %v187
    %282 = vmatprep.subr.bf16.mxu0 0
    %283 = vmatpush1.bf16.msra.mxu0 0
    %284 = vmatprep.subr.bf16.mxu0 0
    %285 = vmatpush1.bf16.msra.mxu0 0
    %286 = vmatprep.subr.bf16.mxu0 0
    %287 = vmatpush1.bf16.msra.mxu0 0
    %288 = vmatprep.subr.bf16.mxu0 0
    %289 = vmatpush1.bf16.msra.mxu0 0
    %290 = vmatprep.subr.bf16.mxu0 0
    %291 = vmatpush1.bf16.msra.mxu0 0
    %292 = vmatprep.subr.bf16.mxu0 0
    %293 = vmatpush1.bf16.msra.mxu0 0
    %294 = vmatprep.subr.bf16.mxu0 0
    %295 = vmatpush1.bf16.msra.mxu0 0
    %296 = vmatprep.subr.bf16.mxu0 0
    %297 = vmatpush1.bf16.msra.mxu0 0
    %298 = vmatprep.subr.bf16.mxu0 0
    %299 = vmatpush1.bf16.msra.mxu0 0
    %300 = vmatprep.subr.bf16.mxu0 0
    %301 = vmatpush1.bf16.msra.mxu0 0
    %302 = vmatprep.subr.bf16.mxu0 0
    %303 = vmatpush1.bf16.msra.mxu0 0
    %304 = vmatprep.subr.bf16.mxu0 0
    %305 = vmatpush1.bf16.msra.mxu0 0
    %306 = vmatprep.subr.bf16.mxu0 0
    %307 = vmatpush1.bf16.msra.mxu0 0
    %308 = vmatprep.subr.bf16.mxu0 0
    %309 = vmatpush1.bf16.msra.mxu0 0
    %310 = vmatprep.subr.bf16.mxu0 0
    %311 = vmatpush1.bf16.msra.mxu0 0
    %312 = vmatprep.mubr.bf16.mxu0 0
    %313 = vmatmul.mubr.bf16.gmra.mrb[0].mxu0 %v171
    %v314 = vpop.f32.mrb[0].mxu0
    %v315 = vadd.f32 0.0, %v314
    %v316 = vpop.f32.mrb[0].mxu0
    %v317 = vadd.f32 0.0, %v316
    %v318 = vpop.f32.mrb[0].mxu0
    %v319 = vpop.f32.mrb[0].mxu0
    %320 = vdwg.mxu0
    %321 = vmatprep.subr.bf16.mxu0 %v196
    %322 = vmatpush1.bf16.msra.mxu0 %v193
    %323 = vmatprep.subr.bf16.mxu0 0
    %324 = vmatpush1.bf16.msra.mxu0 0
    %325 = vmatprep.subr.bf16.mxu0 0
    %326 = vmatpush1.bf16.msra.mxu0 0
    %327 = vmatprep.subr.bf16.mxu0 0
    %328 = vmatpush1.bf16.msra.mxu0 0
    %329 = vmatprep.subr.bf16.mxu0 0
    %330 = vmatpush1.bf16.msra.mxu0 0
    %331 = vmatprep.subr.bf16.mxu0 0
    %332 = vmatpush1.bf16.msra.mxu0 0
    %333 = vmatprep.subr.bf16.mxu0 0
    %334 = vmatpush1.bf16.msra.mxu0 0
    %335 = vmatprep.subr.bf16.mxu0 0
    %336 = vmatpush1.bf16.msra.mxu0 0
    %337 = vmatprep.subr.bf16.mxu0 0
    %338 = vmatpush1.bf16.msra.mxu0 0
    %339 = vmatprep.subr.bf16.mxu0 0
    %340 = vmatpush1.bf16.msra.mxu0 0
    %341 = vmatprep.subr.bf16.mxu0 0
    %342 = vmatpush1.bf16.msra.mxu0 0
    %343 = vmatprep.subr.bf16.mxu0 0
    %344 = vmatpush1.bf16.msra.mxu0 0
    %345 = vmatprep.subr.bf16.mxu0 0
    %346 = vmatpush1.bf16.msra.mxu0 0
    %347 = vmatprep.subr.bf16.mxu0 0
    %348 = vmatpush1.bf16.msra.mxu0 0
    %349 = vmatprep.subr.bf16.mxu0 0
    %350 = vmatpush1.bf16.msra.mxu0 0
    %351 = vmatprep.subr.bf16.mxu0 0
    %352 = vmatpush1.bf16.msra.mxu0 0
    %353 = vmatprep.mubr.bf16.mxu0 0
    %354 = vmatmul.mubr.bf16.gmra.mrb[0].mxu0 %v171
    %v355 = vpop.f32.mrb[0].mxu0
    %v356 = vadd.f32 0.0, %v355
    %v357 = vpop.f32.mrb[0].mxu0
    %v358 = vadd.f32 0.0, %v357
    %v359 = vpop.f32.mrb[0].mxu0
    %v360 = vpop.f32.mrb[0].mxu0
    %361 = vdwg.mxu0
    %v370 = vunpack.c.l.b16 %v121
    %v371 = vunpack.c.h.b16 %v121
    %v372 = vunpack.c.l.b16 %v122
    %v373 = vunpack.c.h.b16 %v122
    %v374 = vunpack.c.l.b16 %v123
    %v375 = vunpack.c.h.b16 %v123
    %v376 = vunpack.c.l.b16 %v124
    %v377 = vunpack.c.h.b16 %v124
    %v378 = vunpack.c.l.b16 %v125
    %v379 = vunpack.c.h.b16 %v125
    %v380 = vunpack.c.l.b16 %v126
    %v381 = vunpack.c.h.b16 %v126
    %v382 = vunpack.c.l.b16 %v127
    %v383 = vunpack.c.h.b16 %v127
    %v384 = vunpack.c.l.b16 %v128
    %v385 = vunpack.c.h.b16 %v128
    %v386 = vpack.c.b16 %v378, %v370
    %v387 = vpack.c.b16 %v379, %v371
    %v388 = vpack.c.b16 %v380, %v372
    %v389 = vpack.c.b16 %v381, %v373
    %v390 = vpack.c.b16 %v382, %v374
    %v391 = vpack.c.b16 %v383, %v375
    %v392 = vpack.c.b16 %v384, %v376
    %v393 = vpack.c.b16 %v385, %v377
    %vm402 = vcmask 130048
    %v404 = vsel %vm402, %v120, 0
    %406 = vmatprep.subr.bf16.mxu0 %v387
    %407 = vmatpush1.bf16.msra.mxu0 %v386
    %408 = vmatprep.subr.bf16.mxu0 0
    %409 = vmatpush1.bf16.msra.mxu0 0
    %410 = vmatprep.subr.bf16.mxu0 0
    %411 = vmatpush1.bf16.msra.mxu0 0
    %412 = vmatprep.subr.bf16.mxu0 0
    %413 = vmatpush1.bf16.msra.mxu0 0
    %414 = vmatprep.subr.bf16.mxu0 0
    %415 = vmatpush1.bf16.msra.mxu0 0
    %416 = vmatprep.subr.bf16.mxu0 0
    %417 = vmatpush1.bf16.msra.mxu0 0
    %418 = vmatprep.subr.bf16.mxu0 0
    %419 = vmatpush1.bf16.msra.mxu0 0
    %420 = vmatprep.subr.bf16.mxu0 0
    %421 = vmatpush1.bf16.msra.mxu0 0
    %422 = vmatprep.subr.bf16.mxu0 0
    %423 = vmatpush1.bf16.msra.mxu0 0
    %424 = vmatprep.subr.bf16.mxu0 0
    %425 = vmatpush1.bf16.msra.mxu0 0
    %426 = vmatprep.subr.bf16.mxu0 0
    %427 = vmatpush1.bf16.msra.mxu0 0
    %428 = vmatprep.subr.bf16.mxu0 0
    %429 = vmatpush1.bf16.msra.mxu0 0
    %430 = vmatprep.subr.bf16.mxu0 0
    %431 = vmatpush1.bf16.msra.mxu0 0
    %432 = vmatprep.subr.bf16.mxu0 0
    %433 = vmatpush1.bf16.msra.mxu0 0
    %434 = vmatprep.subr.bf16.mxu0 0
    %435 = vmatpush1.bf16.msra.mxu0 0
    %436 = vmatprep.subr.bf16.mxu0 0
    %437 = vmatpush1.bf16.msra.mxu0 0
    %438 = vmatprep.mubr.bf16.mxu0 0
    %439 = vmatmul.mubr.bf16.gmra.mrb[0].mxu0 %v404
    %v440 = vpop.f32.mrb[0].mxu0
    %v441 = vadd.f32 %v233, %v440
    %v442 = vpop.f32.mrb[0].mxu0
    %v443 = vadd.f32 %v235, %v442
    %v444 = vpop.f32.mrb[0].mxu0
    %v445 = vpop.f32.mrb[0].mxu0
    %446 = vdwg.mxu0
    %447 = vmatprep.subr.bf16.mxu0 %v389
    %448 = vmatpush1.bf16.msra.mxu0 %v388
    %449 = vmatprep.subr.bf16.mxu0 0
    %450 = vmatpush1.bf16.msra.mxu0 0
    %451 = vmatprep.subr.bf16.mxu0 0
    %452 = vmatpush1.bf16.msra.mxu0 0
    %453 = vmatprep.subr.bf16.mxu0 0
    %454 = vmatpush1.bf16.msra.mxu0 0
    %455 = vmatprep.subr.bf16.mxu0 0
    %456 = vmatpush1.bf16.msra.mxu0 0
    %457 = vmatprep.subr.bf16.mxu0 0
    %458 = vmatpush1.bf16.msra.mxu0 0
    %459 = vmatprep.subr.bf16.mxu0 0
    %460 = vmatpush1.bf16.msra.mxu0 0
    %461 = vmatprep.subr.bf16.mxu0 0
    %462 = vmatpush1.bf16.msra.mxu0 0
    %463 = vmatprep.subr.bf16.mxu0 0
    %464 = vmatpush1.bf16.msra.mxu0 0
    %465 = vmatprep.subr.bf16.mxu0 0
    %466 = vmatpush1.bf16.msra.mxu0 0
    %467 = vmatprep.subr.bf16.mxu0 0
    %468 = vmatpush1.bf16.msra.mxu0 0
    %469 = vmatprep.subr.bf16.mxu0 0
    %470 = vmatpush1.bf16.msra.mxu0 0
    %471 = vmatprep.subr.bf16.mxu0 0
    %472 = vmatpush1.bf16.msra.mxu0 0
    %473 = vmatprep.subr.bf16.mxu0 0
    %474 = vmatpush1.bf16.msra.mxu0 0
    %475 = vmatprep.subr.bf16.mxu0 0
    %476 = vmatpush1.bf16.msra.mxu0 0
    %477 = vmatprep.subr.bf16.mxu0 0
    %478 = vmatpush1.bf16.msra.mxu0 0
    %479 = vmatprep.mubr.bf16.mxu0 0
    %480 = vmatmul.mubr.bf16.gmra.mrb[0].mxu0 %v404
    %v481 = vpop.f32.mrb[0].mxu0
    %v482 = vadd.f32 %v274, %v481
    %v483 = vpop.f32.mrb[0].mxu0
    %v484 = vadd.f32 %v276, %v483
    %v485 = vpop.f32.mrb[0].mxu0
    %v486 = vpop.f32.mrb[0].mxu0
    %487 = vdwg.mxu0
    %488 = vmatprep.subr.bf16.mxu0 %v391
    %489 = vmatpush1.bf16.msra.mxu0 %v390
    %490 = vmatprep.subr.bf16.mxu0 0
    %491 = vmatpush1.bf16.msra.mxu0 0
    %492 = vmatprep.subr.bf16.mxu0 0
    %493 = vmatpush1.bf16.msra.mxu0 0
    %494 = vmatprep.subr.bf16.mxu0 0
    %495 = vmatpush1.bf16.msra.mxu0 0
    %496 = vmatprep.subr.bf16.mxu0 0
    %497 = vmatpush1.bf16.msra.mxu0 0
    %498 = vmatprep.subr.bf16.mxu0 0
    %499 = vmatpush1.bf16.msra.mxu0 0
    %500 = vmatprep.subr.bf16.mxu0 0
    %501 = vmatpush1.bf16.msra.mxu0 0
    %502 = vmatprep.subr.bf16.mxu0 0
    %503 = vmatpush1.bf16.msra.mxu0 0
    %504 = vmatprep.subr.bf16.mxu0 0
    %505 = vmatpush1.bf16.msra.mxu0 0
    %506 = vmatprep.subr.bf16.mxu0 0
    %507 = vmatpush1.bf16.msra.mxu0 0
    %508 = vmatprep.subr.bf16.mxu0 0
    %509 = vmatpush1.bf16.msra.mxu0 0
    %510 = vmatprep.subr.bf16.mxu0 0
    %511 = vmatpush1.bf16.msra.mxu0 0
    %512 = vmatprep.subr.bf16.mxu0 0
    %513 = vmatpush1.bf16.msra.mxu0 0
    %514 = vmatprep.subr.bf16.mxu0 0
    %515 = vmatpush1.bf16.msra.mxu0 0
    %516 = vmatprep.subr.bf16.mxu0 0
    %517 = vmatpush1.bf16.msra.mxu0 0
    %518 = vmatprep.subr.bf16.mxu0 0
    %519 = vmatpush1.bf16.msra.mxu0 0
    %520 = vmatprep.mubr.bf16.mxu0 0
    %521 = vmatmul.mubr.bf16.gmra.mrb[0].mxu0 %v404
    %v522 = vpop.f32.mrb[0].mxu0
    %v523 = vadd.f32 %v315, %v522
    %v524 = vpop.f32.mrb[0].mxu0
    %v525 = vadd.f32 %v317, %v524
    %v526 = vpop.f32.mrb[0].mxu0
    %v527 = vpop.f32.mrb[0].mxu0
    %528 = vdwg.mxu0
    %529 = vmatprep.subr.bf16.mxu0 %v393
    %530 = vmatpush1.bf16.msra.mxu0 %v392
    %531 = vmatprep.subr.bf16.mxu0 0
    %532 = vmatpush1.bf16.msra.mxu0 0
    %533 = vmatprep.subr.bf16.mxu0 0
    %534 = vmatpush1.bf16.msra.mxu0 0
    %535 = vmatprep.subr.bf16.mxu0 0
    %536 = vmatpush1.bf16.msra.mxu0 0
    %537 = vmatprep.subr.bf16.mxu0 0
    %538 = vmatpush1.bf16.msra.mxu0 0
    %539 = vmatprep.subr.bf16.mxu0 0
    %540 = vmatpush1.bf16.msra.mxu0 0
    %541 = vmatprep.subr.bf16.mxu0 0
    %542 = vmatpush1.bf16.msra.mxu0 0
    %543 = vmatprep.subr.bf16.mxu0 0
    %544 = vmatpush1.bf16.msra.mxu0 0
    %545 = vmatprep.subr.bf16.mxu0 0
    %546 = vmatpush1.bf16.msra.mxu0 0
    %547 = vmatprep.subr.bf16.mxu0 0
    %548 = vmatpush1.bf16.msra.mxu0 0
    %549 = vmatprep.subr.bf16.mxu0 0
    %550 = vmatpush1.bf16.msra.mxu0 0
    %551 = vmatprep.subr.bf16.mxu0 0
    %552 = vmatpush1.bf16.msra.mxu0 0
    %553 = vmatprep.subr.bf16.mxu0 0
    %554 = vmatpush1.bf16.msra.mxu0 0
    %555 = vmatprep.subr.bf16.mxu0 0
    %556 = vmatpush1.bf16.msra.mxu0 0
    %557 = vmatprep.subr.bf16.mxu0 0
    %558 = vmatpush1.bf16.msra.mxu0 0
    %559 = vmatprep.subr.bf16.mxu0 0
    %560 = vmatpush1.bf16.msra.mxu0 0
    %561 = vmatprep.mubr.bf16.mxu0 0
    %562 = vmatmul.mubr.bf16.gmra.mrb[0].mxu0 %v404
    %v563 = vpop.f32.mrb[0].mxu0
    %v564 = vadd.f32 %v356, %v563
    %v565 = vpop.f32.mrb[0].mxu0
    %v566 = vadd.f32 %v358, %v565
    %v567 = vpop.f32.mrb[0].mxu0
    %v568 = vpop.f32.mrb[0].mxu0
    %569 = vdwg.mxu0
    %v570 = vld [vmem:[%s2] sm:$0xff]
    %v571 = vpack.c.bf16 %v570, %v570
    %v572 = vld [vmem:[%s5] sm:$0xff]
    %v573 = vld [vmem:[%s5 + $0x8] sm:$0xff]
    %v576 = vcombine.high %v572, %v572
    %v578 = vunpack.c.l.s4 1983009808
    %v579 = vunpack.c.0.s8 %v578
    %v580 = vlaneseq
    %v581 = vshrl.u32 %v580, 7
    %v582 = vsub.s32 %v579, %v581
    %v583 = vrot.slane %v572, %v582
    %v585 = vunpack.c.l.s4 1983009808
    %v586 = vunpack.c.0.s8 %v585
    %v587 = vlaneseq
    %v588 = vshrl.u32 %v587, 7
    %v589 = vsub.s32 %v586, %v588
    %v590 = vrot.slane %v576, %v589
    %v591 = vcombine.high %v583, %v583
    %v592 = vcombine.high %v590, %v590
    %v593 = vcombine.high %v573, %v573
    %v595 = vunpack.c.l.s4 1983009808
    %v596 = vunpack.c.0.s8 %v595
    %v597 = vlaneseq
    %v598 = vshrl.u32 %v597, 7
    %v599 = vsub.s32 %v596, %v598
    %v600 = vrot.slane %v573, %v599
    %v602 = vunpack.c.l.s4 1983009808
    %v603 = vunpack.c.0.s8 %v602
    %v604 = vlaneseq
    %v605 = vshrl.u32 %v604, 7
    %v606 = vsub.s32 %v603, %v605
    %v607 = vrot.slane %v593, %v606
    %v608 = vcombine.high %v600, %v600
    %v609 = vcombine.high %v607, %v607
    %v611 = vsel %vm169, %v571, 0
    %v614 = vsel %vm173, %v583, 0
    %v617 = vsel %vm173, %v591, 0
    %v620 = vsel %vm173, %v590, 0
    %v623 = vsel %vm173, %v592, 0
    %v626 = vsel %vm173, %v600, 0
    %v629 = vsel %vm173, %v608, 0
    %v632 = vsel %vm173, %v607, 0
    %v635 = vsel %vm173, %v609, 0
    %637 = vmatprep.subr.bf16.mxu0 %v617
    %638 = vmatpush1.bf16.msra.mxu0 %v614
    %639 = vmatprep.subr.bf16.mxu0 0
    %640 = vmatpush1.bf16.msra.mxu0 0
    %641 = vmatprep.subr.bf16.mxu0 0
    %642 = vmatpush1.bf16.msra.mxu0 0
    %643 = vmatprep.subr.bf16.mxu0 0
    %644 = vmatpush1.bf16.msra.mxu0 0
    %645 = vmatprep.subr.bf16.mxu0 0
    %646 = vmatpush1.bf16.msra.mxu0 0
    %647 = vmatprep.subr.bf16.mxu0 0
    %648 = vmatpush1.bf16.msra.mxu0 0
    %649 = vmatprep.subr.bf16.mxu0 0
    %650 = vmatpush1.bf16.msra.mxu0 0
    %651 = vmatprep.subr.bf16.mxu0 0
    %652 = vmatpush1.bf16.msra.mxu0 0
    %653 = vmatprep.subr.bf16.mxu0 0
    %654 = vmatpush1.bf16.msra.mxu0 0
    %655 = vmatprep.subr.bf16.mxu0 0
    %656 = vmatpush1.bf16.msra.mxu0 0
    %657 = vmatprep.subr.bf16.mxu0 0
    %658 = vmatpush1.bf16.msra.mxu0 0
    %659 = vmatprep.subr.bf16.mxu0 0
    %660 = vmatpush1.bf16.msra.mxu0 0
    %661 = vmatprep.subr.bf16.mxu0 0
    %662 = vmatpush1.bf16.msra.mxu0 0
    %663 = vmatprep.subr.bf16.mxu0 0
    %664 = vmatpush1.bf16.msra.mxu0 0
    %665 = vmatprep.subr.bf16.mxu0 0
    %666 = vmatpush1.bf16.msra.mxu0 0
    %667 = vmatprep.subr.bf16.mxu0 0
    %668 = vmatpush1.bf16.msra.mxu0 0
    %669 = vmatprep.mubr.bf16.mxu0 0
    %670 = vmatmul.mubr.bf16.gmra.mrb[0].mxu0 %v611
    %v671 = vpop.f32.mrb[0].mxu0
    %v672 = vadd.f32 0.0, %v671
    %v673 = vpop.f32.mrb[0].mxu0
    %v674 = vadd.f32 0.0, %v673
    %v675 = vpop.f32.mrb[0].mxu0
    %v676 = vpop.f32.mrb[0].mxu0
    %677 = vdwg.mxu0
    %678 = vmatprep.subr.bf16.mxu0 %v623
    %679 = vmatpush1.bf16.msra.mxu0 %v620
    %680 = vmatprep.subr.bf16.mxu0 0
    %681 = vmatpush1.bf16.msra.mxu0 0
    %682 = vmatprep.subr.bf16.mxu0 0
    %683 = vmatpush1.bf16.msra.mxu0 0
    %684 = vmatprep.subr.bf16.mxu0 0
    %685 = vmatpush1.bf16.msra.mxu0 0
    %686 = vmatprep.subr.bf16.mxu0 0
    %687 = vmatpush1.bf16.msra.mxu0 0
    %688 = vmatprep.subr.bf16.mxu0 0
    %689 = vmatpush1.bf16.msra.mxu0 0
    %690 = vmatprep.subr.bf16.mxu0 0
    %691 = vmatpush1.bf16.msra.mxu0 0
    %692 = vmatprep.subr.bf16.mxu0 0
    %693 = vmatpush1.bf16.msra.mxu0 0
    %694 = vmatprep.subr.bf16.mxu0 0
    %695 = vmatpush1.bf16.msra.mxu0 0
    %696 = vmatprep.subr.bf16.mxu0 0
    %697 = vmatpush1.bf16.msra.mxu0 0
    %698 = vmatprep.subr.bf16.mxu0 0
    %699 = vmatpush1.bf16.msra.mxu0 0
    %700 = vmatprep.subr.bf16.mxu0 0
    %701 = vmatpush1.bf16.msra.mxu0 0
    %702 = vmatprep.subr.bf16.mxu0 0
    %703 = vmatpush1.bf16.msra.mxu0 0
    %704 = vmatprep.subr.bf16.mxu0 0
    %705 = vmatpush1.bf16.msra.mxu0 0
    %706 = vmatprep.subr.bf16.mxu0 0
    %707 = vmatpush1.bf16.msra.mxu0 0
    %708 = vmatprep.subr.bf16.mxu0 0
    %709 = vmatpush1.bf16.msra.mxu0 0
    %710 = vmatprep.mubr.bf16.mxu0 0
    %711 = vmatmul.mubr.bf16.gmra.mrb[0].mxu0 %v611
    %v712 = vpop.f32.mrb[0].mxu0
    %v713 = vadd.f32 0.0, %v712
    %v714 = vpop.f32.mrb[0].mxu0
    %v715 = vadd.f32 0.0, %v714
    %v716 = vpop.f32.mrb[0].mxu0
    %v717 = vpop.f32.mrb[0].mxu0
    %718 = vdwg.mxu0
    %719 = vmatprep.subr.bf16.mxu0 %v629
    %720 = vmatpush1.bf16.msra.mxu0 %v626
    %721 = vmatprep.subr.bf16.mxu0 0
    %722 = vmatpush1.bf16.msra.mxu0 0
    %723 = vmatprep.subr.bf16.mxu0 0
    %724 = vmatpush1.bf16.msra.mxu0 0
    %725 = vmatprep.subr.bf16.mxu0 0
    %726 = vmatpush1.bf16.msra.mxu0 0
    %727 = vmatprep.subr.bf16.mxu0 0
    %728 = vmatpush1.bf16.msra.mxu0 0
    %729 = vmatprep.subr.bf16.mxu0 0
    %730 = vmatpush1.bf16.msra.mxu0 0
    %731 = vmatprep.subr.bf16.mxu0 0
    %732 = vmatpush1.bf16.msra.mxu0 0
    %733 = vmatprep.subr.bf16.mxu0 0
    %734 = vmatpush1.bf16.msra.mxu0 0
    %735 = vmatprep.subr.bf16.mxu0 0
    %736 = vmatpush1.bf16.msra.mxu0 0
    %737 = vmatprep.subr.bf16.mxu0 0
    %738 = vmatpush1.bf16.msra.mxu0 0
    %739 = vmatprep.subr.bf16.mxu0 0
    %740 = vmatpush1.bf16.msra.mxu0 0
    %741 = vmatprep.subr.bf16.mxu0 0
    %742 = vmatpush1.bf16.msra.mxu0 0
    %743 = vmatprep.subr.bf16.mxu0 0
    %744 = vmatpush1.bf16.msra.mxu0 0
    %745 = vmatprep.subr.bf16.mxu0 0
    %746 = vmatpush1.bf16.msra.mxu0 0
    %747 = vmatprep.subr.bf16.mxu0 0
    %748 = vmatpush1.bf16.msra.mxu0 0
    %749 = vmatprep.subr.bf16.mxu0 0
    %750 = vmatpush1.bf16.msra.mxu0 0
    %751 = vmatprep.mubr.bf16.mxu0 0
    %752 = vmatmul.mubr.bf16.gmra.mrb[0].mxu0 %v611
    %v753 = vpop.f32.mrb[0].mxu0
    %v754 = vadd.f32 0.0, %v753
    %v755 = vpop.f32.mrb[0].mxu0
    %v756 = vadd.f32 0.0, %v755
    %v757 = vpop.f32.mrb[0].mxu0
    %v758 = vpop.f32.mrb[0].mxu0
    %759 = vdwg.mxu0
    %760 = vmatprep.subr.bf16.mxu0 %v635
    %761 = vmatpush1.bf16.msra.mxu0 %v632
    %762 = vmatprep.subr.bf16.mxu0 0
    %763 = vmatpush1.bf16.msra.mxu0 0
    %764 = vmatprep.subr.bf16.mxu0 0
    %765 = vmatpush1.bf16.msra.mxu0 0
    %766 = vmatprep.subr.bf16.mxu0 0
    %767 = vmatpush1.bf16.msra.mxu0 0
    %768 = vmatprep.subr.bf16.mxu0 0
    %769 = vmatpush1.bf16.msra.mxu0 0
    %770 = vmatprep.subr.bf16.mxu0 0
    %771 = vmatpush1.bf16.msra.mxu0 0
    %772 = vmatprep.subr.bf16.mxu0 0
    %773 = vmatpush1.bf16.msra.mxu0 0
    %774 = vmatprep.subr.bf16.mxu0 0
    %775 = vmatpush1.bf16.msra.mxu0 0
    %776 = vmatprep.subr.bf16.mxu0 0
    %777 = vmatpush1.bf16.msra.mxu0 0
    %778 = vmatprep.subr.bf16.mxu0 0
    %779 = vmatpush1.bf16.msra.mxu0 0
    %780 = vmatprep.subr.bf16.mxu0 0
    %781 = vmatpush1.bf16.msra.mxu0 0
    %782 = vmatprep.subr.bf16.mxu0 0
    %783 = vmatpush1.bf16.msra.mxu0 0
    %784 = vmatprep.subr.bf16.mxu0 0
    %785 = vmatpush1.bf16.msra.mxu0 0
    %786 = vmatprep.subr.bf16.mxu0 0
    %787 = vmatpush1.bf16.msra.mxu0 0
    %788 = vmatprep.subr.bf16.mxu0 0
    %789 = vmatpush1.bf16.msra.mxu0 0
    %790 = vmatprep.subr.bf16.mxu0 0
    %791 = vmatpush1.bf16.msra.mxu0 0
    %792 = vmatprep.mubr.bf16.mxu0 0
    %793 = vmatmul.mubr.bf16.gmra.mrb[0].mxu0 %v611
    %v794 = vpop.f32.mrb[0].mxu0
    %v795 = vadd.f32 0.0, %v794
    %v796 = vpop.f32.mrb[0].mxu0
    %v797 = vadd.f32 0.0, %v796
    %v798 = vpop.f32.mrb[0].mxu0
    %v799 = vpop.f32.mrb[0].mxu0
    %800 = vdwg.mxu0
    %v801 = vadd.f32 %v441, %v672
    %v802 = vadd.f32 %v443, %v674
    %v803 = vadd.f32 %v482, %v713
    %v804 = vadd.f32 %v484, %v715
    %v805 = vadd.f32 %v523, %v754
    %v806 = vadd.f32 %v525, %v756
    %v807 = vadd.f32 %v564, %v795
    %v808 = vadd.f32 %v566, %v797
    %v809 = vld [vmem:[%s6] sm:$0xff]
    %v811 = vlaneseq
    %v812 = vshrl.u32 %v811, 7
    %v813 = vsub.s32 0, %v812
    %v814 = vrot.slane %v809, %v813
    %v815 = vlaneseq
    %v816 = vshrl.u32 %v815, 7
    %v817 = vsub.s32 1, %v816
    %v818 = vrot.slane %v809, %v817
    %v819 = vlaneseq
    %v820 = vshrl.u32 %v819, 7
    %v821 = vsub.s32 2, %v820
    %v822 = vrot.slane %v809, %v821
    %v823 = vlaneseq
    %v824 = vshrl.u32 %v823, 7
    %v825 = vsub.s32 3, %v824
    %v826 = vrot.slane %v809, %v825
    %v827 = vlaneseq
    %v828 = vshrl.u32 %v827, 7
    %v829 = vsub.s32 4, %v828
    %v830 = vrot.slane %v809, %v829
    %v831 = vlaneseq
    %v832 = vshrl.u32 %v831, 7
    %v833 = vsub.s32 5, %v832
    %v834 = vrot.slane %v809, %v833
    %v835 = vlaneseq
    %v836 = vshrl.u32 %v835, 7
    %v837 = vsub.s32 6, %v836
    %v838 = vrot.slane %v809, %v837
    %v839 = vlaneseq
    %v840 = vshrl.u32 %v839, 7
    %v841 = vsub.s32 7, %v840
    %v842 = vrot.slane %v809, %v841
    %v851 = vadd.f32 %v801, %v814
    %v852 = vadd.f32 %v802, %v818
    %v853 = vadd.f32 %v803, %v822
    %v854 = vadd.f32 %v804, %v826
    %v855 = vadd.f32 %v805, %v830
    %v856 = vadd.f32 %v806, %v834
    %v857 = vadd.f32 %v807, %v838
    %v858 = vadd.f32 %v808, %v842
    %vm859 = vcmp.gt.f32.partialorder %v851, 0.0
    %vm860 = vcmp.gt.f32.partialorder %v852, 0.0
    %vm861 = vcmp.gt.f32.partialorder %v853, 0.0
    %vm862 = vcmp.gt.f32.partialorder %v854, 0.0
    %vm863 = vcmp.gt.f32.partialorder %v855, 0.0
    %vm864 = vcmp.gt.f32.partialorder %v856, 0.0
    %vm865 = vcmp.gt.f32.partialorder %v857, 0.0
    %vm866 = vcmp.gt.f32.partialorder %v858, 0.0
    %v867 = vmul.f32 %v851, 0.01
    %v868 = vmul.f32 %v852, 0.01
    %v869 = vmul.f32 %v853, 0.01
    %v870 = vmul.f32 %v854, 0.01
    %v871 = vmul.f32 %v855, 0.01
    %v872 = vmul.f32 %v856, 0.01
    %v873 = vmul.f32 %v857, 0.01
    %v874 = vmul.f32 %v858, 0.01
    %v875 = vsel %vm859, %v851, %v867
    %v876 = vsel %vm860, %v852, %v868
    %v877 = vsel %vm861, %v853, %v869
    %v878 = vsel %vm862, %v854, %v870
    %v879 = vsel %vm863, %v855, %v871
    %v880 = vsel %vm864, %v856, %v872
    %v881 = vsel %vm865, %v857, %v873
    %v882 = vsel %vm866, %v858, %v874
    %v883 = vpack.c.bf16 %v875, %v875
    %v884 = vpack.c.bf16 %v876, %v876
    %v885 = vpack.c.bf16 %v877, %v877
    %v886 = vpack.c.bf16 %v878, %v878
    %v887 = vpack.c.bf16 %v879, %v879
    %v888 = vpack.c.bf16 %v880, %v880
    %v889 = vpack.c.bf16 %v881, %v881
    %v890 = vpack.c.bf16 %v882, %v882
    %v891 = vld [vmem:[#allocation7] sm:$0xff]
    %v892 = vld [vmem:[#allocation7 + $0x8] sm:$0xff]
    %v893 = vld [vmem:[#allocation7 + $0x10] sm:$0xff]
    %v894 = vld [vmem:[#allocation7 + $0x18] sm:$0xff]
    %v895 = vld [vmem:[#allocation7 + $0x20] sm:$0xff]
    %v896 = vld [vmem:[#allocation7 + $0x28] sm:$0xff]
    %v897 = vld [vmem:[#allocation7 + $0x30] sm:$0xff]
    %v898 = vld [vmem:[#allocation7 + $0x38] sm:$0xff]
    %v899 = vld [vmem:[#allocation7 + $0x40] sm:$0xff]
    %v900 = vld [vmem:[#allocation7 + $0x48] sm:$0xff]
    %v901 = vld [vmem:[#allocation7 + $0x50] sm:$0xff]
    %v902 = vld [vmem:[#allocation7 + $0x58] sm:$0xff]
    %v903 = vld [vmem:[#allocation7 + $0x60] sm:$0xff]
    %v904 = vld [vmem:[#allocation7 + $0x68] sm:$0xff]
    %v905 = vld [vmem:[#allocation7 + $0x70] sm:$0xff]
    %v906 = vld [vmem:[#allocation7 + $0x78] sm:$0xff]
    %v907 = vld [vmem:[#allocation7 + $0x80] sm:$0xff]
    %v908 = vld [vmem:[#allocation7 + $0x88] sm:$0xff]
    %v909 = vld [vmem:[#allocation7 + $0x90] sm:$0xff]
    %v910 = vld [vmem:[#allocation7 + $0x98] sm:$0xff]
    %v911 = vld [vmem:[#allocation7 + $0xa0] sm:$0xff]
    %v912 = vld [vmem:[#allocation7 + $0xa8] sm:$0xff]
    %v913 = vld [vmem:[#allocation7 + $0xb0] sm:$0xff]
    %v914 = vld [vmem:[#allocation7 + $0xb8] sm:$0xff]
    %v915 = vld [vmem:[#allocation7 + $0xc0] sm:$0xff]
    %v916 = vld [vmem:[#allocation7 + $0xc8] sm:$0xff]
    %v917 = vld [vmem:[#allocation7 + $0xd0] sm:$0xff]
    %v918 = vld [vmem:[#allocation7 + $0xd8] sm:$0xff]
    %v919 = vld [vmem:[#allocation7 + $0xe0] sm:$0xff]
    %v920 = vld [vmem:[#allocation7 + $0xe8] sm:$0xff]
    %v921 = vld [vmem:[#allocation7 + $0xf0] sm:$0xff]
    %v922 = vld [vmem:[#allocation7 + $0xf8] sm:$0xff]
    %v923 = vld [vmem:[#allocation7 + $0x100] sm:$0xff]
    %v924 = vld [vmem:[#allocation7 + $0x108] sm:$0xff]
    %v925 = vld [vmem:[#allocation7 + $0x110] sm:$0xff]
    %v926 = vld [vmem:[#allocation7 + $0x118] sm:$0xff]
    %v927 = vld [vmem:[#allocation7 + $0x120] sm:$0xff]
    %v928 = vld [vmem:[#allocation7 + $0x128] sm:$0xff]
    %v929 = vld [vmem:[#allocation7 + $0x130] sm:$0xff]
    %v930 = vld [vmem:[#allocation7 + $0x138] sm:$0xff]
    %v931 = vld [vmem:[#allocation7 + $0x140] sm:$0xff]
    %v932 = vld [vmem:[#allocation7 + $0x148] sm:$0xff]
    %v933 = vld [vmem:[#allocation7 + $0x150] sm:$0xff]
    %v934 = vld [vmem:[#allocation7 + $0x158] sm:$0xff]
    %v935 = vld [vmem:[#allocation7 + $0x160] sm:$0xff]
    %v936 = vld [vmem:[#allocation7 + $0x168] sm:$0xff]
    %v937 = vld [vmem:[#allocation7 + $0x170] sm:$0xff]
    %v938 = vld [vmem:[#allocation7 + $0x178] sm:$0xff]
    %v939 = vld [vmem:[#allocation7 + $0x180] sm:$0xff]
    %v940 = vld [vmem:[#allocation7 + $0x188] sm:$0xff]
    %v941 = vld [vmem:[#allocation7 + $0x190] sm:$0xff]
    %v942 = vld [vmem:[#allocation7 + $0x198] sm:$0xff]
    %v943 = vld [vmem:[#allocation7 + $0x1a0] sm:$0xff]
    %v944 = vld [vmem:[#allocation7 + $0x1a8] sm:$0xff]
    %v945 = vld [vmem:[#allocation7 + $0x1b0] sm:$0xff]
    %v946 = vld [vmem:[#allocation7 + $0x1b8] sm:$0xff]
    %v947 = vld [vmem:[#allocation7 + $0x1c0] sm:$0xff]
    %v948 = vld [vmem:[#allocation7 + $0x1c8] sm:$0xff]
    %v949 = vld [vmem:[#allocation7 + $0x1d0] sm:$0xff]
    %v950 = vld [vmem:[#allocation7 + $0x1d8] sm:$0xff]
    %v951 = vld [vmem:[#allocation7 + $0x1e0] sm:$0xff]
    %v952 = vld [vmem:[#allocation7 + $0x1e8] sm:$0xff]
    %v953 = vld [vmem:[#allocation7 + $0x1f0] sm:$0xff]
    %v954 = vld [vmem:[#allocation7 + $0x1f8] sm:$0xff]
    %v955 = vld [vmem:[#allocation7 + $0x200] sm:$0xff]
    %v956 = vld [vmem:[#allocation7 + $0x208] sm:$0xff]
    %v957 = vld [vmem:[#allocation7 + $0x210] sm:$0xff]
    %v958 = vld [vmem:[#allocation7 + $0x218] sm:$0xff]
    %v959 = vld [vmem:[#allocation7 + $0x220] sm:$0xff]
    %v960 = vld [vmem:[#allocation7 + $0x228] sm:$0xff]
    %v961 = vld [vmem:[#allocation7 + $0x230] sm:$0xff]
    %v962 = vld [vmem:[#allocation7 + $0x238] sm:$0xff]
    %v963 = vld [vmem:[#allocation7 + $0x240] sm:$0xff]
    %v964 = vld [vmem:[#allocation7 + $0x248] sm:$0xff]
    %v965 = vld [vmem:[#allocation7 + $0x250] sm:$0xff]
    %v966 = vld [vmem:[#allocation7 + $0x258] sm:$0xff]
    %v967 = vld [vmem:[#allocation7 + $0x260] sm:$0xff]
    %v968 = vld [vmem:[#allocation7 + $0x268] sm:$0xff]
    %v969 = vld [vmem:[#allocation7 + $0x270] sm:$0xff]
    %v970 = vld [vmem:[#allocation7 + $0x278] sm:$0xff]
    %v971 = vld [vmem:[#allocation7 + $0x280] sm:$0xff]
    %v972 = vld [vmem:[#allocation7 + $0x288] sm:$0xff]
    %v973 = vld [vmem:[#allocation7 + $0x290] sm:$0xff]
    %v974 = vld [vmem:[#allocation7 + $0x298] sm:$0xff]
    %v975 = vld [vmem:[#allocation7 + $0x2a0] sm:$0xff]
    %v976 = vld [vmem:[#allocation7 + $0x2a8] sm:$0xff]
    %v977 = vld [vmem:[#allocation7 + $0x2b0] sm:$0xff]
    %v978 = vld [vmem:[#allocation7 + $0x2b8] sm:$0xff]
    %v979 = vld [vmem:[#allocation7 + $0x2c0] sm:$0xff]
    %v980 = vld [vmem:[#allocation7 + $0x2c8] sm:$0xff]
    %v981 = vld [vmem:[#allocation7 + $0x2d0] sm:$0xff]
    %v982 = vld [vmem:[#allocation7 + $0x2d8] sm:$0xff]
    %v983 = vld [vmem:[#allocation7 + $0x2e0] sm:$0xff]
    %v984 = vld [vmem:[#allocation7 + $0x2e8] sm:$0xff]
    %v985 = vld [vmem:[#allocation7 + $0x2f0] sm:$0xff]
    %v986 = vld [vmem:[#allocation7 + $0x2f8] sm:$0xff]
    %v987 = vld [vmem:[#allocation7 + $0x300] sm:$0xff]
    %v988 = vld [vmem:[#allocation7 + $0x308] sm:$0xff]
    %v989 = vld [vmem:[#allocation7 + $0x310] sm:$0xff]
    %v990 = vld [vmem:[#allocation7 + $0x318] sm:$0xff]
    %v991 = vld [vmem:[#allocation7 + $0x320] sm:$0xff]
    %v992 = vld [vmem:[#allocation7 + $0x328] sm:$0xff]
    %v993 = vld [vmem:[#allocation7 + $0x330] sm:$0xff]
    %v994 = vld [vmem:[#allocation7 + $0x338] sm:$0xff]
    %v995 = vld [vmem:[#allocation7 + $0x340] sm:$0xff]
    %v996 = vld [vmem:[#allocation7 + $0x348] sm:$0xff]
    %v997 = vld [vmem:[#allocation7 + $0x350] sm:$0xff]
    %v998 = vld [vmem:[#allocation7 + $0x358] sm:$0xff]
    %v999 = vld [vmem:[#allocation7 + $0x360] sm:$0xff]
    %v1000 = vld [vmem:[#allocation7 + $0x368] sm:$0xff]
    %v1001 = vld [vmem:[#allocation7 + $0x370] sm:$0xff]
    %v1002 = vld [vmem:[#allocation7 + $0x378] sm:$0xff]
    %v1003 = vld [vmem:[#allocation7 + $0x380] sm:$0xff]
    %v1004 = vld [vmem:[#allocation7 + $0x388] sm:$0xff]
    %v1005 = vld [vmem:[#allocation7 + $0x390] sm:$0xff]
    %v1006 = vld [vmem:[#allocation7 + $0x398] sm:$0xff]
    %v1007 = vld [vmem:[#allocation7 + $0x3a0] sm:$0xff]
    %v1008 = vld [vmem:[#allocation7 + $0x3a8] sm:$0xff]
    %v1009 = vld [vmem:[#allocation7 + $0x3b0] sm:$0xff]
    %v1010 = vld [vmem:[#allocation7 + $0x3b8] sm:$0xff]
    %v1011 = vld [vmem:[#allocation7 + $0x3c0] sm:$0xff]
    %v1012 = vld [vmem:[#allocation7 + $0x3c8] sm:$0xff]
    %v1013 = vld [vmem:[#allocation7 + $0x3d0] sm:$0xff]
    %v1014 = vld [vmem:[#allocation7 + $0x3d8] sm:$0xff]
    %v1015 = vld [vmem:[#allocation7 + $0x3e0] sm:$0xff]
    %v1016 = vld [vmem:[#allocation7 + $0x3e8] sm:$0xff]
    %v1017 = vld [vmem:[#allocation7 + $0x3f0] sm:$0xff]
    %v1018 = vld [vmem:[#allocation7 + $0x3f8] sm:$0xff]
    %v1019 = vld [vmem:[#allocation7 + $0x400] sm:$0xff]
    %v1020 = vld [vmem:[#allocation7 + $0x408] sm:$0xff]
    %v1021 = vld [vmem:[#allocation7 + $0x410] sm:$0xff]
    %v1022 = vld [vmem:[#allocation7 + $0x418] sm:$0xff]
    %v1023 = vld [vmem:[#allocation7 + $0x420] sm:$0xff]
    %v1024 = vld [vmem:[#allocation7 + $0x428] sm:$0xff]
    %v1025 = vld [vmem:[#allocation7 + $0x430] sm:$0xff]
    %v1026 = vld [vmem:[#allocation7 + $0x438] sm:$0xff]
    %v1027 = vld [vmem:[#allocation7 + $0x440] sm:$0xff]
    %v1028 = vld [vmem:[#allocation7 + $0x448] sm:$0xff]
    %v1029 = vld [vmem:[#allocation7 + $0x450] sm:$0xff]
    %v1030 = vld [vmem:[#allocation7 + $0x458] sm:$0xff]
    %v1031 = vld [vmem:[#allocation7 + $0x460] sm:$0xff]
    %v1032 = vld [vmem:[#allocation7 + $0x468] sm:$0xff]
    %v1033 = vld [vmem:[#allocation7 + $0x470] sm:$0xff]
    %v1034 = vld [vmem:[#allocation7 + $0x478] sm:$0xff]
    %v1035 = vld [vmem:[#allocation7 + $0x480] sm:$0xff]
    %v1036 = vld [vmem:[#allocation7 + $0x488] sm:$0xff]
    %v1037 = vld [vmem:[#allocation7 + $0x490] sm:$0xff]
    %v1038 = vld [vmem:[#allocation7 + $0x498] sm:$0xff]
    %v1039 = vld [vmem:[#allocation7 + $0x4a0] sm:$0xff]
    %v1040 = vld [vmem:[#allocation7 + $0x4a8] sm:$0xff]
    %v1041 = vld [vmem:[#allocation7 + $0x4b0] sm:$0xff]
    %v1042 = vld [vmem:[#allocation7 + $0x4b8] sm:$0xff]
    %v1043 = vld [vmem:[#allocation7 + $0x4c0] sm:$0xff]
    %v1044 = vld [vmem:[#allocation7 + $0x4c8] sm:$0xff]
    %v1045 = vld [vmem:[#allocation7 + $0x4d0] sm:$0xff]
    %v1046 = vld [vmem:[#allocation7 + $0x4d8] sm:$0xff]
    %v1047 = vld [vmem:[#allocation7 + $0x4e0] sm:$0xff]
    %v1048 = vld [vmem:[#allocation7 + $0x4e8] sm:$0xff]
    %v1049 = vld [vmem:[#allocation7 + $0x4f0] sm:$0xff]
    %v1050 = vld [vmem:[#allocation7 + $0x4f8] sm:$0xff]
    %v1051 = vld [vmem:[#allocation7 + $0x500] sm:$0xff]
    %v1052 = vld [vmem:[#allocation7 + $0x508] sm:$0xff]
    %v1053 = vld [vmem:[#allocation7 + $0x510] sm:$0xff]
    %v1054 = vld [vmem:[#allocation7 + $0x518] sm:$0xff]
    %v1055 = vld [vmem:[#allocation7 + $0x520] sm:$0xff]
    %v1056 = vld [vmem:[#allocation7 + $0x528] sm:$0xff]
    %v1057 = vld [vmem:[#allocation7 + $0x530] sm:$0xff]
    %v1058 = vld [vmem:[#allocation7 + $0x538] sm:$0xff]
    %v1059 = vld [vmem:[#allocation7 + $0x540] sm:$0xff]
    %v1060 = vld [vmem:[#allocation7 + $0x548] sm:$0xff]
    %v1061 = vld [vmem:[#allocation7 + $0x550] sm:$0xff]
    %v1062 = vld [vmem:[#allocation7 + $0x558] sm:$0xff]
    %v1063 = vld [vmem:[#allocation7 + $0x560] sm:$0xff]
    %v1064 = vld [vmem:[#allocation7 + $0x568] sm:$0xff]
    %v1065 = vld [vmem:[#allocation7 + $0x570] sm:$0xff]
    %v1066 = vld [vmem:[#allocation7 + $0x578] sm:$0xff]
    %v1067 = vld [vmem:[#allocation7 + $0x580] sm:$0xff]
    %v1068 = vld [vmem:[#allocation7 + $0x588] sm:$0xff]
    %v1069 = vld [vmem:[#allocation7 + $0x590] sm:$0xff]
    %v1070 = vld [vmem:[#allocation7 + $0x598] sm:$0xff]
    %v1071 = vld [vmem:[#allocation7 + $0x5a0] sm:$0xff]
    %v1072 = vld [vmem:[#allocation7 + $0x5a8] sm:$0xff]
    %v1073 = vld [vmem:[#allocation7 + $0x5b0] sm:$0xff]
    %v1074 = vld [vmem:[#allocation7 + $0x5b8] sm:$0xff]
    %v1075 = vld [vmem:[#allocation7 + $0x5c0] sm:$0xff]
    %v1076 = vld [vmem:[#allocation7 + $0x5c8] sm:$0xff]
    %v1077 = vld [vmem:[#allocation7 + $0x5d0] sm:$0xff]
    %v1078 = vld [vmem:[#allocation7 + $0x5d8] sm:$0xff]
    %v1079 = vld [vmem:[#allocation7 + $0x5e0] sm:$0xff]
    %v1080 = vld [vmem:[#allocation7 + $0x5e8] sm:$0xff]
    %v1081 = vld [vmem:[#allocation7 + $0x5f0] sm:$0xff]
    %v1082 = vld [vmem:[#allocation7 + $0x5f8] sm:$0xff]
    %v1083 = vld [vmem:[#allocation7 + $0x600] sm:$0xff]
    %v1084 = vld [vmem:[#allocation7 + $0x608] sm:$0xff]
    %v1085 = vld [vmem:[#allocation7 + $0x610] sm:$0xff]
    %v1086 = vld [vmem:[#allocation7 + $0x618] sm:$0xff]
    %v1087 = vld [vmem:[#allocation7 + $0x620] sm:$0xff]
    %v1088 = vld [vmem:[#allocation7 + $0x628] sm:$0xff]
    %v1089 = vld [vmem:[#allocation7 + $0x630] sm:$0xff]
    %v1090 = vld [vmem:[#allocation7 + $0x638] sm:$0xff]
    %v1091 = vld [vmem:[#allocation7 + $0x640] sm:$0xff]
    %v1092 = vld [vmem:[#allocation7 + $0x648] sm:$0xff]
    %v1093 = vld [vmem:[#allocation7 + $0x650] sm:$0xff]
    %v1094 = vld [vmem:[#allocation7 + $0x658] sm:$0xff]
    %v1095 = vld [vmem:[#allocation7 + $0x660] sm:$0xff]
    %v1096 = vld [vmem:[#allocation7 + $0x668] sm:$0xff]
    %v1097 = vld [vmem:[#allocation7 + $0x670] sm:$0xff]
    %v1098 = vld [vmem:[#allocation7 + $0x678] sm:$0xff]
    %v1099 = vld [vmem:[#allocation7 + $0x680] sm:$0xff]
    %v1100 = vld [vmem:[#allocation7 + $0x688] sm:$0xff]
    %v1101 = vld [vmem:[#allocation7 + $0x690] sm:$0xff]
    %v1102 = vld [vmem:[#allocation7 + $0x698] sm:$0xff]
    %v1103 = vld [vmem:[#allocation7 + $0x6a0] sm:$0xff]
    %v1104 = vld [vmem:[#allocation7 + $0x6a8] sm:$0xff]
    %v1105 = vld [vmem:[#allocation7 + $0x6b0] sm:$0xff]
    %v1106 = vld [vmem:[#allocation7 + $0x6b8] sm:$0xff]
    %v1107 = vld [vmem:[#allocation7 + $0x6c0] sm:$0xff]
    %v1108 = vld [vmem:[#allocation7 + $0x6c8] sm:$0xff]
    %v1109 = vld [vmem:[#allocation7 + $0x6d0] sm:$0xff]
    %v1110 = vld [vmem:[#allocation7 + $0x6d8] sm:$0xff]
    %v1111 = vld [vmem:[#allocation7 + $0x6e0] sm:$0xff]
    %v1112 = vld [vmem:[#allocation7 + $0x6e8] sm:$0xff]
    %v1113 = vld [vmem:[#allocation7 + $0x6f0] sm:$0xff]
    %v1114 = vld [vmem:[#allocation7 + $0x6f8] sm:$0xff]
    %v1115 = vld [vmem:[#allocation7 + $0x700] sm:$0xff]
    %v1116 = vld [vmem:[#allocation7 + $0x708] sm:$0xff]
    %v1117 = vld [vmem:[#allocation7 + $0x710] sm:$0xff]
    %v1118 = vld [vmem:[#allocation7 + $0x718] sm:$0xff]
    %v1119 = vld [vmem:[#allocation7 + $0x720] sm:$0xff]
    %v1120 = vld [vmem:[#allocation7 + $0x728] sm:$0xff]
    %v1121 = vld [vmem:[#allocation7 + $0x730] sm:$0xff]
    %v1122 = vld [vmem:[#allocation7 + $0x738] sm:$0xff]
    %v1123 = vld [vmem:[#allocation7 + $0x740] sm:$0xff]
    %v1124 = vld [vmem:[#allocation7 + $0x748] sm:$0xff]
    %v1125 = vld [vmem:[#allocation7 + $0x750] sm:$0xff]
    %v1126 = vld [vmem:[#allocation7 + $0x758] sm:$0xff]
    %v1127 = vld [vmem:[#allocation7 + $0x760] sm:$0xff]
    %v1128 = vld [vmem:[#allocation7 + $0x768] sm:$0xff]
    %v1129 = vld [vmem:[#allocation7 + $0x770] sm:$0xff]
    %v1130 = vld [vmem:[#allocation7 + $0x778] sm:$0xff]
    %v1131 = vld [vmem:[#allocation7 + $0x780] sm:$0xff]
    %v1132 = vld [vmem:[#allocation7 + $0x788] sm:$0xff]
    %v1133 = vld [vmem:[#allocation7 + $0x790] sm:$0xff]
    %v1134 = vld [vmem:[#allocation7 + $0x798] sm:$0xff]
    %v1135 = vld [vmem:[#allocation7 + $0x7a0] sm:$0xff]
    %v1136 = vld [vmem:[#allocation7 + $0x7a8] sm:$0xff]
    %v1137 = vld [vmem:[#allocation7 + $0x7b0] sm:$0xff]
    %v1138 = vld [vmem:[#allocation7 + $0x7b8] sm:$0xff]
    %v1139 = vld [vmem:[#allocation7 + $0x7c0] sm:$0xff]
    %v1140 = vld [vmem:[#allocation7 + $0x7c8] sm:$0xff]
    %v1141 = vld [vmem:[#allocation7 + $0x7d0] sm:$0xff]
    %v1142 = vld [vmem:[#allocation7 + $0x7d8] sm:$0xff]
    %v1143 = vld [vmem:[#allocation7 + $0x7e0] sm:$0xff]
    %v1144 = vld [vmem:[#allocation7 + $0x7e8] sm:$0xff]
    %v1145 = vld [vmem:[#allocation7 + $0x7f0] sm:$0xff]
    %v1146 = vld [vmem:[#allocation7 + $0x7f8] sm:$0xff]
    %v1147 = vld [vmem:[%s8] sm:$0xf]
    %v1149 = vlaneseq
    %v1150 = vshrl.u32 %v1149, 7
    %v1151 = vsub.s32 0, %v1150
    %v1152 = vrot.slane %v1147, %v1151
    %v1153 = vlaneseq
    %v1154 = vshrl.u32 %v1153, 7
    %v1155 = vsub.s32 1, %v1154
    %v1156 = vrot.slane %v1147, %v1155
    %v1157 = vlaneseq
    %v1158 = vshrl.u32 %v1157, 7
    %v1159 = vsub.s32 2, %v1158
    %v1160 = vrot.slane %v1147, %v1159
    %v1161 = vlaneseq
    %v1162 = vshrl.u32 %v1161, 7
    %v1163 = vsub.s32 3, %v1162
    %v1164 = vrot.slane %v1147, %v1163
    %v1425 = vunpack.c.l.b16 %v891
    %v1426 = vunpack.c.h.b16 %v891
    %v1427 = vunpack.c.l.b16 %v892
    %v1428 = vunpack.c.h.b16 %v892
    %v1429 = vunpack.c.l.b16 %v893
    %v1430 = vunpack.c.h.b16 %v893
    %v1431 = vunpack.c.l.b16 %v894
    %v1432 = vunpack.c.h.b16 %v894
    %v1433 = vunpack.c.l.b16 %v895
    %v1434 = vunpack.c.h.b16 %v895
    %v1435 = vunpack.c.l.b16 %v896
    %v1436 = vunpack.c.h.b16 %v896
    %v1437 = vunpack.c.l.b16 %v897
    %v1438 = vunpack.c.h.b16 %v897
    %v1439 = vunpack.c.l.b16 %v898
    %v1440 = vunpack.c.h.b16 %v898
    %v1441 = vunpack.c.l.b16 %v899
    %v1442 = vunpack.c.h.b16 %v899
    %v1443 = vunpack.c.l.b16 %v900
    %v1444 = vunpack.c.h.b16 %v900
    %v1445 = vunpack.c.l.b16 %v901
    %v1446 = vunpack.c.h.b16 %v901
    %v1447 = vunpack.c.l.b16 %v902
    %v1448 = vunpack.c.h.b16 %v902
    %v1449 = vunpack.c.l.b16 %v903
    %v1450 = vunpack.c.h.b16 %v903
    %v1451 = vunpack.c.l.b16 %v904
    %v1452 = vunpack.c.h.b16 %v904
    %v1453 = vunpack.c.l.b16 %v905
    %v1454 = vunpack.c.h.b16 %v905
    %v1455 = vunpack.c.l.b16 %v906
    %v1456 = vunpack.c.h.b16 %v906
    %v1457 = vunpack.c.l.b16 %v907
    %v1458 = vunpack.c.h.b16 %v907
    %v1459 = vunpack.c.l.b16 %v908
    %v1460 = vunpack.c.h.b16 %v908
    %v1461 = vunpack.c.l.b16 %v909
    %v1462 = vunpack.c.h.b16 %v909
    %v1463 = vunpack.c.l.b16 %v910
    %v1464 = vunpack.c.h.b16 %v910
    %v1465 = vunpack.c.l.b16 %v911
    %v1466 = vunpack.c.h.b16 %v911
    %v1467 = vunpack.c.l.b16 %v912
    %v1468 = vunpack.c.h.b16 %v912
    %v1469 = vunpack.c.l.b16 %v913
    %v1470 = vunpack.c.h.b16 %v913
    %v1471 = vunpack.c.l.b16 %v914
    %v1472 = vunpack.c.h.b16 %v914
    %v1473 = vunpack.c.l.b16 %v915
    %v1474 = vunpack.c.h.b16 %v915
    %v1475 = vunpack.c.l.b16 %v916
    %v1476 = vunpack.c.h.b16 %v916
    %v1477 = vunpack.c.l.b16 %v917
    %v1478 = vunpack.c.h.b16 %v917
    %v1479 = vunpack.c.l.b16 %v918
    %v1480 = vunpack.c.h.b16 %v918
    %v1481 = vunpack.c.l.b16 %v919
    %v1482 = vunpack.c.h.b16 %v919
    %v1483 = vunpack.c.l.b16 %v920
    %v1484 = vunpack.c.h.b16 %v920
    %v1485 = vunpack.c.l.b16 %v921
    %v1486 = vunpack.c.h.b16 %v921
    %v1487 = vunpack.c.l.b16 %v922
    %v1488 = vunpack.c.h.b16 %v922
    %v1489 = vunpack.c.l.b16 %v923
    %v1490 = vunpack.c.h.b16 %v923
    %v1491 = vunpack.c.l.b16 %v924
    %v1492 = vunpack.c.h.b16 %v924
    %v1493 = vunpack.c.l.b16 %v925
    %v1494 = vunpack.c.h.b16 %v925
    %v1495 = vunpack.c.l.b16 %v926
    %v1496 = vunpack.c.h.b16 %v926
    %v1497 = vunpack.c.l.b16 %v927
    %v1498 = vunpack.c.h.b16 %v927
    %v1499 = vunpack.c.l.b16 %v928
    %v1500 = vunpack.c.h.b16 %v928
    %v1501 = vunpack.c.l.b16 %v929
    %v1502 = vunpack.c.h.b16 %v929
    %v1503 = vunpack.c.l.b16 %v930
    %v1504 = vunpack.c.h.b16 %v930
    %v1505 = vunpack.c.l.b16 %v931
    %v1506 = vunpack.c.h.b16 %v931
    %v1507 = vunpack.c.l.b16 %v932
    %v1508 = vunpack.c.h.b16 %v932
    %v1509 = vunpack.c.l.b16 %v933
    %v1510 = vunpack.c.h.b16 %v933
    %v1511 = vunpack.c.l.b16 %v934
    %v1512 = vunpack.c.h.b16 %v934
    %v1513 = vunpack.c.l.b16 %v935
    %v1514 = vunpack.c.h.b16 %v935
    %v1515 = vunpack.c.l.b16 %v936
    %v1516 = vunpack.c.h.b16 %v936
    %v1517 = vunpack.c.l.b16 %v937
    %v1518 = vunpack.c.h.b16 %v937
    %v1519 = vunpack.c.l.b16 %v938
    %v1520 = vunpack.c.h.b16 %v938
    %v1521 = vunpack.c.l.b16 %v939
    %v1522 = vunpack.c.h.b16 %v939
    %v1523 = vunpack.c.l.b16 %v940
    %v1524 = vunpack.c.h.b16 %v940
    %v1525 = vunpack.c.l.b16 %v941
    %v1526 = vunpack.c.h.b16 %v941
    %v1527 = vunpack.c.l.b16 %v942
    %v1528 = vunpack.c.h.b16 %v942
    %v1529 = vunpack.c.l.b16 %v943
    %v1530 = vunpack.c.h.b16 %v943
    %v1531 = vunpack.c.l.b16 %v944
    %v1532 = vunpack.c.h.b16 %v944
    %v1533 = vunpack.c.l.b16 %v945
    %v1534 = vunpack.c.h.b16 %v945
    %v1535 = vunpack.c.l.b16 %v946
    %v1536 = vunpack.c.h.b16 %v946
    %v1537 = vunpack.c.l.b16 %v947
    %v1538 = vunpack.c.h.b16 %v947
    %v1539 = vunpack.c.l.b16 %v948
    %v1540 = vunpack.c.h.b16 %v948
    %v1541 = vunpack.c.l.b16 %v949
    %v1542 = vunpack.c.h.b16 %v949
    %v1543 = vunpack.c.l.b16 %v950
    %v1544 = vunpack.c.h.b16 %v950
    %v1545 = vunpack.c.l.b16 %v951
    %v1546 = vunpack.c.h.b16 %v951
    %v1547 = vunpack.c.l.b16 %v952
    %v1548 = vunpack.c.h.b16 %v952
    %v1549 = vunpack.c.l.b16 %v953
    %v1550 = vunpack.c.h.b16 %v953
    %v1551 = vunpack.c.l.b16 %v954
    %v1552 = vunpack.c.h.b16 %v954
    %v1553 = vunpack.c.l.b16 %v955
    %v1554 = vunpack.c.h.b16 %v955
    %v1555 = vunpack.c.l.b16 %v956
    %v1556 = vunpack.c.h.b16 %v956
    %v1557 = vunpack.c.l.b16 %v957
    %v1558 = vunpack.c.h.b16 %v957
    %v1559 = vunpack.c.l.b16 %v958
    %v1560 = vunpack.c.h.b16 %v958
    %v1561 = vunpack.c.l.b16 %v959
    %v1562 = vunpack.c.h.b16 %v959
    %v1563 = vunpack.c.l.b16 %v960
    %v1564 = vunpack.c.h.b16 %v960
    %v1565 = vunpack.c.l.b16 %v961
    %v1566 = vunpack.c.h.b16 %v961
    %v1567 = vunpack.c.l.b16 %v962
    %v1568 = vunpack.c.h.b16 %v962
    %v1569 = vunpack.c.l.b16 %v963
    %v1570 = vunpack.c.h.b16 %v963
    %v1571 = vunpack.c.l.b16 %v964
    %v1572 = vunpack.c.h.b16 %v964
    %v1573 = vunpack.c.l.b16 %v965
    %v1574 = vunpack.c.h.b16 %v965
    %v1575 = vunpack.c.l.b16 %v966
    %v1576 = vunpack.c.h.b16 %v966
    %v1577 = vunpack.c.l.b16 %v967
    %v1578 = vunpack.c.h.b16 %v967
    %v1579 = vunpack.c.l.b16 %v968
    %v1580 = vunpack.c.h.b16 %v968
    %v1581 = vunpack.c.l.b16 %v969
    %v1582 = vunpack.c.h.b16 %v969
    %v1583 = vunpack.c.l.b16 %v970
    %v1584 = vunpack.c.h.b16 %v970
    %v1585 = vunpack.c.l.b16 %v971
    %v1586 = vunpack.c.h.b16 %v971
    %v1587 = vunpack.c.l.b16 %v972
    %v1588 = vunpack.c.h.b16 %v972
    %v1589 = vunpack.c.l.b16 %v973
    %v1590 = vunpack.c.h.b16 %v973
    %v1591 = vunpack.c.l.b16 %v974
    %v1592 = vunpack.c.h.b16 %v974
    %v1593 = vunpack.c.l.b16 %v975
    %v1594 = vunpack.c.h.b16 %v975
    %v1595 = vunpack.c.l.b16 %v976
    %v1596 = vunpack.c.h.b16 %v976
    %v1597 = vunpack.c.l.b16 %v977
    %v1598 = vunpack.c.h.b16 %v977
    %v1599 = vunpack.c.l.b16 %v978
    %v1600 = vunpack.c.h.b16 %v978
    %v1601 = vunpack.c.l.b16 %v979
    %v1602 = vunpack.c.h.b16 %v979
    %v1603 = vunpack.c.l.b16 %v980
    %v1604 = vunpack.c.h.b16 %v980
    %v1605 = vunpack.c.l.b16 %v981
    %v1606 = vunpack.c.h.b16 %v981
    %v1607 = vunpack.c.l.b16 %v982
    %v1608 = vunpack.c.h.b16 %v982
    %v1609 = vunpack.c.l.b16 %v983
    %v1610 = vunpack.c.h.b16 %v983
    %v1611 = vunpack.c.l.b16 %v984
    %v1612 = vunpack.c.h.b16 %v984
    %v1613 = vunpack.c.l.b16 %v985
    %v1614 = vunpack.c.h.b16 %v985
    %v1615 = vunpack.c.l.b16 %v986
    %v1616 = vunpack.c.h.b16 %v986
    %v1617 = vunpack.c.l.b16 %v987
    %v1618 = vunpack.c.h.b16 %v987
    %v1619 = vunpack.c.l.b16 %v988
    %v1620 = vunpack.c.h.b16 %v988
    %v1621 = vunpack.c.l.b16 %v989
    %v1622 = vunpack.c.h.b16 %v989
    %v1623 = vunpack.c.l.b16 %v990
    %v1624 = vunpack.c.h.b16 %v990
    %v1625 = vunpack.c.l.b16 %v991
    %v1626 = vunpack.c.h.b16 %v991
    %v1627 = vunpack.c.l.b16 %v992
    %v1628 = vunpack.c.h.b16 %v992
    %v1629 = vunpack.c.l.b16 %v993
    %v1630 = vunpack.c.h.b16 %v993
    %v1631 = vunpack.c.l.b16 %v994
    %v1632 = vunpack.c.h.b16 %v994
    %v1633 = vunpack.c.l.b16 %v995
    %v1634 = vunpack.c.h.b16 %v995
    %v1635 = vunpack.c.l.b16 %v996
    %v1636 = vunpack.c.h.b16 %v996
    %v1637 = vunpack.c.l.b16 %v997
    %v1638 = vunpack.c.h.b16 %v997
    %v1639 = vunpack.c.l.b16 %v998
    %v1640 = vunpack.c.h.b16 %v998
    %v1641 = vunpack.c.l.b16 %v999
    %v1642 = vunpack.c.h.b16 %v999
    %v1643 = vunpack.c.l.b16 %v1000
    %v1644 = vunpack.c.h.b16 %v1000
    %v1645 = vunpack.c.l.b16 %v1001
    %v1646 = vunpack.c.h.b16 %v1001
    %v1647 = vunpack.c.l.b16 %v1002
    %v1648 = vunpack.c.h.b16 %v1002
    %v1649 = vunpack.c.l.b16 %v1003
    %v1650 = vunpack.c.h.b16 %v1003
    %v1651 = vunpack.c.l.b16 %v1004
    %v1652 = vunpack.c.h.b16 %v1004
    %v1653 = vunpack.c.l.b16 %v1005
    %v1654 = vunpack.c.h.b16 %v1005
    %v1655 = vunpack.c.l.b16 %v1006
    %v1656 = vunpack.c.h.b16 %v1006
    %v1657 = vunpack.c.l.b16 %v1007
    %v1658 = vunpack.c.h.b16 %v1007
    %v1659 = vunpack.c.l.b16 %v1008
    %v1660 = vunpack.c.h.b16 %v1008
    %v1661 = vunpack.c.l.b16 %v1009
    %v1662 = vunpack.c.h.b16 %v1009
    %v1663 = vunpack.c.l.b16 %v1010
    %v1664 = vunpack.c.h.b16 %v1010
    %v1665 = vunpack.c.l.b16 %v1011
    %v1666 = vunpack.c.h.b16 %v1011
    %v1667 = vunpack.c.l.b16 %v1012
    %v1668 = vunpack.c.h.b16 %v1012
    %v1669 = vunpack.c.l.b16 %v1013
    %v1670 = vunpack.c.h.b16 %v1013
    %v1671 = vunpack.c.l.b16 %v1014
    %v1672 = vunpack.c.h.b16 %v1014
    %v1673 = vunpack.c.l.b16 %v1015
    %v1674 = vunpack.c.h.b16 %v1015
    %v1675 = vunpack.c.l.b16 %v1016
    %v1676 = vunpack.c.h.b16 %v1016
    %v1677 = vunpack.c.l.b16 %v1017
    %v1678 = vunpack.c.h.b16 %v1017
    %v1679 = vunpack.c.l.b16 %v1018
    %v1680 = vunpack.c.h.b16 %v1018
    %v1681 = vunpack.c.l.b16 %v1019
    %v1682 = vunpack.c.h.b16 %v1019
    %v1683 = vunpack.c.l.b16 %v1020
    %v1684 = vunpack.c.h.b16 %v1020
    %v1685 = vunpack.c.l.b16 %v1021
    %v1686 = vunpack.c.h.b16 %v1021
    %v1687 = vunpack.c.l.b16 %v1022
    %v1688 = vunpack.c.h.b16 %v1022
    %v1689 = vunpack.c.l.b16 %v1023
    %v1690 = vunpack.c.h.b16 %v1023
    %v1691 = vunpack.c.l.b16 %v1024
    %v1692 = vunpack.c.h.b16 %v1024
    %v1693 = vunpack.c.l.b16 %v1025
    %v1694 = vunpack.c.h.b16 %v1025
    %v1695 = vunpack.c.l.b16 %v1026
    %v1696 = vunpack.c.h.b16 %v1026
    %v1697 = vunpack.c.l.b16 %v1027
    %v1698 = vunpack.c.h.b16 %v1027
    %v1699 = vunpack.c.l.b16 %v1028
    %v1700 = vunpack.c.h.b16 %v1028
    %v1701 = vunpack.c.l.b16 %v1029
    %v1702 = vunpack.c.h.b16 %v1029
    %v1703 = vunpack.c.l.b16 %v1030
    %v1704 = vunpack.c.h.b16 %v1030
    %v1705 = vunpack.c.l.b16 %v1031
    %v1706 = vunpack.c.h.b16 %v1031
    %v1707 = vunpack.c.l.b16 %v1032
    %v1708 = vunpack.c.h.b16 %v1032
    %v1709 = vunpack.c.l.b16 %v1033
    %v1710 = vunpack.c.h.b16 %v1033
    %v1711 = vunpack.c.l.b16 %v1034
    %v1712 = vunpack.c.h.b16 %v1034
    %v1713 = vunpack.c.l.b16 %v1035
    %v1714 = vunpack.c.h.b16 %v1035
    %v1715 = vunpack.c.l.b16 %v1036
    %v1716 = vunpack.c.h.b16 %v1036
    %v1717 = vunpack.c.l.b16 %v1037
    %v1718 = vunpack.c.h.b16 %v1037
    %v1719 = vunpack.c.l.b16 %v1038
    %v1720 = vunpack.c.h.b16 %v1038
    %v1721 = vunpack.c.l.b16 %v1039
    %v1722 = vunpack.c.h.b16 %v1039
    %v1723 = vunpack.c.l.b16 %v1040
    %v1724 = vunpack.c.h.b16 %v1040
    %v1725 = vunpack.c.l.b16 %v1041
    %v1726 = vunpack.c.h.b16 %v1041
    %v1727 = vunpack.c.l.b16 %v1042
    %v1728 = vunpack.c.h.b16 %v1042
    %v1729 = vunpack.c.l.b16 %v1043
    %v1730 = vunpack.c.h.b16 %v1043
    %v1731 = vunpack.c.l.b16 %v1044
    %v1732 = vunpack.c.h.b16 %v1044
    %v1733 = vunpack.c.l.b16 %v1045
    %v1734 = vunpack.c.h.b16 %v1045
    %v1735 = vunpack.c.l.b16 %v1046
    %v1736 = vunpack.c.h.b16 %v1046
    %v1737 = vunpack.c.l.b16 %v1047
    %v1738 = vunpack.c.h.b16 %v1047
    %v1739 = vunpack.c.l.b16 %v1048
    %v1740 = vunpack.c.h.b16 %v1048
    %v1741 = vunpack.c.l.b16 %v1049
    %v1742 = vunpack.c.h.b16 %v1049
    %v1743 = vunpack.c.l.b16 %v1050
    %v1744 = vunpack.c.h.b16 %v1050
    %v1745 = vunpack.c.l.b16 %v1051
    %v1746 = vunpack.c.h.b16 %v1051
    %v1747 = vunpack.c.l.b16 %v1052
    %v1748 = vunpack.c.h.b16 %v1052
    %v1749 = vunpack.c.l.b16 %v1053
    %v1750 = vunpack.c.h.b16 %v1053
    %v1751 = vunpack.c.l.b16 %v1054
    %v1752 = vunpack.c.h.b16 %v1054
    %v1753 = vunpack.c.l.b16 %v1055
    %v1754 = vunpack.c.h.b16 %v1055
    %v1755 = vunpack.c.l.b16 %v1056
    %v1756 = vunpack.c.h.b16 %v1056
    %v1757 = vunpack.c.l.b16 %v1057
    %v1758 = vunpack.c.h.b16 %v1057
    %v1759 = vunpack.c.l.b16 %v1058
    %v1760 = vunpack.c.h.b16 %v1058
    %v1761 = vunpack.c.l.b16 %v1059
    %v1762 = vunpack.c.h.b16 %v1059
    %v1763 = vunpack.c.l.b16 %v1060
    %v1764 = vunpack.c.h.b16 %v1060
    %v1765 = vunpack.c.l.b16 %v1061
    %v1766 = vunpack.c.h.b16 %v1061
    %v1767 = vunpack.c.l.b16 %v1062
    %v1768 = vunpack.c.h.b16 %v1062
    %v1769 = vunpack.c.l.b16 %v1063
    %v1770 = vunpack.c.h.b16 %v1063
    %v1771 = vunpack.c.l.b16 %v1064
    %v1772 = vunpack.c.h.b16 %v1064
    %v1773 = vunpack.c.l.b16 %v1065
    %v1774 = vunpack.c.h.b16 %v1065
    %v1775 = vunpack.c.l.b16 %v1066
    %v1776 = vunpack.c.h.b16 %v1066
    %v1777 = vunpack.c.l.b16 %v1067
    %v1778 = vunpack.c.h.b16 %v1067
    %v1779 = vunpack.c.l.b16 %v1068
    %v1780 = vunpack.c.h.b16 %v1068
    %v1781 = vunpack.c.l.b16 %v1069
    %v1782 = vunpack.c.h.b16 %v1069
    %v1783 = vunpack.c.l.b16 %v1070
    %v1784 = vunpack.c.h.b16 %v1070
    %v1785 = vunpack.c.l.b16 %v1071
    %v1786 = vunpack.c.h.b16 %v1071
    %v1787 = vunpack.c.l.b16 %v1072
    %v1788 = vunpack.c.h.b16 %v1072
    %v1789 = vunpack.c.l.b16 %v1073
    %v1790 = vunpack.c.h.b16 %v1073
    %v1791 = vunpack.c.l.b16 %v1074
    %v1792 = vunpack.c.h.b16 %v1074
    %v1793 = vunpack.c.l.b16 %v1075
    %v1794 = vunpack.c.h.b16 %v1075
    %v1795 = vunpack.c.l.b16 %v1076
    %v1796 = vunpack.c.h.b16 %v1076
    %v1797 = vunpack.c.l.b16 %v1077
    %v1798 = vunpack.c.h.b16 %v1077
    %v1799 = vunpack.c.l.b16 %v1078
    %v1800 = vunpack.c.h.b16 %v1078
    %v1801 = vunpack.c.l.b16 %v1079
    %v1802 = vunpack.c.h.b16 %v1079
    %v1803 = vunpack.c.l.b16 %v1080
    %v1804 = vunpack.c.h.b16 %v1080
    %v1805 = vunpack.c.l.b16 %v1081
    %v1806 = vunpack.c.h.b16 %v1081
    %v1807 = vunpack.c.l.b16 %v1082
    %v1808 = vunpack.c.h.b16 %v1082
    %v1809 = vunpack.c.l.b16 %v1083
    %v1810 = vunpack.c.h.b16 %v1083
    %v1811 = vunpack.c.l.b16 %v1084
    %v1812 = vunpack.c.h.b16 %v1084
    %v1813 = vunpack.c.l.b16 %v1085
    %v1814 = vunpack.c.h.b16 %v1085
    %v1815 = vunpack.c.l.b16 %v1086
    %v1816 = vunpack.c.h.b16 %v1086
    %v1817 = vunpack.c.l.b16 %v1087
    %v1818 = vunpack.c.h.b16 %v1087
    %v1819 = vunpack.c.l.b16 %v1088
    %v1820 = vunpack.c.h.b16 %v1088
    %v1821 = vunpack.c.l.b16 %v1089
    %v1822 = vunpack.c.h.b16 %v1089
    %v1823 = vunpack.c.l.b16 %v1090
    %v1824 = vunpack.c.h.b16 %v1090
    %v1825 = vunpack.c.l.b16 %v1091
    %v1826 = vunpack.c.h.b16 %v1091
    %v1827 = vunpack.c.l.b16 %v1092
    %v1828 = vunpack.c.h.b16 %v1092
    %v1829 = vunpack.c.l.b16 %v1093
    %v1830 = vunpack.c.h.b16 %v1093
    %v1831 = vunpack.c.l.b16 %v1094
    %v1832 = vunpack.c.h.b16 %v1094
    %v1833 = vunpack.c.l.b16 %v1095
    %v1834 = vunpack.c.h.b16 %v1095
    %v1835 = vunpack.c.l.b16 %v1096
    %v1836 = vunpack.c.h.b16 %v1096
    %v1837 = vunpack.c.l.b16 %v1097
    %v1838 = vunpack.c.h.b16 %v1097
    %v1839 = vunpack.c.l.b16 %v1098
    %v1840 = vunpack.c.h.b16 %v1098
    %v1841 = vunpack.c.l.b16 %v1099
    %v1842 = vunpack.c.h.b16 %v1099
    %v1843 = vunpack.c.l.b16 %v1100
    %v1844 = vunpack.c.h.b16 %v1100
    %v1845 = vunpack.c.l.b16 %v1101
    %v1846 = vunpack.c.h.b16 %v1101
    %v1847 = vunpack.c.l.b16 %v1102
    %v1848 = vunpack.c.h.b16 %v1102
    %v1849 = vunpack.c.l.b16 %v1103
    %v1850 = vunpack.c.h.b16 %v1103
    %v1851 = vunpack.c.l.b16 %v1104
    %v1852 = vunpack.c.h.b16 %v1104
    %v1853 = vunpack.c.l.b16 %v1105
    %v1854 = vunpack.c.h.b16 %v1105
    %v1855 = vunpack.c.l.b16 %v1106
    %v1856 = vunpack.c.h.b16 %v1106
    %v1857 = vunpack.c.l.b16 %v1107
    %v1858 = vunpack.c.h.b16 %v1107
    %v1859 = vunpack.c.l.b16 %v1108
    %v1860 = vunpack.c.h.b16 %v1108
    %v1861 = vunpack.c.l.b16 %v1109
    %v1862 = vunpack.c.h.b16 %v1109
    %v1863 = vunpack.c.l.b16 %v1110
    %v1864 = vunpack.c.h.b16 %v1110
    %v1865 = vunpack.c.l.b16 %v1111
    %v1866 = vunpack.c.h.b16 %v1111
    %v1867 = vunpack.c.l.b16 %v1112
    %v1868 = vunpack.c.h.b16 %v1112
    %v1869 = vunpack.c.l.b16 %v1113
    %v1870 = vunpack.c.h.b16 %v1113
    %v1871 = vunpack.c.l.b16 %v1114
    %v1872 = vunpack.c.h.b16 %v1114
    %v1873 = vunpack.c.l.b16 %v1115
    %v1874 = vunpack.c.h.b16 %v1115
    %v1875 = vunpack.c.l.b16 %v1116
    %v1876 = vunpack.c.h.b16 %v1116
    %v1877 = vunpack.c.l.b16 %v1117
    %v1878 = vunpack.c.h.b16 %v1117
    %v1879 = vunpack.c.l.b16 %v1118
    %v1880 = vunpack.c.h.b16 %v1118
    %v1881 = vunpack.c.l.b16 %v1119
    %v1882 = vunpack.c.h.b16 %v1119
    %v1883 = vunpack.c.l.b16 %v1120
    %v1884 = vunpack.c.h.b16 %v1120
    %v1885 = vunpack.c.l.b16 %v1121
    %v1886 = vunpack.c.h.b16 %v1121
    %v1887 = vunpack.c.l.b16 %v1122
    %v1888 = vunpack.c.h.b16 %v1122
    %v1889 = vunpack.c.l.b16 %v1123
    %v1890 = vunpack.c.h.b16 %v1123
    %v1891 = vunpack.c.l.b16 %v1124
    %v1892 = vunpack.c.h.b16 %v1124
    %v1893 = vunpack.c.l.b16 %v1125
    %v1894 = vunpack.c.h.b16 %v1125
    %v1895 = vunpack.c.l.b16 %v1126
    %v1896 = vunpack.c.h.b16 %v1126
    %v1897 = vunpack.c.l.b16 %v1127
    %v1898 = vunpack.c.h.b16 %v1127
    %v1899 = vunpack.c.l.b16 %v1128
    %v1900 = vunpack.c.h.b16 %v1128
    %v1901 = vunpack.c.l.b16 %v1129
    %v1902 = vunpack.c.h.b16 %v1129
    %v1903 = vunpack.c.l.b16 %v1130
    %v1904 = vunpack.c.h.b16 %v1130
    %v1905 = vunpack.c.l.b16 %v1131
    %v1906 = vunpack.c.h.b16 %v1131
    %v1907 = vunpack.c.l.b16 %v1132
    %v1908 = vunpack.c.h.b16 %v1132
    %v1909 = vunpack.c.l.b16 %v1133
    %v1910 = vunpack.c.h.b16 %v1133
    %v1911 = vunpack.c.l.b16 %v1134
    %v1912 = vunpack.c.h.b16 %v1134
    %v1913 = vunpack.c.l.b16 %v1135
    %v1914 = vunpack.c.h.b16 %v1135
    %v1915 = vunpack.c.l.b16 %v1136
    %v1916 = vunpack.c.h.b16 %v1136
    %v1917 = vunpack.c.l.b16 %v1137
    %v1918 = vunpack.c.h.b16 %v1137
    %v1919 = vunpack.c.l.b16 %v1138
    %v1920 = vunpack.c.h.b16 %v1138
    %v1921 = vunpack.c.l.b16 %v1139
    %v1922 = vunpack.c.h.b16 %v1139
    %v1923 = vunpack.c.l.b16 %v1140
    %v1924 = vunpack.c.h.b16 %v1140
    %v1925 = vunpack.c.l.b16 %v1141
    %v1926 = vunpack.c.h.b16 %v1141
    %v1927 = vunpack.c.l.b16 %v1142
    %v1928 = vunpack.c.h.b16 %v1142
    %v1929 = vunpack.c.l.b16 %v1143
    %v1930 = vunpack.c.h.b16 %v1143
    %v1931 = vunpack.c.l.b16 %v1144
    %v1932 = vunpack.c.h.b16 %v1144
    %v1933 = vunpack.c.l.b16 %v1145
    %v1934 = vunpack.c.h.b16 %v1145
    %v1935 = vunpack.c.l.b16 %v1146
    %v1936 = vunpack.c.h.b16 %v1146
    %v1937 = vpack.c.b16 %v1429, %v1425
    %v1938 = vpack.c.b16 %v1430, %v1426
    %v1939 = vpack.c.b16 %v1431, %v1427
    %v1940 = vpack.c.b16 %v1432, %v1428
    %v1941 = vpack.c.b16 %v1437, %v1433
    %v1942 = vpack.c.b16 %v1438, %v1434
    %v1943 = vpack.c.b16 %v1439, %v1435
    %v1944 = vpack.c.b16 %v1440, %v1436
    %v1945 = vpack.c.b16 %v1445, %v1441
    %v1946 = vpack.c.b16 %v1446, %v1442
    %v1947 = vpack.c.b16 %v1447, %v1443
    %v1948 = vpack.c.b16 %v1448, %v1444
    %v1949 = vpack.c.b16 %v1453, %v1449
    %v1950 = vpack.c.b16 %v1454, %v1450
    %v1951 = vpack.c.b16 %v1455, %v1451
    %v1952 = vpack.c.b16 %v1456, %v1452
    %v1953 = vpack.c.b16 %v1461, %v1457
    %v1954 = vpack.c.b16 %v1462, %v1458
    %v1955 = vpack.c.b16 %v1463, %v1459
    %v1956 = vpack.c.b16 %v1464, %v1460
    %v1957 = vpack.c.b16 %v1469, %v1465
    %v1958 = vpack.c.b16 %v1470, %v1466
    %v1959 = vpack.c.b16 %v1471, %v1467
    %v1960 = vpack.c.b16 %v1472, %v1468
    %v1961 = vpack.c.b16 %v1477, %v1473
    %v1962 = vpack.c.b16 %v1478, %v1474
    %v1963 = vpack.c.b16 %v1479, %v1475
    %v1964 = vpack.c.b16 %v1480, %v1476
    %v1965 = vpack.c.b16 %v1485, %v1481
    %v1966 = vpack.c.b16 %v1486, %v1482
    %v1967 = vpack.c.b16 %v1487, %v1483
    %v1968 = vpack.c.b16 %v1488, %v1484
    %v1969 = vpack.c.b16 %v1493, %v1489
    %v1970 = vpack.c.b16 %v1494, %v1490
    %v1971 = vpack.c.b16 %v1495, %v1491
    %v1972 = vpack.c.b16 %v1496, %v1492
    %v1973 = vpack.c.b16 %v1501, %v1497
    %v1974 = vpack.c.b16 %v1502, %v1498
    %v1975 = vpack.c.b16 %v1503, %v1499
    %v1976 = vpack.c.b16 %v1504, %v1500
    %v1977 = vpack.c.b16 %v1509, %v1505
    %v1978 = vpack.c.b16 %v1510, %v1506
    %v1979 = vpack.c.b16 %v1511, %v1507
    %v1980 = vpack.c.b16 %v1512, %v1508
    %v1981 = vpack.c.b16 %v1517, %v1513
    %v1982 = vpack.c.b16 %v1518, %v1514
    %v1983 = vpack.c.b16 %v1519, %v1515
    %v1984 = vpack.c.b16 %v1520, %v1516
    %v1985 = vpack.c.b16 %v1525, %v1521
    %v1986 = vpack.c.b16 %v1526, %v1522
    %v1987 = vpack.c.b16 %v1527, %v1523
    %v1988 = vpack.c.b16 %v1528, %v1524
    %v1989 = vpack.c.b16 %v1533, %v1529
    %v1990 = vpack.c.b16 %v1534, %v1530
    %v1991 = vpack.c.b16 %v1535, %v1531
    %v1992 = vpack.c.b16 %v1536, %v1532
    %v1993 = vpack.c.b16 %v1541, %v1537
    %v1994 = vpack.c.b16 %v1542, %v1538
    %v1995 = vpack.c.b16 %v1543, %v1539
    %v1996 = vpack.c.b16 %v1544, %v1540
    %v1997 = vpack.c.b16 %v1549, %v1545
    %v1998 = vpack.c.b16 %v1550, %v1546
    %v1999 = vpack.c.b16 %v1551, %v1547
    %v2000 = vpack.c.b16 %v1552, %v1548
    %v2001 = vpack.c.b16 %v1557, %v1553
    %v2002 = vpack.c.b16 %v1558, %v1554
    %v2003 = vpack.c.b16 %v1559, %v1555
    %v2004 = vpack.c.b16 %v1560, %v1556
    %v2005 = vpack.c.b16 %v1565, %v1561
    %v2006 = vpack.c.b16 %v1566, %v1562
    %v2007 = vpack.c.b16 %v1567, %v1563
    %v2008 = vpack.c.b16 %v1568, %v1564
    %v2009 = vpack.c.b16 %v1573, %v1569
    %v2010 = vpack.c.b16 %v1574, %v1570
    %v2011 = vpack.c.b16 %v1575, %v1571
    %v2012 = vpack.c.b16 %v1576, %v1572
    %v2013 = vpack.c.b16 %v1581, %v1577
    %v2014 = vpack.c.b16 %v1582, %v1578
    %v2015 = vpack.c.b16 %v1583, %v1579
    %v2016 = vpack.c.b16 %v1584, %v1580
    %v2017 = vpack.c.b16 %v1589, %v1585
    %v2018 = vpack.c.b16 %v1590, %v1586
    %v2019 = vpack.c.b16 %v1591, %v1587
    %v2020 = vpack.c.b16 %v1592, %v1588
    %v2021 = vpack.c.b16 %v1597, %v1593
    %v2022 = vpack.c.b16 %v1598, %v1594
    %v2023 = vpack.c.b16 %v1599, %v1595
    %v2024 = vpack.c.b16 %v1600, %v1596
    %v2025 = vpack.c.b16 %v1605, %v1601
    %v2026 = vpack.c.b16 %v1606, %v1602
    %v2027 = vpack.c.b16 %v1607, %v1603
    %v2028 = vpack.c.b16 %v1608, %v1604
    %v2029 = vpack.c.b16 %v1613, %v1609
    %v2030 = vpack.c.b16 %v1614, %v1610
    %v2031 = vpack.c.b16 %v1615, %v1611
    %v2032 = vpack.c.b16 %v1616, %v1612
    %v2033 = vpack.c.b16 %v1621, %v1617
    %v2034 = vpack.c.b16 %v1622, %v1618
    %v2035 = vpack.c.b16 %v1623, %v1619
    %v2036 = vpack.c.b16 %v1624, %v1620
    %v2037 = vpack.c.b16 %v1629, %v1625
    %v2038 = vpack.c.b16 %v1630, %v1626
    %v2039 = vpack.c.b16 %v1631, %v1627
    %v2040 = vpack.c.b16 %v1632, %v1628
    %v2041 = vpack.c.b16 %v1637, %v1633
    %v2042 = vpack.c.b16 %v1638, %v1634
    %v2043 = vpack.c.b16 %v1639, %v1635
    %v2044 = vpack.c.b16 %v1640, %v1636
    %v2045 = vpack.c.b16 %v1645, %v1641
    %v2046 = vpack.c.b16 %v1646, %v1642
    %v2047 = vpack.c.b16 %v1647, %v1643
    %v2048 = vpack.c.b16 %v1648, %v1644
    %v2049 = vpack.c.b16 %v1653, %v1649
    %v2050 = vpack.c.b16 %v1654, %v1650
    %v2051 = vpack.c.b16 %v1655, %v1651
    %v2052 = vpack.c.b16 %v1656, %v1652
    %v2053 = vpack.c.b16 %v1661, %v1657
    %v2054 = vpack.c.b16 %v1662, %v1658
    %v2055 = vpack.c.b16 %v1663, %v1659
    %v2056 = vpack.c.b16 %v1664, %v1660
    %v2057 = vpack.c.b16 %v1669, %v1665
    %v2058 = vpack.c.b16 %v1670, %v1666
    %v2059 = vpack.c.b16 %v1671, %v1667
    %v2060 = vpack.c.b16 %v1672, %v1668
    %v2061 = vpack.c.b16 %v1677, %v1673
    %v2062 = vpack.c.b16 %v1678, %v1674
    %v2063 = vpack.c.b16 %v1679, %v1675
    %v2064 = vpack.c.b16 %v1680, %v1676
    %v2065 = vpack.c.b16 %v1685, %v1681
    %v2066 = vpack.c.b16 %v1686, %v1682
    %v2067 = vpack.c.b16 %v1687, %v1683
    %v2068 = vpack.c.b16 %v1688, %v1684
    %v2069 = vpack.c.b16 %v1693, %v1689
    %v2070 = vpack.c.b16 %v1694, %v1690
    %v2071 = vpack.c.b16 %v1695, %v1691
    %v2072 = vpack.c.b16 %v1696, %v1692
    %v2073 = vpack.c.b16 %v1701, %v1697
    %v2074 = vpack.c.b16 %v1702, %v1698
    %v2075 = vpack.c.b16 %v1703, %v1699
    %v2076 = vpack.c.b16 %v1704, %v1700
    %v2077 = vpack.c.b16 %v1709, %v1705
    %v2078 = vpack.c.b16 %v1710, %v1706
    %v2079 = vpack.c.b16 %v1711, %v1707
    %v2080 = vpack.c.b16 %v1712, %v1708
    %v2081 = vpack.c.b16 %v1717, %v1713
    %v2082 = vpack.c.b16 %v1718, %v1714
    %v2083 = vpack.c.b16 %v1719, %v1715
    %v2084 = vpack.c.b16 %v1720, %v1716
    %v2085 = vpack.c.b16 %v1725, %v1721
    %v2086 = vpack.c.b16 %v1726, %v1722
    %v2087 = vpack.c.b16 %v1727, %v1723
    %v2088 = vpack.c.b16 %v1728, %v1724
    %v2089 = vpack.c.b16 %v1733, %v1729
    %v2090 = vpack.c.b16 %v1734, %v1730
    %v2091 = vpack.c.b16 %v1735, %v1731
    %v2092 = vpack.c.b16 %v1736, %v1732
    %v2093 = vpack.c.b16 %v1741, %v1737
    %v2094 = vpack.c.b16 %v1742, %v1738
    %v2095 = vpack.c.b16 %v1743, %v1739
    %v2096 = vpack.c.b16 %v1744, %v1740
    %v2097 = vpack.c.b16 %v1749, %v1745
    %v2098 = vpack.c.b16 %v1750, %v1746
    %v2099 = vpack.c.b16 %v1751, %v1747
    %v2100 = vpack.c.b16 %v1752, %v1748
    %v2101 = vpack.c.b16 %v1757, %v1753
    %v2102 = vpack.c.b16 %v1758, %v1754
    %v2103 = vpack.c.b16 %v1759, %v1755
    %v2104 = vpack.c.b16 %v1760, %v1756
    %v2105 = vpack.c.b16 %v1765, %v1761
    %v2106 = vpack.c.b16 %v1766, %v1762
    %v2107 = vpack.c.b16 %v1767, %v1763
    %v2108 = vpack.c.b16 %v1768, %v1764
    %v2109 = vpack.c.b16 %v1773, %v1769
    %v2110 = vpack.c.b16 %v1774, %v1770
    %v2111 = vpack.c.b16 %v1775, %v1771
    %v2112 = vpack.c.b16 %v1776, %v1772
    %v2113 = vpack.c.b16 %v1781, %v1777
    %v2114 = vpack.c.b16 %v1782, %v1778
    %v2115 = vpack.c.b16 %v1783, %v1779
    %v2116 = vpack.c.b16 %v1784, %v1780
    %v2117 = vpack.c.b16 %v1789, %v1785
    %v2118 = vpack.c.b16 %v1790, %v1786
    %v2119 = vpack.c.b16 %v1791, %v1787
    %v2120 = vpack.c.b16 %v1792, %v1788
    %v2121 = vpack.c.b16 %v1797, %v1793
    %v2122 = vpack.c.b16 %v1798, %v1794
    %v2123 = vpack.c.b16 %v1799, %v1795
    %v2124 = vpack.c.b16 %v1800, %v1796
    %v2125 = vpack.c.b16 %v1805, %v1801
    %v2126 = vpack.c.b16 %v1806, %v1802
    %v2127 = vpack.c.b16 %v1807, %v1803
    %v2128 = vpack.c.b16 %v1808, %v1804
    %v2129 = vpack.c.b16 %v1813, %v1809
    %v2130 = vpack.c.b16 %v1814, %v1810
    %v2131 = vpack.c.b16 %v1815, %v1811
    %v2132 = vpack.c.b16 %v1816, %v1812
    %v2133 = vpack.c.b16 %v1821, %v1817
    %v2134 = vpack.c.b16 %v1822, %v1818
    %v2135 = vpack.c.b16 %v1823, %v1819
    %v2136 = vpack.c.b16 %v1824, %v1820
    %v2137 = vpack.c.b16 %v1829, %v1825
    %v2138 = vpack.c.b16 %v1830, %v1826
    %v2139 = vpack.c.b16 %v1831, %v1827
    %v2140 = vpack.c.b16 %v1832, %v1828
    %v2141 = vpack.c.b16 %v1837, %v1833
    %v2142 = vpack.c.b16 %v1838, %v1834
    %v2143 = vpack.c.b16 %v1839, %v1835
    %v2144 = vpack.c.b16 %v1840, %v1836
    %v2145 = vpack.c.b16 %v1845, %v1841
    %v2146 = vpack.c.b16 %v1846, %v1842
    %v2147 = vpack.c.b16 %v1847, %v1843
    %v2148 = vpack.c.b16 %v1848, %v1844
    %v2149 = vpack.c.b16 %v1853, %v1849
    %v2150 = vpack.c.b16 %v1854, %v1850
    %v2151 = vpack.c.b16 %v1855, %v1851
    %v2152 = vpack.c.b16 %v1856, %v1852
    %v2153 = vpack.c.b16 %v1861, %v1857
    %v2154 = vpack.c.b16 %v1862, %v1858
    %v2155 = vpack.c.b16 %v1863, %v1859
    %v2156 = vpack.c.b16 %v1864, %v1860
    %v2157 = vpack.c.b16 %v1869, %v1865
    %v2158 = vpack.c.b16 %v1870, %v1866
    %v2159 = vpack.c.b16 %v1871, %v1867
    %v2160 = vpack.c.b16 %v1872, %v1868
    %v2161 = vpack.c.b16 %v1877, %v1873
    %v2162 = vpack.c.b16 %v1878, %v1874
    %v2163 = vpack.c.b16 %v1879, %v1875
    %v2164 = vpack.c.b16 %v1880, %v1876
    %v2165 = vpack.c.b16 %v1885, %v1881
    %v2166 = vpack.c.b16 %v1886, %v1882
    %v2167 = vpack.c.b16 %v1887, %v1883
    %v2168 = vpack.c.b16 %v1888, %v1884
    %v2169 = vpack.c.b16 %v1893, %v1889
    %v2170 = vpack.c.b16 %v1894, %v1890
    %v2171 = vpack.c.b16 %v1895, %v1891
    %v2172 = vpack.c.b16 %v1896, %v1892
    %v2173 = vpack.c.b16 %v1901, %v1897
    %v2174 = vpack.c.b16 %v1902, %v1898
    %v2175 = vpack.c.b16 %v1903, %v1899
    %v2176 = vpack.c.b16 %v1904, %v1900
    %v2177 = vpack.c.b16 %v1909, %v1905
    %v2178 = vpack.c.b16 %v1910, %v1906
    %v2179 = vpack.c.b16 %v1911, %v1907
    %v2180 = vpack.c.b16 %v1912, %v1908
    %v2181 = vpack.c.b16 %v1917, %v1913
    %v2182 = vpack.c.b16 %v1918, %v1914
    %v2183 = vpack.c.b16 %v1919, %v1915
    %v2184 = vpack.c.b16 %v1920, %v1916
    %v2185 = vpack.c.b16 %v1925, %v1921
    %v2186 = vpack.c.b16 %v1926, %v1922
    %v2187 = vpack.c.b16 %v1927, %v1923
    %v2188 = vpack.c.b16 %v1928, %v1924
    %v2189 = vpack.c.b16 %v1933, %v1929
    %v2190 = vpack.c.b16 %v1934, %v1930
    %v2191 = vpack.c.b16 %v1935, %v1931
    %v2192 = vpack.c.b16 %v1936, %v1932
    %2449 = vmatprep.subr.bf16.mxu0 %v1938
    %2450 = vmatpush1.bf16.msra.mxu0 %v1937
    %2451 = vmatprep.subr.bf16.mxu0 %v1942
    %2452 = vmatpush1.bf16.msra.mxu0 %v1941
    %2453 = vmatprep.subr.bf16.mxu0 %v1946
    %2454 = vmatpush1.bf16.msra.mxu0 %v1945
    %2455 = vmatprep.subr.bf16.mxu0 %v1950
    %2456 = vmatpush1.bf16.msra.mxu0 %v1949
    %2457 = vmatprep.subr.bf16.mxu0 %v1954
    %2458 = vmatpush1.bf16.msra.mxu0 %v1953
    %2459 = vmatprep.subr.bf16.mxu0 %v1958
    %2460 = vmatpush1.bf16.msra.mxu0 %v1957
    %2461 = vmatprep.subr.bf16.mxu0 %v1962
    %2462 = vmatpush1.bf16.msra.mxu0 %v1961
    %2463 = vmatprep.subr.bf16.mxu0 %v1966
    %2464 = vmatpush1.bf16.msra.mxu0 %v1965
    %2465 = vmatprep.subr.bf16.mxu0 %v1970
    %2466 = vmatpush1.bf16.msra.mxu0 %v1969
    %2467 = vmatprep.subr.bf16.mxu0 %v1974
    %2468 = vmatpush1.bf16.msra.mxu0 %v1973
    %2469 = vmatprep.subr.bf16.mxu0 %v1978
    %2470 = vmatpush1.bf16.msra.mxu0 %v1977
    %2471 = vmatprep.subr.bf16.mxu0 %v1982
    %2472 = vmatpush1.bf16.msra.mxu0 %v1981
    %2473 = vmatprep.subr.bf16.mxu0 %v1986
    %2474 = vmatpush1.bf16.msra.mxu0 %v1985
    %2475 = vmatprep.subr.bf16.mxu0 %v1990
    %2476 = vmatpush1.bf16.msra.mxu0 %v1989
    %2477 = vmatprep.subr.bf16.mxu0 %v1994
    %2478 = vmatpush1.bf16.msra.mxu0 %v1993
    %2479 = vmatprep.subr.bf16.mxu0 %v1998
    %2480 = vmatpush1.bf16.msra.mxu0 %v1997
    %2481 = vmatprep.mubr.bf16.mxu0 %v884
    %2482 = vmatmul.mubr.bf16.gmra.mrb[0].mxu0 %v883
    %v2483 = vpop.f32.mrb[0].mxu0
    %v2484 = vadd.f32 %v1152, %v2483
    %v2485 = vpop.f32.mrb[0].mxu0
    %v2486 = vadd.f32 %v1156, %v2485
    %v2487 = vpop.f32.mrb[0].mxu0
    %v2488 = vpop.f32.mrb[0].mxu0
    %2489 = vdwg.mxu0
    %2490 = vmatprep.subr.bf16.mxu0 %v2002
    %2491 = vmatpush1.bf16.msra.mxu0 %v2001
    %2492 = vmatprep.subr.bf16.mxu0 %v2006
    %2493 = vmatpush1.bf16.msra.mxu0 %v2005
    %2494 = vmatprep.subr.bf16.mxu0 %v2010
    %2495 = vmatpush1.bf16.msra.mxu0 %v2009
    %2496 = vmatprep.subr.bf16.mxu0 %v2014
    %2497 = vmatpush1.bf16.msra.mxu0 %v2013
    %2498 = vmatprep.subr.bf16.mxu0 %v2018
    %2499 = vmatpush1.bf16.msra.mxu0 %v2017
    %2500 = vmatprep.subr.bf16.mxu0 %v2022
    %2501 = vmatpush1.bf16.msra.mxu0 %v2021
    %2502 = vmatprep.subr.bf16.mxu0 %v2026
    %2503 = vmatpush1.bf16.msra.mxu0 %v2025
    %2504 = vmatprep.subr.bf16.mxu0 %v2030
    %2505 = vmatpush1.bf16.msra.mxu0 %v2029
    %2506 = vmatprep.subr.bf16.mxu0 %v2034
    %2507 = vmatpush1.bf16.msra.mxu0 %v2033
    %2508 = vmatprep.subr.bf16.mxu0 %v2038
    %2509 = vmatpush1.bf16.msra.mxu0 %v2037
    %2510 = vmatprep.subr.bf16.mxu0 %v2042
    %2511 = vmatpush1.bf16.msra.mxu0 %v2041
    %2512 = vmatprep.subr.bf16.mxu0 %v2046
    %2513 = vmatpush1.bf16.msra.mxu0 %v2045
    %2514 = vmatprep.subr.bf16.mxu0 %v2050
    %2515 = vmatpush1.bf16.msra.mxu0 %v2049
    %2516 = vmatprep.subr.bf16.mxu0 %v2054
    %2517 = vmatpush1.bf16.msra.mxu0 %v2053
    %2518 = vmatprep.subr.bf16.mxu0 %v2058
    %2519 = vmatpush1.bf16.msra.mxu0 %v2057
    %2520 = vmatprep.subr.bf16.mxu0 %v2062
    %2521 = vmatpush1.bf16.msra.mxu0 %v2061
    %2522 = vmatprep.mubr.bf16.mxu0 %v886
    %2523 = vmatmul.mubr.bf16.gmra.mrb[0].mxu0 %v885
    %v2524 = vpop.f32.mrb[0].mxu0
    %v2525 = vadd.f32 %v2484, %v2524
    %v2526 = vpop.f32.mrb[0].mxu0
    %v2527 = vadd.f32 %v2486, %v2526
    %v2528 = vpop.f32.mrb[0].mxu0
    %v2529 = vpop.f32.mrb[0].mxu0
    %2530 = vdwg.mxu0
    %2531 = vmatprep.subr.bf16.mxu0 %v2066
    %2532 = vmatpush1.bf16.msra.mxu0 %v2065
    %2533 = vmatprep.subr.bf16.mxu0 %v2070
    %2534 = vmatpush1.bf16.msra.mxu0 %v2069
    %2535 = vmatprep.subr.bf16.mxu0 %v2074
    %2536 = vmatpush1.bf16.msra.mxu0 %v2073
    %2537 = vmatprep.subr.bf16.mxu0 %v2078
    %2538 = vmatpush1.bf16.msra.mxu0 %v2077
    %2539 = vmatprep.subr.bf16.mxu0 %v2082
    %2540 = vmatpush1.bf16.msra.mxu0 %v2081
    %2541 = vmatprep.subr.bf16.mxu0 %v2086
    %2542 = vmatpush1.bf16.msra.mxu0 %v2085
    %2543 = vmatprep.subr.bf16.mxu0 %v2090
    %2544 = vmatpush1.bf16.msra.mxu0 %v2089
    %2545 = vmatprep.subr.bf16.mxu0 %v2094
    %2546 = vmatpush1.bf16.msra.mxu0 %v2093
    %2547 = vmatprep.subr.bf16.mxu0 %v2098
    %2548 = vmatpush1.bf16.msra.mxu0 %v2097
    %2549 = vmatprep.subr.bf16.mxu0 %v2102
    %2550 = vmatpush1.bf16.msra.mxu0 %v2101
    %2551 = vmatprep.subr.bf16.mxu0 %v2106
    %2552 = vmatpush1.bf16.msra.mxu0 %v2105
    %2553 = vmatprep.subr.bf16.mxu0 %v2110
    %2554 = vmatpush1.bf16.msra.mxu0 %v2109
    %2555 = vmatprep.subr.bf16.mxu0 %v2114
    %2556 = vmatpush1.bf16.msra.mxu0 %v2113
    %2557 = vmatprep.subr.bf16.mxu0 %v2118
    %2558 = vmatpush1.bf16.msra.mxu0 %v2117
    %2559 = vmatprep.subr.bf16.mxu0 %v2122
    %2560 = vmatpush1.bf16.msra.mxu0 %v2121
    %2561 = vmatprep.subr.bf16.mxu0 %v2126
    %2562 = vmatpush1.bf16.msra.mxu0 %v2125
    %2563 = vmatprep.mubr.bf16.mxu0 %v888
    %2564 = vmatmul.mubr.bf16.gmra.mrb[0].mxu0 %v887
    %v2565 = vpop.f32.mrb[0].mxu0
    %v2566 = vadd.f32 %v2525, %v2565
    %v2567 = vpop.f32.mrb[0].mxu0
    %v2568 = vadd.f32 %v2527, %v2567
    %v2569 = vpop.f32.mrb[0].mxu0
    %v2570 = vpop.f32.mrb[0].mxu0
    %2571 = vdwg.mxu0
    %2572 = vmatprep.subr.bf16.mxu0 %v2130
    %2573 = vmatpush1.bf16.msra.mxu0 %v2129
    %2574 = vmatprep.subr.bf16.mxu0 %v2134
    %2575 = vmatpush1.bf16.msra.mxu0 %v2133
    %2576 = vmatprep.subr.bf16.mxu0 %v2138
    %2577 = vmatpush1.bf16.msra.mxu0 %v2137
    %2578 = vmatprep.subr.bf16.mxu0 %v2142
    %2579 = vmatpush1.bf16.msra.mxu0 %v2141
    %2580 = vmatprep.subr.bf16.mxu0 %v2146
    %2581 = vmatpush1.bf16.msra.mxu0 %v2145
    %2582 = vmatprep.subr.bf16.mxu0 %v2150
    %2583 = vmatpush1.bf16.msra.mxu0 %v2149
    %2584 = vmatprep.subr.bf16.mxu0 %v2154
    %2585 = vmatpush1.bf16.msra.mxu0 %v2153
    %2586 = vmatprep.subr.bf16.mxu0 %v2158
    %2587 = vmatpush1.bf16.msra.mxu0 %v2157
    %2588 = vmatprep.subr.bf16.mxu0 %v2162
    %2589 = vmatpush1.bf16.msra.mxu0 %v2161
    %2590 = vmatprep.subr.bf16.mxu0 %v2166
    %2591 = vmatpush1.bf16.msra.mxu0 %v2165
    %2592 = vmatprep.subr.bf16.mxu0 %v2170
    %2593 = vmatpush1.bf16.msra.mxu0 %v2169
    %2594 = vmatprep.subr.bf16.mxu0 %v2174
    %2595 = vmatpush1.bf16.msra.mxu0 %v2173
    %2596 = vmatprep.subr.bf16.mxu0 %v2178
    %2597 = vmatpush1.bf16.msra.mxu0 %v2177
    %2598 = vmatprep.subr.bf16.mxu0 %v2182
    %2599 = vmatpush1.bf16.msra.mxu0 %v2181
    %2600 = vmatprep.subr.bf16.mxu0 %v2186
    %2601 = vmatpush1.bf16.msra.mxu0 %v2185
    %2602 = vmatprep.subr.bf16.mxu0 %v2190
    %2603 = vmatpush1.bf16.msra.mxu0 %v2189
    %2604 = vmatprep.mubr.bf16.mxu0 %v890
    %2605 = vmatmul.mubr.bf16.gmra.mrb[0].mxu0 %v889
    %v2606 = vpop.f32.mrb[0].mxu0
    %v2607 = vadd.f32 %v2566, %v2606
    %v2608 = vpop.f32.mrb[0].mxu0
    %v2609 = vadd.f32 %v2568, %v2608
    %v2610 = vpop.f32.mrb[0].mxu0
    %v2611 = vpop.f32.mrb[0].mxu0
    %2612 = vdwg.mxu0
    %2613 = vmatprep.subr.bf16.mxu0 %v1940
    %2614 = vmatpush1.bf16.msra.mxu0 %v1939
    %2615 = vmatprep.subr.bf16.mxu0 %v1944
    %2616 = vmatpush1.bf16.msra.mxu0 %v1943
    %2617 = vmatprep.subr.bf16.mxu0 %v1948
    %2618 = vmatpush1.bf16.msra.mxu0 %v1947
    %2619 = vmatprep.subr.bf16.mxu0 %v1952
    %2620 = vmatpush1.bf16.msra.mxu0 %v1951
    %2621 = vmatprep.subr.bf16.mxu0 %v1956
    %2622 = vmatpush1.bf16.msra.mxu0 %v1955
    %2623 = vmatprep.subr.bf16.mxu0 %v1960
    %2624 = vmatpush1.bf16.msra.mxu0 %v1959
    %2625 = vmatprep.subr.bf16.mxu0 %v1964
    %2626 = vmatpush1.bf16.msra.mxu0 %v1963
    %2627 = vmatprep.subr.bf16.mxu0 %v1968
    %2628 = vmatpush1.bf16.msra.mxu0 %v1967
    %2629 = vmatprep.subr.bf16.mxu0 %v1972
    %2630 = vmatpush1.bf16.msra.mxu0 %v1971
    %2631 = vmatprep.subr.bf16.mxu0 %v1976
    %2632 = vmatpush1.bf16.msra.mxu0 %v1975
    %2633 = vmatprep.subr.bf16.mxu0 %v1980
    %2634 = vmatpush1.bf16.msra.mxu0 %v1979
    %2635 = vmatprep.subr.bf16.mxu0 %v1984
    %2636 = vmatpush1.bf16.msra.mxu0 %v1983
    %2637 = vmatprep.subr.bf16.mxu0 %v1988
    %2638 = vmatpush1.bf16.msra.mxu0 %v1987
    %2639 = vmatprep.subr.bf16.mxu0 %v1992
    %2640 = vmatpush1.bf16.msra.mxu0 %v1991
    %2641 = vmatprep.subr.bf16.mxu0 %v1996
    %2642 = vmatpush1.bf16.msra.mxu0 %v1995
    %2643 = vmatprep.subr.bf16.mxu0 %v2000
    %2644 = vmatpush1.bf16.msra.mxu0 %v1999
    %2645 = vmatprep.mubr.bf16.mxu0 %v884
    %2646 = vmatmul.mubr.bf16.gmra.mrb[0].mxu0 %v883
    %v2647 = vpop.f32.mrb[0].mxu0
    %v2648 = vadd.f32 %v1160, %v2647
    %v2649 = vpop.f32.mrb[0].mxu0
    %v2650 = vadd.f32 %v1164, %v2649
    %v2651 = vpop.f32.mrb[0].mxu0
    %v2652 = vpop.f32.mrb[0].mxu0
    %2653 = vdwg.mxu0
    %2654 = vmatprep.subr.bf16.mxu0 %v2004
    %2655 = vmatpush1.bf16.msra.mxu0 %v2003
    %2656 = vmatprep.subr.bf16.mxu0 %v2008
    %2657 = vmatpush1.bf16.msra.mxu0 %v2007
    %2658 = vmatprep.subr.bf16.mxu0 %v2012
    %2659 = vmatpush1.bf16.msra.mxu0 %v2011
    %2660 = vmatprep.subr.bf16.mxu0 %v2016
    %2661 = vmatpush1.bf16.msra.mxu0 %v2015
    %2662 = vmatprep.subr.bf16.mxu0 %v2020
    %2663 = vmatpush1.bf16.msra.mxu0 %v2019
    %2664 = vmatprep.subr.bf16.mxu0 %v2024
    %2665 = vmatpush1.bf16.msra.mxu0 %v2023
    %2666 = vmatprep.subr.bf16.mxu0 %v2028
    %2667 = vmatpush1.bf16.msra.mxu0 %v2027
    %2668 = vmatprep.subr.bf16.mxu0 %v2032
    %2669 = vmatpush1.bf16.msra.mxu0 %v2031
    %2670 = vmatprep.subr.bf16.mxu0 %v2036
    %2671 = vmatpush1.bf16.msra.mxu0 %v2035
    %2672 = vmatprep.subr.bf16.mxu0 %v2040
    %2673 = vmatpush1.bf16.msra.mxu0 %v2039
    %2674 = vmatprep.subr.bf16.mxu0 %v2044
    %2675 = vmatpush1.bf16.msra.mxu0 %v2043
    %2676 = vmatprep.subr.bf16.mxu0 %v2048
    %2677 = vmatpush1.bf16.msra.mxu0 %v2047
    %2678 = vmatprep.subr.bf16.mxu0 %v2052
    %2679 = vmatpush1.bf16.msra.mxu0 %v2051
    %2680 = vmatprep.subr.bf16.mxu0 %v2056
    %2681 = vmatpush1.bf16.msra.mxu0 %v2055
    %2682 = vmatprep.subr.bf16.mxu0 %v2060
    %2683 = vmatpush1.bf16.msra.mxu0 %v2059
    %2684 = vmatprep.subr.bf16.mxu0 %v2064
    %2685 = vmatpush1.bf16.msra.mxu0 %v2063
    %2686 = vmatprep.mubr.bf16.mxu0 %v886
    %2687 = vmatmul.mubr.bf16.gmra.mrb[0].mxu0 %v885
    %v2688 = vpop.f32.mrb[0].mxu0
    %v2689 = vadd.f32 %v2648, %v2688
    %v2690 = vpop.f32.mrb[0].mxu0
    %v2691 = vadd.f32 %v2650, %v2690
    %v2692 = vpop.f32.mrb[0].mxu0
    %v2693 = vpop.f32.mrb[0].mxu0
    %2694 = vdwg.mxu0
    %2695 = vmatprep.subr.bf16.mxu0 %v2068
    %2696 = vmatpush1.bf16.msra.mxu0 %v2067
    %2697 = vmatprep.subr.bf16.mxu0 %v2072
    %2698 = vmatpush1.bf16.msra.mxu0 %v2071
    %2699 = vmatprep.subr.bf16.mxu0 %v2076
    %2700 = vmatpush1.bf16.msra.mxu0 %v2075
    %2701 = vmatprep.subr.bf16.mxu0 %v2080
    %2702 = vmatpush1.bf16.msra.mxu0 %v2079
    %2703 = vmatprep.subr.bf16.mxu0 %v2084
    %2704 = vmatpush1.bf16.msra.mxu0 %v2083
    %2705 = vmatprep.subr.bf16.mxu0 %v2088
    %2706 = vmatpush1.bf16.msra.mxu0 %v2087
    %2707 = vmatprep.subr.bf16.mxu0 %v2092
    %2708 = vmatpush1.bf16.msra.mxu0 %v2091
    %2709 = vmatprep.subr.bf16.mxu0 %v2096
    %2710 = vmatpush1.bf16.msra.mxu0 %v2095
    %2711 = vmatprep.subr.bf16.mxu0 %v2100
    %2712 = vmatpush1.bf16.msra.mxu0 %v2099
    %2713 = vmatprep.subr.bf16.mxu0 %v2104
    %2714 = vmatpush1.bf16.msra.mxu0 %v2103
    %2715 = vmatprep.subr.bf16.mxu0 %v2108
    %2716 = vmatpush1.bf16.msra.mxu0 %v2107
    %2717 = vmatprep.subr.bf16.mxu0 %v2112
    %2718 = vmatpush1.bf16.msra.mxu0 %v2111
    %2719 = vmatprep.subr.bf16.mxu0 %v2116
    %2720 = vmatpush1.bf16.msra.mxu0 %v2115
    %2721 = vmatprep.subr.bf16.mxu0 %v2120
    %2722 = vmatpush1.bf16.msra.mxu0 %v2119
    %2723 = vmatprep.subr.bf16.mxu0 %v2124
    %2724 = vmatpush1.bf16.msra.mxu0 %v2123
    %2725 = vmatprep.subr.bf16.mxu0 %v2128
    %2726 = vmatpush1.bf16.msra.mxu0 %v2127
    %2727 = vmatprep.mubr.bf16.mxu0 %v888
    %2728 = vmatmul.mubr.bf16.gmra.mrb[0].mxu0 %v887
    %v2729 = vpop.f32.mrb[0].mxu0
    %v2730 = vadd.f32 %v2689, %v2729
    %v2731 = vpop.f32.mrb[0].mxu0
    %v2732 = vadd.f32 %v2691, %v2731
    %v2733 = vpop.f32.mrb[0].mxu0
    %v2734 = vpop.f32.mrb[0].mxu0
    %2735 = vdwg.mxu0
    %2736 = vmatprep.subr.bf16.mxu0 %v2132
    %2737 = vmatpush1.bf16.msra.mxu0 %v2131
    %2738 = vmatprep.subr.bf16.mxu0 %v2136
    %2739 = vmatpush1.bf16.msra.mxu0 %v2135
    %2740 = vmatprep.subr.bf16.mxu0 %v2140
    %2741 = vmatpush1.bf16.msra.mxu0 %v2139
    %2742 = vmatprep.subr.bf16.mxu0 %v2144
    %2743 = vmatpush1.bf16.msra.mxu0 %v2143
    %2744 = vmatprep.subr.bf16.mxu0 %v2148
    %2745 = vmatpush1.bf16.msra.mxu0 %v2147
    %2746 = vmatprep.subr.bf16.mxu0 %v2152
    %2747 = vmatpush1.bf16.msra.mxu0 %v2151
    %2748 = vmatprep.subr.bf16.mxu0 %v2156
    %2749 = vmatpush1.bf16.msra.mxu0 %v2155
    %2750 = vmatprep.subr.bf16.mxu0 %v2160
    %2751 = vmatpush1.bf16.msra.mxu0 %v2159
    %2752 = vmatprep.subr.bf16.mxu0 %v2164
    %2753 = vmatpush1.bf16.msra.mxu0 %v2163
    %2754 = vmatprep.subr.bf16.mxu0 %v2168
    %2755 = vmatpush1.bf16.msra.mxu0 %v2167
    %2756 = vmatprep.subr.bf16.mxu0 %v2172
    %2757 = vmatpush1.bf16.msra.mxu0 %v2171
    %2758 = vmatprep.subr.bf16.mxu0 %v2176
    %2759 = vmatpush1.bf16.msra.mxu0 %v2175
    %2760 = vmatprep.subr.bf16.mxu0 %v2180
    %2761 = vmatpush1.bf16.msra.mxu0 %v2179
    %2762 = vmatprep.subr.bf16.mxu0 %v2184
    %2763 = vmatpush1.bf16.msra.mxu0 %v2183
    %2764 = vmatprep.subr.bf16.mxu0 %v2188
    %2765 = vmatpush1.bf16.msra.mxu0 %v2187
    %2766 = vmatprep.subr.bf16.mxu0 %v2192
    %2767 = vmatpush1.bf16.msra.mxu0 %v2191
    %2768 = vmatprep.mubr.bf16.mxu0 %v890
    %2769 = vmatmul.mubr.bf16.gmra.mrb[0].mxu0 %v889
    %v2770 = vpop.f32.mrb[0].mxu0
    %v2771 = vadd.f32 %v2730, %v2770
    %v2772 = vpop.f32.mrb[0].mxu0
    %v2773 = vadd.f32 %v2732, %v2772
    %v2774 = vpop.f32.mrb[0].mxu0
    %v2775 = vpop.f32.mrb[0].mxu0
    %2776 = vdwg.mxu0
    %vm2777 = vcmp.gt.f32.partialorder %v2607, 0.0
    %vm2778 = vcmp.gt.f32.partialorder %v2609, 0.0
    %vm2779 = vcmp.gt.f32.partialorder %v2771, 0.0
    %vm2780 = vcmp.gt.f32.partialorder %v2773, 0.0
    %v2781 = vmul.f32 %v2607, 0.01
    %v2782 = vmul.f32 %v2609, 0.01
    %v2783 = vmul.f32 %v2771, 0.01
    %v2784 = vmul.f32 %v2773, 0.01
    %v2785 = vsel %vm2777, %v2607, %v2781
    %v2786 = vsel %vm2778, %v2609, %v2782
    %v2787 = vsel %vm2779, %v2771, %v2783
    %v2788 = vsel %vm2780, %v2773, %v2784
    %v2789 = vpack.c.bf16 %v2785, %v2785
    %v2790 = vpack.c.bf16 %v2786, %v2786
    %v2791 = vpack.c.bf16 %v2787, %v2787
    %v2792 = vpack.c.bf16 %v2788, %v2788
    %v2793 = vld [vmem:[#allocation8] sm:$0xff]
    %v2794 = vld [vmem:[#allocation8 + $0x8] sm:$0xff]
    %v2795 = vld [vmem:[#allocation8 + $0x10] sm:$0xff]
    %v2796 = vld [vmem:[#allocation8 + $0x18] sm:$0xff]
    %v2797 = vld [vmem:[#allocation8 + $0x20] sm:$0xff]
    %v2798 = vld [vmem:[#allocation8 + $0x28] sm:$0xff]
    %v2799 = vld [vmem:[#allocation8 + $0x30] sm:$0xff]
    %v2800 = vld [vmem:[#allocation8 + $0x38] sm:$0xff]
    %v2801 = vld [vmem:[#allocation8 + $0x40] sm:$0xff]
    %v2802 = vld [vmem:[#allocation8 + $0x48] sm:$0xff]
    %v2803 = vld [vmem:[#allocation8 + $0x50] sm:$0xff]
    %v2804 = vld [vmem:[#allocation8 + $0x58] sm:$0xff]
    %v2805 = vld [vmem:[#allocation8 + $0x60] sm:$0xff]
    %v2806 = vld [vmem:[#allocation8 + $0x68] sm:$0xff]
    %v2807 = vld [vmem:[#allocation8 + $0x70] sm:$0xff]
    %v2808 = vld [vmem:[#allocation8 + $0x78] sm:$0xff]
    %v2809 = vld [vmem:[#allocation8 + $0x80] sm:$0xff]
    %v2810 = vld [vmem:[#allocation8 + $0x88] sm:$0xff]
    %v2811 = vld [vmem:[#allocation8 + $0x90] sm:$0xff]
    %v2812 = vld [vmem:[#allocation8 + $0x98] sm:$0xff]
    %v2813 = vld [vmem:[#allocation8 + $0xa0] sm:$0xff]
    %v2814 = vld [vmem:[#allocation8 + $0xa8] sm:$0xff]
    %v2815 = vld [vmem:[#allocation8 + $0xb0] sm:$0xff]
    %v2816 = vld [vmem:[#allocation8 + $0xb8] sm:$0xff]
    %v2817 = vld [vmem:[#allocation8 + $0xc0] sm:$0xff]
    %v2818 = vld [vmem:[#allocation8 + $0xc8] sm:$0xff]
    %v2819 = vld [vmem:[#allocation8 + $0xd0] sm:$0xff]
    %v2820 = vld [vmem:[#allocation8 + $0xd8] sm:$0xff]
    %v2821 = vld [vmem:[#allocation8 + $0xe0] sm:$0xff]
    %v2822 = vld [vmem:[#allocation8 + $0xe8] sm:$0xff]
    %v2823 = vld [vmem:[#allocation8 + $0xf0] sm:$0xff]
    %v2824 = vld [vmem:[#allocation8 + $0xf8] sm:$0xff]
    %v2825 = vld [vmem:[#allocation8 + $0x100] sm:$0xff]
    %v2826 = vld [vmem:[#allocation8 + $0x108] sm:$0xff]
    %v2827 = vld [vmem:[#allocation8 + $0x110] sm:$0xff]
    %v2828 = vld [vmem:[#allocation8 + $0x118] sm:$0xff]
    %v2829 = vld [vmem:[#allocation8 + $0x120] sm:$0xff]
    %v2830 = vld [vmem:[#allocation8 + $0x128] sm:$0xff]
    %v2831 = vld [vmem:[#allocation8 + $0x130] sm:$0xff]
    %v2832 = vld [vmem:[#allocation8 + $0x138] sm:$0xff]
    %v2833 = vld [vmem:[#allocation8 + $0x140] sm:$0xff]
    %v2834 = vld [vmem:[#allocation8 + $0x148] sm:$0xff]
    %v2835 = vld [vmem:[#allocation8 + $0x150] sm:$0xff]
    %v2836 = vld [vmem:[#allocation8 + $0x158] sm:$0xff]
    %v2837 = vld [vmem:[#allocation8 + $0x160] sm:$0xff]
    %v2838 = vld [vmem:[#allocation8 + $0x168] sm:$0xff]
    %v2839 = vld [vmem:[#allocation8 + $0x170] sm:$0xff]
    %v2840 = vld [vmem:[#allocation8 + $0x178] sm:$0xff]
    %v2841 = vld [vmem:[#allocation8 + $0x180] sm:$0xff]
    %v2842 = vld [vmem:[#allocation8 + $0x188] sm:$0xff]
    %v2843 = vld [vmem:[#allocation8 + $0x190] sm:$0xff]
    %v2844 = vld [vmem:[#allocation8 + $0x198] sm:$0xff]
    %v2845 = vld [vmem:[#allocation8 + $0x1a0] sm:$0xff]
    %v2846 = vld [vmem:[#allocation8 + $0x1a8] sm:$0xff]
    %v2847 = vld [vmem:[#allocation8 + $0x1b0] sm:$0xff]
    %v2848 = vld [vmem:[#allocation8 + $0x1b8] sm:$0xff]
    %v2849 = vld [vmem:[#allocation8 + $0x1c0] sm:$0xff]
    %v2850 = vld [vmem:[#allocation8 + $0x1c8] sm:$0xff]
    %v2851 = vld [vmem:[#allocation8 + $0x1d0] sm:$0xff]
    %v2852 = vld [vmem:[#allocation8 + $0x1d8] sm:$0xff]
    %v2853 = vld [vmem:[#allocation8 + $0x1e0] sm:$0xff]
    %v2854 = vld [vmem:[#allocation8 + $0x1e8] sm:$0xff]
    %v2855 = vld [vmem:[#allocation8 + $0x1f0] sm:$0xff]
    %v2856 = vld [vmem:[#allocation8 + $0x1f8] sm:$0xff]
    %v2857 = vld [vmem:[#allocation8 + $0x200] sm:$0xff]
    %v2858 = vld [vmem:[#allocation8 + $0x208] sm:$0xff]
    %v2859 = vld [vmem:[#allocation8 + $0x210] sm:$0xff]
    %v2860 = vld [vmem:[#allocation8 + $0x218] sm:$0xff]
    %v2861 = vld [vmem:[#allocation8 + $0x220] sm:$0xff]
    %v2862 = vld [vmem:[#allocation8 + $0x228] sm:$0xff]
    %v2863 = vld [vmem:[#allocation8 + $0x230] sm:$0xff]
    %v2864 = vld [vmem:[#allocation8 + $0x238] sm:$0xff]
    %v2865 = vld [vmem:[#allocation8 + $0x240] sm:$0xff]
    %v2866 = vld [vmem:[#allocation8 + $0x248] sm:$0xff]
    %v2867 = vld [vmem:[#allocation8 + $0x250] sm:$0xff]
    %v2868 = vld [vmem:[#allocation8 + $0x258] sm:$0xff]
    %v2869 = vld [vmem:[#allocation8 + $0x260] sm:$0xff]
    %v2870 = vld [vmem:[#allocation8 + $0x268] sm:$0xff]
    %v2871 = vld [vmem:[#allocation8 + $0x270] sm:$0xff]
    %v2872 = vld [vmem:[#allocation8 + $0x278] sm:$0xff]
    %v2873 = vld [vmem:[#allocation8 + $0x280] sm:$0xff]
    %v2874 = vld [vmem:[#allocation8 + $0x288] sm:$0xff]
    %v2875 = vld [vmem:[#allocation8 + $0x290] sm:$0xff]
    %v2876 = vld [vmem:[#allocation8 + $0x298] sm:$0xff]
    %v2877 = vld [vmem:[#allocation8 + $0x2a0] sm:$0xff]
    %v2878 = vld [vmem:[#allocation8 + $0x2a8] sm:$0xff]
    %v2879 = vld [vmem:[#allocation8 + $0x2b0] sm:$0xff]
    %v2880 = vld [vmem:[#allocation8 + $0x2b8] sm:$0xff]
    %v2881 = vld [vmem:[#allocation8 + $0x2c0] sm:$0xff]
    %v2882 = vld [vmem:[#allocation8 + $0x2c8] sm:$0xff]
    %v2883 = vld [vmem:[#allocation8 + $0x2d0] sm:$0xff]
    %v2884 = vld [vmem:[#allocation8 + $0x2d8] sm:$0xff]
    %v2885 = vld [vmem:[#allocation8 + $0x2e0] sm:$0xff]
    %v2886 = vld [vmem:[#allocation8 + $0x2e8] sm:$0xff]
    %v2887 = vld [vmem:[#allocation8 + $0x2f0] sm:$0xff]
    %v2888 = vld [vmem:[#allocation8 + $0x2f8] sm:$0xff]
    %v2889 = vld [vmem:[#allocation8 + $0x300] sm:$0xff]
    %v2890 = vld [vmem:[#allocation8 + $0x308] sm:$0xff]
    %v2891 = vld [vmem:[#allocation8 + $0x310] sm:$0xff]
    %v2892 = vld [vmem:[#allocation8 + $0x318] sm:$0xff]
    %v2893 = vld [vmem:[#allocation8 + $0x320] sm:$0xff]
    %v2894 = vld [vmem:[#allocation8 + $0x328] sm:$0xff]
    %v2895 = vld [vmem:[#allocation8 + $0x330] sm:$0xff]
    %v2896 = vld [vmem:[#allocation8 + $0x338] sm:$0xff]
    %v2897 = vld [vmem:[#allocation8 + $0x340] sm:$0xff]
    %v2898 = vld [vmem:[#allocation8 + $0x348] sm:$0xff]
    %v2899 = vld [vmem:[#allocation8 + $0x350] sm:$0xff]
    %v2900 = vld [vmem:[#allocation8 + $0x358] sm:$0xff]
    %v2901 = vld [vmem:[#allocation8 + $0x360] sm:$0xff]
    %v2902 = vld [vmem:[#allocation8 + $0x368] sm:$0xff]
    %v2903 = vld [vmem:[#allocation8 + $0x370] sm:$0xff]
    %v2904 = vld [vmem:[#allocation8 + $0x378] sm:$0xff]
    %v2905 = vld [vmem:[#allocation8 + $0x380] sm:$0xff]
    %v2906 = vld [vmem:[#allocation8 + $0x388] sm:$0xff]
    %v2907 = vld [vmem:[#allocation8 + $0x390] sm:$0xff]
    %v2908 = vld [vmem:[#allocation8 + $0x398] sm:$0xff]
    %v2909 = vld [vmem:[#allocation8 + $0x3a0] sm:$0xff]
    %v2910 = vld [vmem:[#allocation8 + $0x3a8] sm:$0xff]
    %v2911 = vld [vmem:[#allocation8 + $0x3b0] sm:$0xff]
    %v2912 = vld [vmem:[#allocation8 + $0x3b8] sm:$0xff]
    %v2913 = vld [vmem:[#allocation8 + $0x3c0] sm:$0xff]
    %v2914 = vld [vmem:[#allocation8 + $0x3c8] sm:$0xff]
    %v2915 = vld [vmem:[#allocation8 + $0x3d0] sm:$0xff]
    %v2916 = vld [vmem:[#allocation8 + $0x3d8] sm:$0xff]
    %v2917 = vld [vmem:[#allocation8 + $0x3e0] sm:$0xff]
    %v2918 = vld [vmem:[#allocation8 + $0x3e8] sm:$0xff]
    %v2919 = vld [vmem:[#allocation8 + $0x3f0] sm:$0xff]
    %v2920 = vld [vmem:[#allocation8 + $0x3f8] sm:$0xff]
    %v2921 = vld [vmem:[%s10] sm:$0xf]
    %v2923 = vlaneseq
    %v2924 = vshrl.u32 %v2923, 7
    %v2925 = vsub.s32 0, %v2924
    %v2926 = vrot.slane %v2921, %v2925
    %v2927 = vlaneseq
    %v2928 = vshrl.u32 %v2927, 7
    %v2929 = vsub.s32 1, %v2928
    %v2930 = vrot.slane %v2921, %v2929
    %v2931 = vlaneseq
    %v2932 = vshrl.u32 %v2931, 7
    %v2933 = vsub.s32 2, %v2932
    %v2934 = vrot.slane %v2921, %v2933
    %v2935 = vlaneseq
    %v2936 = vshrl.u32 %v2935, 7
    %v2937 = vsub.s32 3, %v2936
    %v2938 = vrot.slane %v2921, %v2937
    %v3071 = vunpack.c.l.b16 %v2793
    %v3072 = vunpack.c.h.b16 %v2793
    %v3073 = vunpack.c.l.b16 %v2794
    %v3074 = vunpack.c.h.b16 %v2794
    %v3075 = vunpack.c.l.b16 %v2795
    %v3076 = vunpack.c.h.b16 %v2795
    %v3077 = vunpack.c.l.b16 %v2796
    %v3078 = vunpack.c.h.b16 %v2796
    %v3079 = vunpack.c.l.b16 %v2797
    %v3080 = vunpack.c.h.b16 %v2797
    %v3081 = vunpack.c.l.b16 %v2798
    %v3082 = vunpack.c.h.b16 %v2798
    %v3083 = vunpack.c.l.b16 %v2799
    %v3084 = vunpack.c.h.b16 %v2799
    %v3085 = vunpack.c.l.b16 %v2800
    %v3086 = vunpack.c.h.b16 %v2800
    %v3087 = vunpack.c.l.b16 %v2801
    %v3088 = vunpack.c.h.b16 %v2801
    %v3089 = vunpack.c.l.b16 %v2802
    %v3090 = vunpack.c.h.b16 %v2802
    %v3091 = vunpack.c.l.b16 %v2803
    %v3092 = vunpack.c.h.b16 %v2803
    %v3093 = vunpack.c.l.b16 %v2804
    %v3094 = vunpack.c.h.b16 %v2804
    %v3095 = vunpack.c.l.b16 %v2805
    %v3096 = vunpack.c.h.b16 %v2805
    %v3097 = vunpack.c.l.b16 %v2806
    %v3098 = vunpack.c.h.b16 %v2806
    %v3099 = vunpack.c.l.b16 %v2807
    %v3100 = vunpack.c.h.b16 %v2807
    %v3101 = vunpack.c.l.b16 %v2808
    %v3102 = vunpack.c.h.b16 %v2808
    %v3103 = vunpack.c.l.b16 %v2809
    %v3104 = vunpack.c.h.b16 %v2809
    %v3105 = vunpack.c.l.b16 %v2810
    %v3106 = vunpack.c.h.b16 %v2810
    %v3107 = vunpack.c.l.b16 %v2811
    %v3108 = vunpack.c.h.b16 %v2811
    %v3109 = vunpack.c.l.b16 %v2812
    %v3110 = vunpack.c.h.b16 %v2812
    %v3111 = vunpack.c.l.b16 %v2813
    %v3112 = vunpack.c.h.b16 %v2813
    %v3113 = vunpack.c.l.b16 %v2814
    %v3114 = vunpack.c.h.b16 %v2814
    %v3115 = vunpack.c.l.b16 %v2815
    %v3116 = vunpack.c.h.b16 %v2815
    %v3117 = vunpack.c.l.b16 %v2816
    %v3118 = vunpack.c.h.b16 %v2816
    %v3119 = vunpack.c.l.b16 %v2817
    %v3120 = vunpack.c.h.b16 %v2817
    %v3121 = vunpack.c.l.b16 %v2818
    %v3122 = vunpack.c.h.b16 %v2818
    %v3123 = vunpack.c.l.b16 %v2819
    %v3124 = vunpack.c.h.b16 %v2819
    %v3125 = vunpack.c.l.b16 %v2820
    %v3126 = vunpack.c.h.b16 %v2820
    %v3127 = vunpack.c.l.b16 %v2821
    %v3128 = vunpack.c.h.b16 %v2821
    %v3129 = vunpack.c.l.b16 %v2822
    %v3130 = vunpack.c.h.b16 %v2822
    %v3131 = vunpack.c.l.b16 %v2823
    %v3132 = vunpack.c.h.b16 %v2823
    %v3133 = vunpack.c.l.b16 %v2824
    %v3134 = vunpack.c.h.b16 %v2824
    %v3135 = vunpack.c.l.b16 %v2825
    %v3136 = vunpack.c.h.b16 %v2825
    %v3137 = vunpack.c.l.b16 %v2826
    %v3138 = vunpack.c.h.b16 %v2826
    %v3139 = vunpack.c.l.b16 %v2827
    %v3140 = vunpack.c.h.b16 %v2827
    %v3141 = vunpack.c.l.b16 %v2828
    %v3142 = vunpack.c.h.b16 %v2828
    %v3143 = vunpack.c.l.b16 %v2829
    %v3144 = vunpack.c.h.b16 %v2829
    %v3145 = vunpack.c.l.b16 %v2830
    %v3146 = vunpack.c.h.b16 %v2830
    %v3147 = vunpack.c.l.b16 %v2831
    %v3148 = vunpack.c.h.b16 %v2831
    %v3149 = vunpack.c.l.b16 %v2832
    %v3150 = vunpack.c.h.b16 %v2832
    %v3151 = vunpack.c.l.b16 %v2833
    %v3152 = vunpack.c.h.b16 %v2833
    %v3153 = vunpack.c.l.b16 %v2834
    %v3154 = vunpack.c.h.b16 %v2834
    %v3155 = vunpack.c.l.b16 %v2835
    %v3156 = vunpack.c.h.b16 %v2835
    %v3157 = vunpack.c.l.b16 %v2836
    %v3158 = vunpack.c.h.b16 %v2836
    %v3159 = vunpack.c.l.b16 %v2837
    %v3160 = vunpack.c.h.b16 %v2837
    %v3161 = vunpack.c.l.b16 %v2838
    %v3162 = vunpack.c.h.b16 %v2838
    %v3163 = vunpack.c.l.b16 %v2839
    %v3164 = vunpack.c.h.b16 %v2839
    %v3165 = vunpack.c.l.b16 %v2840
    %v3166 = vunpack.c.h.b16 %v2840
    %v3167 = vunpack.c.l.b16 %v2841
    %v3168 = vunpack.c.h.b16 %v2841
    %v3169 = vunpack.c.l.b16 %v2842
    %v3170 = vunpack.c.h.b16 %v2842
    %v3171 = vunpack.c.l.b16 %v2843
    %v3172 = vunpack.c.h.b16 %v2843
    %v3173 = vunpack.c.l.b16 %v2844
    %v3174 = vunpack.c.h.b16 %v2844
    %v3175 = vunpack.c.l.b16 %v2845
    %v3176 = vunpack.c.h.b16 %v2845
    %v3177 = vunpack.c.l.b16 %v2846
    %v3178 = vunpack.c.h.b16 %v2846
    %v3179 = vunpack.c.l.b16 %v2847
    %v3180 = vunpack.c.h.b16 %v2847
    %v3181 = vunpack.c.l.b16 %v2848
    %v3182 = vunpack.c.h.b16 %v2848
    %v3183 = vunpack.c.l.b16 %v2849
    %v3184 = vunpack.c.h.b16 %v2849
    %v3185 = vunpack.c.l.b16 %v2850
    %v3186 = vunpack.c.h.b16 %v2850
    %v3187 = vunpack.c.l.b16 %v2851
    %v3188 = vunpack.c.h.b16 %v2851
    %v3189 = vunpack.c.l.b16 %v2852
    %v3190 = vunpack.c.h.b16 %v2852
    %v3191 = vunpack.c.l.b16 %v2853
    %v3192 = vunpack.c.h.b16 %v2853
    %v3193 = vunpack.c.l.b16 %v2854
    %v3194 = vunpack.c.h.b16 %v2854
    %v3195 = vunpack.c.l.b16 %v2855
    %v3196 = vunpack.c.h.b16 %v2855
    %v3197 = vunpack.c.l.b16 %v2856
    %v3198 = vunpack.c.h.b16 %v2856
    %v3199 = vunpack.c.l.b16 %v2857
    %v3200 = vunpack.c.h.b16 %v2857
    %v3201 = vunpack.c.l.b16 %v2858
    %v3202 = vunpack.c.h.b16 %v2858
    %v3203 = vunpack.c.l.b16 %v2859
    %v3204 = vunpack.c.h.b16 %v2859
    %v3205 = vunpack.c.l.b16 %v2860
    %v3206 = vunpack.c.h.b16 %v2860
    %v3207 = vunpack.c.l.b16 %v2861
    %v3208 = vunpack.c.h.b16 %v2861
    %v3209 = vunpack.c.l.b16 %v2862
    %v3210 = vunpack.c.h.b16 %v2862
    %v3211 = vunpack.c.l.b16 %v2863
    %v3212 = vunpack.c.h.b16 %v2863
    %v3213 = vunpack.c.l.b16 %v2864
    %v3214 = vunpack.c.h.b16 %v2864
    %v3215 = vunpack.c.l.b16 %v2865
    %v3216 = vunpack.c.h.b16 %v2865
    %v3217 = vunpack.c.l.b16 %v2866
    %v3218 = vunpack.c.h.b16 %v2866
    %v3219 = vunpack.c.l.b16 %v2867
    %v3220 = vunpack.c.h.b16 %v2867
    %v3221 = vunpack.c.l.b16 %v2868
    %v3222 = vunpack.c.h.b16 %v2868
    %v3223 = vunpack.c.l.b16 %v2869
    %v3224 = vunpack.c.h.b16 %v2869
    %v3225 = vunpack.c.l.b16 %v2870
    %v3226 = vunpack.c.h.b16 %v2870
    %v3227 = vunpack.c.l.b16 %v2871
    %v3228 = vunpack.c.h.b16 %v2871
    %v3229 = vunpack.c.l.b16 %v2872
    %v3230 = vunpack.c.h.b16 %v2872
    %v3231 = vunpack.c.l.b16 %v2873
    %v3232 = vunpack.c.h.b16 %v2873
    %v3233 = vunpack.c.l.b16 %v2874
    %v3234 = vunpack.c.h.b16 %v2874
    %v3235 = vunpack.c.l.b16 %v2875
    %v3236 = vunpack.c.h.b16 %v2875
    %v3237 = vunpack.c.l.b16 %v2876
    %v3238 = vunpack.c.h.b16 %v2876
    %v3239 = vunpack.c.l.b16 %v2877
    %v3240 = vunpack.c.h.b16 %v2877
    %v3241 = vunpack.c.l.b16 %v2878
    %v3242 = vunpack.c.h.b16 %v2878
    %v3243 = vunpack.c.l.b16 %v2879
    %v3244 = vunpack.c.h.b16 %v2879
    %v3245 = vunpack.c.l.b16 %v2880
    %v3246 = vunpack.c.h.b16 %v2880
    %v3247 = vunpack.c.l.b16 %v2881
    %v3248 = vunpack.c.h.b16 %v2881
    %v3249 = vunpack.c.l.b16 %v2882
    %v3250 = vunpack.c.h.b16 %v2882
    %v3251 = vunpack.c.l.b16 %v2883
    %v3252 = vunpack.c.h.b16 %v2883
    %v3253 = vunpack.c.l.b16 %v2884
    %v3254 = vunpack.c.h.b16 %v2884
    %v3255 = vunpack.c.l.b16 %v2885
    %v3256 = vunpack.c.h.b16 %v2885
    %v3257 = vunpack.c.l.b16 %v2886
    %v3258 = vunpack.c.h.b16 %v2886
    %v3259 = vunpack.c.l.b16 %v2887
    %v3260 = vunpack.c.h.b16 %v2887
    %v3261 = vunpack.c.l.b16 %v2888
    %v3262 = vunpack.c.h.b16 %v2888
    %v3263 = vunpack.c.l.b16 %v2889
    %v3264 = vunpack.c.h.b16 %v2889
    %v3265 = vunpack.c.l.b16 %v2890
    %v3266 = vunpack.c.h.b16 %v2890
    %v3267 = vunpack.c.l.b16 %v2891
    %v3268 = vunpack.c.h.b16 %v2891
    %v3269 = vunpack.c.l.b16 %v2892
    %v3270 = vunpack.c.h.b16 %v2892
    %v3271 = vunpack.c.l.b16 %v2893
    %v3272 = vunpack.c.h.b16 %v2893
    %v3273 = vunpack.c.l.b16 %v2894
    %v3274 = vunpack.c.h.b16 %v2894
    %v3275 = vunpack.c.l.b16 %v2895
    %v3276 = vunpack.c.h.b16 %v2895
    %v3277 = vunpack.c.l.b16 %v2896
    %v3278 = vunpack.c.h.b16 %v2896
    %v3279 = vunpack.c.l.b16 %v2897
    %v3280 = vunpack.c.h.b16 %v2897
    %v3281 = vunpack.c.l.b16 %v2898
    %v3282 = vunpack.c.h.b16 %v2898
    %v3283 = vunpack.c.l.b16 %v2899
    %v3284 = vunpack.c.h.b16 %v2899
    %v3285 = vunpack.c.l.b16 %v2900
    %v3286 = vunpack.c.h.b16 %v2900
    %v3287 = vunpack.c.l.b16 %v2901
    %v3288 = vunpack.c.h.b16 %v2901
    %v3289 = vunpack.c.l.b16 %v2902
    %v3290 = vunpack.c.h.b16 %v2902
    %v3291 = vunpack.c.l.b16 %v2903
    %v3292 = vunpack.c.h.b16 %v2903
    %v3293 = vunpack.c.l.b16 %v2904
    %v3294 = vunpack.c.h.b16 %v2904
    %v3295 = vunpack.c.l.b16 %v2905
    %v3296 = vunpack.c.h.b16 %v2905
    %v3297 = vunpack.c.l.b16 %v2906
    %v3298 = vunpack.c.h.b16 %v2906
    %v3299 = vunpack.c.l.b16 %v2907
    %v3300 = vunpack.c.h.b16 %v2907
    %v3301 = vunpack.c.l.b16 %v2908
    %v3302 = vunpack.c.h.b16 %v2908
    %v3303 = vunpack.c.l.b16 %v2909
    %v3304 = vunpack.c.h.b16 %v2909
    %v3305 = vunpack.c.l.b16 %v2910
    %v3306 = vunpack.c.h.b16 %v2910
    %v3307 = vunpack.c.l.b16 %v2911
    %v3308 = vunpack.c.h.b16 %v2911
    %v3309 = vunpack.c.l.b16 %v2912
    %v3310 = vunpack.c.h.b16 %v2912
    %v3311 = vunpack.c.l.b16 %v2913
    %v3312 = vunpack.c.h.b16 %v2913
    %v3313 = vunpack.c.l.b16 %v2914
    %v3314 = vunpack.c.h.b16 %v2914
    %v3315 = vunpack.c.l.b16 %v2915
    %v3316 = vunpack.c.h.b16 %v2915
    %v3317 = vunpack.c.l.b16 %v2916
    %v3318 = vunpack.c.h.b16 %v2916
    %v3319 = vunpack.c.l.b16 %v2917
    %v3320 = vunpack.c.h.b16 %v2917
    %v3321 = vunpack.c.l.b16 %v2918
    %v3322 = vunpack.c.h.b16 %v2918
    %v3323 = vunpack.c.l.b16 %v2919
    %v3324 = vunpack.c.h.b16 %v2919
    %v3325 = vunpack.c.l.b16 %v2920
    %v3326 = vunpack.c.h.b16 %v2920
    %v3327 = vpack.c.b16 %v3075, %v3071
    %v3328 = vpack.c.b16 %v3076, %v3072
    %v3329 = vpack.c.b16 %v3077, %v3073
    %v3330 = vpack.c.b16 %v3078, %v3074
    %v3331 = vpack.c.b16 %v3083, %v3079
    %v3332 = vpack.c.b16 %v3084, %v3080
    %v3333 = vpack.c.b16 %v3085, %v3081
    %v3334 = vpack.c.b16 %v3086, %v3082
    %v3335 = vpack.c.b16 %v3091, %v3087
    %v3336 = vpack.c.b16 %v3092, %v3088
    %v3337 = vpack.c.b16 %v3093, %v3089
    %v3338 = vpack.c.b16 %v3094, %v3090
    %v3339 = vpack.c.b16 %v3099, %v3095
    %v3340 = vpack.c.b16 %v3100, %v3096
    %v3341 = vpack.c.b16 %v3101, %v3097
    %v3342 = vpack.c.b16 %v3102, %v3098
    %v3343 = vpack.c.b16 %v3107, %v3103
    %v3344 = vpack.c.b16 %v3108, %v3104
    %v3345 = vpack.c.b16 %v3109, %v3105
    %v3346 = vpack.c.b16 %v3110, %v3106
    %v3347 = vpack.c.b16 %v3115, %v3111
    %v3348 = vpack.c.b16 %v3116, %v3112
    %v3349 = vpack.c.b16 %v3117, %v3113
    %v3350 = vpack.c.b16 %v3118, %v3114
    %v3351 = vpack.c.b16 %v3123, %v3119
    %v3352 = vpack.c.b16 %v3124, %v3120
    %v3353 = vpack.c.b16 %v3125, %v3121
    %v3354 = vpack.c.b16 %v3126, %v3122
    %v3355 = vpack.c.b16 %v3131, %v3127
    %v3356 = vpack.c.b16 %v3132, %v3128
    %v3357 = vpack.c.b16 %v3133, %v3129
    %v3358 = vpack.c.b16 %v3134, %v3130
    %v3359 = vpack.c.b16 %v3139, %v3135
    %v3360 = vpack.c.b16 %v3140, %v3136
    %v3361 = vpack.c.b16 %v3141, %v3137
    %v3362 = vpack.c.b16 %v3142, %v3138
    %v3363 = vpack.c.b16 %v3147, %v3143
    %v3364 = vpack.c.b16 %v3148, %v3144
    %v3365 = vpack.c.b16 %v3149, %v3145
    %v3366 = vpack.c.b16 %v3150, %v3146
    %v3367 = vpack.c.b16 %v3155, %v3151
    %v3368 = vpack.c.b16 %v3156, %v3152
    %v3369 = vpack.c.b16 %v3157, %v3153
    %v3370 = vpack.c.b16 %v3158, %v3154
    %v3371 = vpack.c.b16 %v3163, %v3159
    %v3372 = vpack.c.b16 %v3164, %v3160
    %v3373 = vpack.c.b16 %v3165, %v3161
    %v3374 = vpack.c.b16 %v3166, %v3162
    %v3375 = vpack.c.b16 %v3171, %v3167
    %v3376 = vpack.c.b16 %v3172, %v3168
    %v3377 = vpack.c.b16 %v3173, %v3169
    %v3378 = vpack.c.b16 %v3174, %v3170
    %v3379 = vpack.c.b16 %v3179, %v3175
    %v3380 = vpack.c.b16 %v3180, %v3176
    %v3381 = vpack.c.b16 %v3181, %v3177
    %v3382 = vpack.c.b16 %v3182, %v3178
    %v3383 = vpack.c.b16 %v3187, %v3183
    %v3384 = vpack.c.b16 %v3188, %v3184
    %v3385 = vpack.c.b16 %v3189, %v3185
    %v3386 = vpack.c.b16 %v3190, %v3186
    %v3387 = vpack.c.b16 %v3195, %v3191
    %v3388 = vpack.c.b16 %v3196, %v3192
    %v3389 = vpack.c.b16 %v3197, %v3193
    %v3390 = vpack.c.b16 %v3198, %v3194
    %v3391 = vpack.c.b16 %v3203, %v3199
    %v3392 = vpack.c.b16 %v3204, %v3200
    %v3393 = vpack.c.b16 %v3205, %v3201
    %v3394 = vpack.c.b16 %v3206, %v3202
    %v3395 = vpack.c.b16 %v3211, %v3207
    %v3396 = vpack.c.b16 %v3212, %v3208
    %v3397 = vpack.c.b16 %v3213, %v3209
    %v3398 = vpack.c.b16 %v3214, %v3210
    %v3399 = vpack.c.b16 %v3219, %v3215
    %v3400 = vpack.c.b16 %v3220, %v3216
    %v3401 = vpack.c.b16 %v3221, %v3217
    %v3402 = vpack.c.b16 %v3222, %v3218
    %v3403 = vpack.c.b16 %v3227, %v3223
    %v3404 = vpack.c.b16 %v3228, %v3224
    %v3405 = vpack.c.b16 %v3229, %v3225
    %v3406 = vpack.c.b16 %v3230, %v3226
    %v3407 = vpack.c.b16 %v3235, %v3231
    %v3408 = vpack.c.b16 %v3236, %v3232
    %v3409 = vpack.c.b16 %v3237, %v3233
    %v3410 = vpack.c.b16 %v3238, %v3234
    %v3411 = vpack.c.b16 %v3243, %v3239
    %v3412 = vpack.c.b16 %v3244, %v3240
    %v3413 = vpack.c.b16 %v3245, %v3241
    %v3414 = vpack.c.b16 %v3246, %v3242
    %v3415 = vpack.c.b16 %v3251, %v3247
    %v3416 = vpack.c.b16 %v3252, %v3248
    %v3417 = vpack.c.b16 %v3253, %v3249
    %v3418 = vpack.c.b16 %v3254, %v3250
    %v3419 = vpack.c.b16 %v3259, %v3255
    %v3420 = vpack.c.b16 %v3260, %v3256
    %v3421 = vpack.c.b16 %v3261, %v3257
    %v3422 = vpack.c.b16 %v3262, %v3258
    %v3423 = vpack.c.b16 %v3267, %v3263
    %v3424 = vpack.c.b16 %v3268, %v3264
    %v3425 = vpack.c.b16 %v3269, %v3265
    %v3426 = vpack.c.b16 %v3270, %v3266
    %v3427 = vpack.c.b16 %v3275, %v3271
    %v3428 = vpack.c.b16 %v3276, %v3272
    %v3429 = vpack.c.b16 %v3277, %v3273
    %v3430 = vpack.c.b16 %v3278, %v3274
    %v3431 = vpack.c.b16 %v3283, %v3279
    %v3432 = vpack.c.b16 %v3284, %v3280
    %v3433 = vpack.c.b16 %v3285, %v3281
    %v3434 = vpack.c.b16 %v3286, %v3282
    %v3435 = vpack.c.b16 %v3291, %v3287
    %v3436 = vpack.c.b16 %v3292, %v3288
    %v3437 = vpack.c.b16 %v3293, %v3289
    %v3438 = vpack.c.b16 %v3294, %v3290
    %v3439 = vpack.c.b16 %v3299, %v3295
    %v3440 = vpack.c.b16 %v3300, %v3296
    %v3441 = vpack.c.b16 %v3301, %v3297
    %v3442 = vpack.c.b16 %v3302, %v3298
    %v3443 = vpack.c.b16 %v3307, %v3303
    %v3444 = vpack.c.b16 %v3308, %v3304
    %v3445 = vpack.c.b16 %v3309, %v3305
    %v3446 = vpack.c.b16 %v3310, %v3306
    %v3447 = vpack.c.b16 %v3315, %v3311
    %v3448 = vpack.c.b16 %v3316, %v3312
    %v3449 = vpack.c.b16 %v3317, %v3313
    %v3450 = vpack.c.b16 %v3318, %v3314
    %v3451 = vpack.c.b16 %v3323, %v3319
    %v3452 = vpack.c.b16 %v3324, %v3320
    %v3453 = vpack.c.b16 %v3325, %v3321
    %v3454 = vpack.c.b16 %v3326, %v3322
    %3583 = vmatprep.subr.bf16.mxu0 %v3328
    %3584 = vmatpush1.bf16.msra.mxu0 %v3327
    %3585 = vmatprep.subr.bf16.mxu0 %v3332
    %3586 = vmatpush1.bf16.msra.mxu0 %v3331
    %3587 = vmatprep.subr.bf16.mxu0 %v3336
    %3588 = vmatpush1.bf16.msra.mxu0 %v3335
    %3589 = vmatprep.subr.bf16.mxu0 %v3340
    %3590 = vmatpush1.bf16.msra.mxu0 %v3339
    %3591 = vmatprep.subr.bf16.mxu0 %v3344
    %3592 = vmatpush1.bf16.msra.mxu0 %v3343
    %3593 = vmatprep.subr.bf16.mxu0 %v3348
    %3594 = vmatpush1.bf16.msra.mxu0 %v3347
    %3595 = vmatprep.subr.bf16.mxu0 %v3352
    %3596 = vmatpush1.bf16.msra.mxu0 %v3351
    %3597 = vmatprep.subr.bf16.mxu0 %v3356
    %3598 = vmatpush1.bf16.msra.mxu0 %v3355
    %3599 = vmatprep.subr.bf16.mxu0 %v3360
    %3600 = vmatpush1.bf16.msra.mxu0 %v3359
    %3601 = vmatprep.subr.bf16.mxu0 %v3364
    %3602 = vmatpush1.bf16.msra.mxu0 %v3363
    %3603 = vmatprep.subr.bf16.mxu0 %v3368
    %3604 = vmatpush1.bf16.msra.mxu0 %v3367
    %3605 = vmatprep.subr.bf16.mxu0 %v3372
    %3606 = vmatpush1.bf16.msra.mxu0 %v3371
    %3607 = vmatprep.subr.bf16.mxu0 %v3376
    %3608 = vmatpush1.bf16.msra.mxu0 %v3375
    %3609 = vmatprep.subr.bf16.mxu0 %v3380
    %3610 = vmatpush1.bf16.msra.mxu0 %v3379
    %3611 = vmatprep.subr.bf16.mxu0 %v3384
    %3612 = vmatpush1.bf16.msra.mxu0 %v3383
    %3613 = vmatprep.subr.bf16.mxu0 %v3388
    %3614 = vmatpush1.bf16.msra.mxu0 %v3387
    %3615 = vmatprep.mubr.bf16.mxu0 %v2790
    %3616 = vmatmul.mubr.bf16.gmra.mrb[0].mxu0 %v2789
    %v3617 = vpop.f32.mrb[0].mxu0
    %v3618 = vadd.f32 %v2926, %v3617
    %v3619 = vpop.f32.mrb[0].mxu0
    %v3620 = vadd.f32 %v2930, %v3619
    %v3621 = vpop.f32.mrb[0].mxu0
    %v3622 = vpop.f32.mrb[0].mxu0
    %3623 = vdwg.mxu0
    %3624 = vmatprep.subr.bf16.mxu0 %v3392
    %3625 = vmatpush1.bf16.msra.mxu0 %v3391
    %3626 = vmatprep.subr.bf16.mxu0 %v3396
    %3627 = vmatpush1.bf16.msra.mxu0 %v3395
    %3628 = vmatprep.subr.bf16.mxu0 %v3400
    %3629 = vmatpush1.bf16.msra.mxu0 %v3399
    %3630 = vmatprep.subr.bf16.mxu0 %v3404
    %3631 = vmatpush1.bf16.msra.mxu0 %v3403
    %3632 = vmatprep.subr.bf16.mxu0 %v3408
    %3633 = vmatpush1.bf16.msra.mxu0 %v3407
    %3634 = vmatprep.subr.bf16.mxu0 %v3412
    %3635 = vmatpush1.bf16.msra.mxu0 %v3411
    %3636 = vmatprep.subr.bf16.mxu0 %v3416
    %3637 = vmatpush1.bf16.msra.mxu0 %v3415
    %3638 = vmatprep.subr.bf16.mxu0 %v3420
    %3639 = vmatpush1.bf16.msra.mxu0 %v3419
    %3640 = vmatprep.subr.bf16.mxu0 %v3424
    %3641 = vmatpush1.bf16.msra.mxu0 %v3423
    %3642 = vmatprep.subr.bf16.mxu0 %v3428
    %3643 = vmatpush1.bf16.msra.mxu0 %v3427
    %3644 = vmatprep.subr.bf16.mxu0 %v3432
    %3645 = vmatpush1.bf16.msra.mxu0 %v3431
    %3646 = vmatprep.subr.bf16.mxu0 %v3436
    %3647 = vmatpush1.bf16.msra.mxu0 %v3435
    %3648 = vmatprep.subr.bf16.mxu0 %v3440
    %3649 = vmatpush1.bf16.msra.mxu0 %v3439
    %3650 = vmatprep.subr.bf16.mxu0 %v3444
    %3651 = vmatpush1.bf16.msra.mxu0 %v3443
    %3652 = vmatprep.subr.bf16.mxu0 %v3448
    %3653 = vmatpush1.bf16.msra.mxu0 %v3447
    %3654 = vmatprep.subr.bf16.mxu0 %v3452
    %3655 = vmatpush1.bf16.msra.mxu0 %v3451
    %3656 = vmatprep.mubr.bf16.mxu0 %v2792
    %3657 = vmatmul.mubr.bf16.gmra.mrb[0].mxu0 %v2791
    %v3658 = vpop.f32.mrb[0].mxu0
    %v3659 = vadd.f32 %v3618, %v3658
    %v3660 = vpop.f32.mrb[0].mxu0
    %v3661 = vadd.f32 %v3620, %v3660
    %v3662 = vpop.f32.mrb[0].mxu0
    %v3663 = vpop.f32.mrb[0].mxu0
    %3664 = vdwg.mxu0
    %3665 = vmatprep.subr.bf16.mxu0 %v3330
    %3666 = vmatpush1.bf16.msra.mxu0 %v3329
    %3667 = vmatprep.subr.bf16.mxu0 %v3334
    %3668 = vmatpush1.bf16.msra.mxu0 %v3333
    %3669 = vmatprep.subr.bf16.mxu0 %v3338
    %3670 = vmatpush1.bf16.msra.mxu0 %v3337
    %3671 = vmatprep.subr.bf16.mxu0 %v3342
    %3672 = vmatpush1.bf16.msra.mxu0 %v3341
    %3673 = vmatprep.subr.bf16.mxu0 %v3346
    %3674 = vmatpush1.bf16.msra.mxu0 %v3345
    %3675 = vmatprep.subr.bf16.mxu0 %v3350
    %3676 = vmatpush1.bf16.msra.mxu0 %v3349
    %3677 = vmatprep.subr.bf16.mxu0 %v3354
    %3678 = vmatpush1.bf16.msra.mxu0 %v3353
    %3679 = vmatprep.subr.bf16.mxu0 %v3358
    %3680 = vmatpush1.bf16.msra.mxu0 %v3357
    %3681 = vmatprep.subr.bf16.mxu0 %v3362
    %3682 = vmatpush1.bf16.msra.mxu0 %v3361
    %3683 = vmatprep.subr.bf16.mxu0 %v3366
    %3684 = vmatpush1.bf16.msra.mxu0 %v3365
    %3685 = vmatprep.subr.bf16.mxu0 %v3370
    %3686 = vmatpush1.bf16.msra.mxu0 %v3369
    %3687 = vmatprep.subr.bf16.mxu0 %v3374
    %3688 = vmatpush1.bf16.msra.mxu0 %v3373
    %3689 = vmatprep.subr.bf16.mxu0 %v3378
    %3690 = vmatpush1.bf16.msra.mxu0 %v3377
    %3691 = vmatprep.subr.bf16.mxu0 %v3382
    %3692 = vmatpush1.bf16.msra.mxu0 %v3381
    %3693 = vmatprep.subr.bf16.mxu0 %v3386
    %3694 = vmatpush1.bf16.msra.mxu0 %v3385
    %3695 = vmatprep.subr.bf16.mxu0 %v3390
    %3696 = vmatpush1.bf16.msra.mxu0 %v3389
    %3697 = vmatprep.mubr.bf16.mxu0 %v2790
    %3698 = vmatmul.mubr.bf16.gmra.mrb[0].mxu0 %v2789
    %v3699 = vpop.f32.mrb[0].mxu0
    %v3700 = vadd.f32 %v2934, %v3699
    %v3701 = vpop.f32.mrb[0].mxu0
    %v3702 = vadd.f32 %v2938, %v3701
    %v3703 = vpop.f32.mrb[0].mxu0
    %v3704 = vpop.f32.mrb[0].mxu0
    %3705 = vdwg.mxu0
    %3706 = vmatprep.subr.bf16.mxu0 %v3394
    %3707 = vmatpush1.bf16.msra.mxu0 %v3393
    %3708 = vmatprep.subr.bf16.mxu0 %v3398
    %3709 = vmatpush1.bf16.msra.mxu0 %v3397
    %3710 = vmatprep.subr.bf16.mxu0 %v3402
    %3711 = vmatpush1.bf16.msra.mxu0 %v3401
    %3712 = vmatprep.subr.bf16.mxu0 %v3406
    %3713 = vmatpush1.bf16.msra.mxu0 %v3405
    %3714 = vmatprep.subr.bf16.mxu0 %v3410
    %3715 = vmatpush1.bf16.msra.mxu0 %v3409
    %3716 = vmatprep.subr.bf16.mxu0 %v3414
    %3717 = vmatpush1.bf16.msra.mxu0 %v3413
    %3718 = vmatprep.subr.bf16.mxu0 %v3418
    %3719 = vmatpush1.bf16.msra.mxu0 %v3417
    %3720 = vmatprep.subr.bf16.mxu0 %v3422
    %3721 = vmatpush1.bf16.msra.mxu0 %v3421
    %3722 = vmatprep.subr.bf16.mxu0 %v3426
    %3723 = vmatpush1.bf16.msra.mxu0 %v3425
    %3724 = vmatprep.subr.bf16.mxu0 %v3430
    %3725 = vmatpush1.bf16.msra.mxu0 %v3429
    %3726 = vmatprep.subr.bf16.mxu0 %v3434
    %3727 = vmatpush1.bf16.msra.mxu0 %v3433
    %3728 = vmatprep.subr.bf16.mxu0 %v3438
    %3729 = vmatpush1.bf16.msra.mxu0 %v3437
    %3730 = vmatprep.subr.bf16.mxu0 %v3442
    %3731 = vmatpush1.bf16.msra.mxu0 %v3441
    %3732 = vmatprep.subr.bf16.mxu0 %v3446
    %3733 = vmatpush1.bf16.msra.mxu0 %v3445
    %3734 = vmatprep.subr.bf16.mxu0 %v3450
    %3735 = vmatpush1.bf16.msra.mxu0 %v3449
    %3736 = vmatprep.subr.bf16.mxu0 %v3454
    %3737 = vmatpush1.bf16.msra.mxu0 %v3453
    %3738 = vmatprep.mubr.bf16.mxu0 %v2792
    %3739 = vmatmul.mubr.bf16.gmra.mrb[0].mxu0 %v2791
    %v3740 = vpop.f32.mrb[0].mxu0
    %v3741 = vadd.f32 %v3700, %v3740
    %v3742 = vpop.f32.mrb[0].mxu0
    %v3743 = vadd.f32 %v3702, %v3742
    %v3744 = vpop.f32.mrb[0].mxu0
    %v3745 = vpop.f32.mrb[0].mxu0
    %3746 = vdwg.mxu0
    %vm3747 = vcmp.gt.f32.partialorder %v3659, 0.0
    %vm3748 = vcmp.gt.f32.partialorder %v3661, 0.0
    %vm3749 = vcmp.gt.f32.partialorder %v3741, 0.0
    %vm3750 = vcmp.gt.f32.partialorder %v3743, 0.0
    %v3751 = vmul.f32 %v3659, 0.01
    %v3752 = vmul.f32 %v3661, 0.01
    %v3753 = vmul.f32 %v3741, 0.01
    %v3754 = vmul.f32 %v3743, 0.01
    %v3755 = vsel %vm3747, %v3659, %v3751
    %v3756 = vsel %vm3748, %v3661, %v3752
    %v3757 = vsel %vm3749, %v3741, %v3753
    %v3758 = vsel %vm3750, %v3743, %v3754
    %v3759 = vpack.c.bf16 %v3755, %v3755
    %v3760 = vpack.c.bf16 %v3756, %v3756
    %v3761 = vpack.c.bf16 %v3757, %v3757
    %v3762 = vpack.c.bf16 %v3758, %v3758
    %v3763 = vld [vmem:[#allocation10] sm:$0xff]
    %v3764 = vld [vmem:[#allocation10 + $0x8] sm:$0xff]
    %v3765 = vld [vmem:[#allocation10 + $0x10] sm:$0xff]
    %v3766 = vld [vmem:[#allocation10 + $0x18] sm:$0xff]
    %v3767 = vld [vmem:[#allocation10 + $0x20] sm:$0xff]
    %v3768 = vld [vmem:[#allocation10 + $0x28] sm:$0xff]
    %v3769 = vld [vmem:[#allocation10 + $0x30] sm:$0xff]
    %v3770 = vld [vmem:[#allocation10 + $0x38] sm:$0xff]
    %v3771 = vld [vmem:[#allocation10 + $0x40] sm:$0xff]
    %v3772 = vld [vmem:[#allocation10 + $0x48] sm:$0xff]
    %v3773 = vld [vmem:[#allocation10 + $0x50] sm:$0xff]
    %v3774 = vld [vmem:[#allocation10 + $0x58] sm:$0xff]
    %v3775 = vld [vmem:[#allocation10 + $0x60] sm:$0xff]
    %v3776 = vld [vmem:[#allocation10 + $0x68] sm:$0xff]
    %v3777 = vld [vmem:[#allocation10 + $0x70] sm:$0xff]
    %v3778 = vld [vmem:[#allocation10 + $0x78] sm:$0xff]
    %v3779 = vld [vmem:[#allocation10 + $0x80] sm:$0xff]
    %v3780 = vld [vmem:[#allocation10 + $0x88] sm:$0xff]
    %v3781 = vld [vmem:[#allocation10 + $0x90] sm:$0xff]
    %v3782 = vld [vmem:[#allocation10 + $0x98] sm:$0xff]
    %v3783 = vld [vmem:[#allocation10 + $0xa0] sm:$0xff]
    %v3784 = vld [vmem:[#allocation10 + $0xa8] sm:$0xff]
    %v3785 = vld [vmem:[#allocation10 + $0xb0] sm:$0xff]
    %v3786 = vld [vmem:[#allocation10 + $0xb8] sm:$0xff]
    %v3787 = vld [vmem:[#allocation10 + $0xc0] sm:$0xff]
    %v3788 = vld [vmem:[#allocation10 + $0xc8] sm:$0xff]
    %v3789 = vld [vmem:[#allocation10 + $0xd0] sm:$0xff]
    %v3790 = vld [vmem:[#allocation10 + $0xd8] sm:$0xff]
    %v3791 = vld [vmem:[#allocation10 + $0xe0] sm:$0xff]
    %v3792 = vld [vmem:[#allocation10 + $0xe8] sm:$0xff]
    %v3793 = vld [vmem:[#allocation10 + $0xf0] sm:$0xff]
    %v3794 = vld [vmem:[#allocation10 + $0xf8] sm:$0xff]
    %v3795 = vld [vmem:[#allocation10 + $0x100] sm:$0xff]
    %v3796 = vld [vmem:[#allocation10 + $0x108] sm:$0xff]
    %v3797 = vld [vmem:[#allocation10 + $0x110] sm:$0xff]
    %v3798 = vld [vmem:[#allocation10 + $0x118] sm:$0xff]
    %v3799 = vld [vmem:[#allocation10 + $0x120] sm:$0xff]
    %v3800 = vld [vmem:[#allocation10 + $0x128] sm:$0xff]
    %v3801 = vld [vmem:[#allocation10 + $0x130] sm:$0xff]
    %v3802 = vld [vmem:[#allocation10 + $0x138] sm:$0xff]
    %v3803 = vld [vmem:[#allocation10 + $0x140] sm:$0xff]
    %v3804 = vld [vmem:[#allocation10 + $0x148] sm:$0xff]
    %v3805 = vld [vmem:[#allocation10 + $0x150] sm:$0xff]
    %v3806 = vld [vmem:[#allocation10 + $0x158] sm:$0xff]
    %v3807 = vld [vmem:[#allocation10 + $0x160] sm:$0xff]
    %v3808 = vld [vmem:[#allocation10 + $0x168] sm:$0xff]
    %v3809 = vld [vmem:[#allocation10 + $0x170] sm:$0xff]
    %v3810 = vld [vmem:[#allocation10 + $0x178] sm:$0xff]
    %v3811 = vld [vmem:[#allocation10 + $0x180] sm:$0xff]
    %v3812 = vld [vmem:[#allocation10 + $0x188] sm:$0xff]
    %v3813 = vld [vmem:[#allocation10 + $0x190] sm:$0xff]
    %v3814 = vld [vmem:[#allocation10 + $0x198] sm:$0xff]
    %v3815 = vld [vmem:[#allocation10 + $0x1a0] sm:$0xff]
    %v3816 = vld [vmem:[#allocation10 + $0x1a8] sm:$0xff]
    %v3817 = vld [vmem:[#allocation10 + $0x1b0] sm:$0xff]
    %v3818 = vld [vmem:[#allocation10 + $0x1b8] sm:$0xff]
    %v3819 = vld [vmem:[#allocation10 + $0x1c0] sm:$0xff]
    %v3820 = vld [vmem:[#allocation10 + $0x1c8] sm:$0xff]
    %v3821 = vld [vmem:[#allocation10 + $0x1d0] sm:$0xff]
    %v3822 = vld [vmem:[#allocation10 + $0x1d8] sm:$0xff]
    %v3823 = vld [vmem:[#allocation10 + $0x1e0] sm:$0xff]
    %v3824 = vld [vmem:[#allocation10 + $0x1e8] sm:$0xff]
    %v3825 = vld [vmem:[#allocation10 + $0x1f0] sm:$0xff]
    %v3826 = vld [vmem:[#allocation10 + $0x1f8] sm:$0xff]
    %v3827 = vld [vmem:[#allocation10 + $0x200] sm:$0xff]
    %v3828 = vld [vmem:[#allocation10 + $0x208] sm:$0xff]
    %v3829 = vld [vmem:[#allocation10 + $0x210] sm:$0xff]
    %v3830 = vld [vmem:[#allocation10 + $0x218] sm:$0xff]
    %v3831 = vld [vmem:[#allocation10 + $0x220] sm:$0xff]
    %v3832 = vld [vmem:[#allocation10 + $0x228] sm:$0xff]
    %v3833 = vld [vmem:[#allocation10 + $0x230] sm:$0xff]
    %v3834 = vld [vmem:[#allocation10 + $0x238] sm:$0xff]
    %v3835 = vld [vmem:[#allocation10 + $0x240] sm:$0xff]
    %v3836 = vld [vmem:[#allocation10 + $0x248] sm:$0xff]
    %v3837 = vld [vmem:[#allocation10 + $0x250] sm:$0xff]
    %v3838 = vld [vmem:[#allocation10 + $0x258] sm:$0xff]
    %v3839 = vld [vmem:[#allocation10 + $0x260] sm:$0xff]
    %v3840 = vld [vmem:[#allocation10 + $0x268] sm:$0xff]
    %v3841 = vld [vmem:[#allocation10 + $0x270] sm:$0xff]
    %v3842 = vld [vmem:[#allocation10 + $0x278] sm:$0xff]
    %v3843 = vld [vmem:[#allocation10 + $0x280] sm:$0xff]
    %v3844 = vld [vmem:[#allocation10 + $0x288] sm:$0xff]
    %v3845 = vld [vmem:[#allocation10 + $0x290] sm:$0xff]
    %v3846 = vld [vmem:[#allocation10 + $0x298] sm:$0xff]
    %v3847 = vld [vmem:[#allocation10 + $0x2a0] sm:$0xff]
    %v3848 = vld [vmem:[#allocation10 + $0x2a8] sm:$0xff]
    %v3849 = vld [vmem:[#allocation10 + $0x2b0] sm:$0xff]
    %v3850 = vld [vmem:[#allocation10 + $0x2b8] sm:$0xff]
    %v3851 = vld [vmem:[#allocation10 + $0x2c0] sm:$0xff]
    %v3852 = vld [vmem:[#allocation10 + $0x2c8] sm:$0xff]
    %v3853 = vld [vmem:[#allocation10 + $0x2d0] sm:$0xff]
    %v3854 = vld [vmem:[#allocation10 + $0x2d8] sm:$0xff]
    %v3855 = vld [vmem:[#allocation10 + $0x2e0] sm:$0xff]
    %v3856 = vld [vmem:[#allocation10 + $0x2e8] sm:$0xff]
    %v3857 = vld [vmem:[#allocation10 + $0x2f0] sm:$0xff]
    %v3858 = vld [vmem:[#allocation10 + $0x2f8] sm:$0xff]
    %v3859 = vld [vmem:[#allocation10 + $0x300] sm:$0xff]
    %v3860 = vld [vmem:[#allocation10 + $0x308] sm:$0xff]
    %v3861 = vld [vmem:[#allocation10 + $0x310] sm:$0xff]
    %v3862 = vld [vmem:[#allocation10 + $0x318] sm:$0xff]
    %v3863 = vld [vmem:[#allocation10 + $0x320] sm:$0xff]
    %v3864 = vld [vmem:[#allocation10 + $0x328] sm:$0xff]
    %v3865 = vld [vmem:[#allocation10 + $0x330] sm:$0xff]
    %v3866 = vld [vmem:[#allocation10 + $0x338] sm:$0xff]
    %v3867 = vld [vmem:[#allocation10 + $0x340] sm:$0xff]
    %v3868 = vld [vmem:[#allocation10 + $0x348] sm:$0xff]
    %v3869 = vld [vmem:[#allocation10 + $0x350] sm:$0xff]
    %v3870 = vld [vmem:[#allocation10 + $0x358] sm:$0xff]
    %v3871 = vld [vmem:[#allocation10 + $0x360] sm:$0xff]
    %v3872 = vld [vmem:[#allocation10 + $0x368] sm:$0xff]
    %v3873 = vld [vmem:[#allocation10 + $0x370] sm:$0xff]
    %v3874 = vld [vmem:[#allocation10 + $0x378] sm:$0xff]
    %v3875 = vld [vmem:[#allocation10 + $0x380] sm:$0xff]
    %v3876 = vld [vmem:[#allocation10 + $0x388] sm:$0xff]
    %v3877 = vld [vmem:[#allocation10 + $0x390] sm:$0xff]
    %v3878 = vld [vmem:[#allocation10 + $0x398] sm:$0xff]
    %v3879 = vld [vmem:[#allocation10 + $0x3a0] sm:$0xff]
    %v3880 = vld [vmem:[#allocation10 + $0x3a8] sm:$0xff]
    %v3881 = vld [vmem:[#allocation10 + $0x3b0] sm:$0xff]
    %v3882 = vld [vmem:[#allocation10 + $0x3b8] sm:$0xff]
    %v3883 = vld [vmem:[#allocation10 + $0x3c0] sm:$0xff]
    %v3884 = vld [vmem:[#allocation10 + $0x3c8] sm:$0xff]
    %v3885 = vld [vmem:[#allocation10 + $0x3d0] sm:$0xff]
    %v3886 = vld [vmem:[#allocation10 + $0x3d8] sm:$0xff]
    %v3887 = vld [vmem:[#allocation10 + $0x3e0] sm:$0xff]
    %v3888 = vld [vmem:[#allocation10 + $0x3e8] sm:$0xff]
    %v3889 = vld [vmem:[#allocation10 + $0x3f0] sm:$0xff]
    %v3890 = vld [vmem:[#allocation10 + $0x3f8] sm:$0xff]
    %v3891 = vld [vmem:[%s12] sm:$0xf]
    %v3893 = vlaneseq
    %v3894 = vshrl.u32 %v3893, 7
    %v3895 = vsub.s32 0, %v3894
    %v3896 = vrot.slane %v3891, %v3895
    %v3897 = vlaneseq
    %v3898 = vshrl.u32 %v3897, 7
    %v3899 = vsub.s32 1, %v3898
    %v3900 = vrot.slane %v3891, %v3899
    %v3901 = vlaneseq
    %v3902 = vshrl.u32 %v3901, 7
    %v3903 = vsub.s32 2, %v3902
    %v3904 = vrot.slane %v3891, %v3903
    %v3905 = vlaneseq
    %v3906 = vshrl.u32 %v3905, 7
    %v3907 = vsub.s32 3, %v3906
    %v3908 = vrot.slane %v3891, %v3907
    %v4041 = vunpack.c.l.b16 %v3763
    %v4042 = vunpack.c.h.b16 %v3763
    %v4043 = vunpack.c.l.b16 %v3764
    %v4044 = vunpack.c.h.b16 %v3764
    %v4045 = vunpack.c.l.b16 %v3765
    %v4046 = vunpack.c.h.b16 %v3765
    %v4047 = vunpack.c.l.b16 %v3766
    %v4048 = vunpack.c.h.b16 %v3766
    %v4049 = vunpack.c.l.b16 %v3767
    %v4050 = vunpack.c.h.b16 %v3767
    %v4051 = vunpack.c.l.b16 %v3768
    %v4052 = vunpack.c.h.b16 %v3768
    %v4053 = vunpack.c.l.b16 %v3769
    %v4054 = vunpack.c.h.b16 %v3769
    %v4055 = vunpack.c.l.b16 %v3770
    %v4056 = vunpack.c.h.b16 %v3770
    %v4057 = vunpack.c.l.b16 %v3771
    %v4058 = vunpack.c.h.b16 %v3771
    %v4059 = vunpack.c.l.b16 %v3772
    %v4060 = vunpack.c.h.b16 %v3772
    %v4061 = vunpack.c.l.b16 %v3773
    %v4062 = vunpack.c.h.b16 %v3773
    %v4063 = vunpack.c.l.b16 %v3774
    %v4064 = vunpack.c.h.b16 %v3774
    %v4065 = vunpack.c.l.b16 %v3775
    %v4066 = vunpack.c.h.b16 %v3775
    %v4067 = vunpack.c.l.b16 %v3776
    %v4068 = vunpack.c.h.b16 %v3776
    %v4069 = vunpack.c.l.b16 %v3777
    %v4070 = vunpack.c.h.b16 %v3777
    %v4071 = vunpack.c.l.b16 %v3778
    %v4072 = vunpack.c.h.b16 %v3778
    %v4073 = vunpack.c.l.b16 %v3779
    %v4074 = vunpack.c.h.b16 %v3779
    %v4075 = vunpack.c.l.b16 %v3780
    %v4076 = vunpack.c.h.b16 %v3780
    %v4077 = vunpack.c.l.b16 %v3781
    %v4078 = vunpack.c.h.b16 %v3781
    %v4079 = vunpack.c.l.b16 %v3782
    %v4080 = vunpack.c.h.b16 %v3782
    %v4081 = vunpack.c.l.b16 %v3783
    %v4082 = vunpack.c.h.b16 %v3783
    %v4083 = vunpack.c.l.b16 %v3784
    %v4084 = vunpack.c.h.b16 %v3784
    %v4085 = vunpack.c.l.b16 %v3785
    %v4086 = vunpack.c.h.b16 %v3785
    %v4087 = vunpack.c.l.b16 %v3786
    %v4088 = vunpack.c.h.b16 %v3786
    %v4089 = vunpack.c.l.b16 %v3787
    %v4090 = vunpack.c.h.b16 %v3787
    %v4091 = vunpack.c.l.b16 %v3788
    %v4092 = vunpack.c.h.b16 %v3788
    %v4093 = vunpack.c.l.b16 %v3789
    %v4094 = vunpack.c.h.b16 %v3789
    %v4095 = vunpack.c.l.b16 %v3790
    %v4096 = vunpack.c.h.b16 %v3790
    %v4097 = vunpack.c.l.b16 %v3791
    %v4098 = vunpack.c.h.b16 %v3791
    %v4099 = vunpack.c.l.b16 %v3792
    %v4100 = vunpack.c.h.b16 %v3792
    %v4101 = vunpack.c.l.b16 %v3793
    %v4102 = vunpack.c.h.b16 %v3793
    %v4103 = vunpack.c.l.b16 %v3794
    %v4104 = vunpack.c.h.b16 %v3794
    %v4105 = vunpack.c.l.b16 %v3795
    %v4106 = vunpack.c.h.b16 %v3795
    %v4107 = vunpack.c.l.b16 %v3796
    %v4108 = vunpack.c.h.b16 %v3796
    %v4109 = vunpack.c.l.b16 %v3797
    %v4110 = vunpack.c.h.b16 %v3797
    %v4111 = vunpack.c.l.b16 %v3798
    %v4112 = vunpack.c.h.b16 %v3798
    %v4113 = vunpack.c.l.b16 %v3799
    %v4114 = vunpack.c.h.b16 %v3799
    %v4115 = vunpack.c.l.b16 %v3800
    %v4116 = vunpack.c.h.b16 %v3800
    %v4117 = vunpack.c.l.b16 %v3801
    %v4118 = vunpack.c.h.b16 %v3801
    %v4119 = vunpack.c.l.b16 %v3802
    %v4120 = vunpack.c.h.b16 %v3802
    %v4121 = vunpack.c.l.b16 %v3803
    %v4122 = vunpack.c.h.b16 %v3803
    %v4123 = vunpack.c.l.b16 %v3804
    %v4124 = vunpack.c.h.b16 %v3804
    %v4125 = vunpack.c.l.b16 %v3805
    %v4126 = vunpack.c.h.b16 %v3805
    %v4127 = vunpack.c.l.b16 %v3806
    %v4128 = vunpack.c.h.b16 %v3806
    %v4129 = vunpack.c.l.b16 %v3807
    %v4130 = vunpack.c.h.b16 %v3807
    %v4131 = vunpack.c.l.b16 %v3808
    %v4132 = vunpack.c.h.b16 %v3808
    %v4133 = vunpack.c.l.b16 %v3809
    %v4134 = vunpack.c.h.b16 %v3809
    %v4135 = vunpack.c.l.b16 %v3810
    %v4136 = vunpack.c.h.b16 %v3810
    %v4137 = vunpack.c.l.b16 %v3811
    %v4138 = vunpack.c.h.b16 %v3811
    %v4139 = vunpack.c.l.b16 %v3812
    %v4140 = vunpack.c.h.b16 %v3812
    %v4141 = vunpack.c.l.b16 %v3813
    %v4142 = vunpack.c.h.b16 %v3813
    %v4143 = vunpack.c.l.b16 %v3814
    %v4144 = vunpack.c.h.b16 %v3814
    %v4145 = vunpack.c.l.b16 %v3815
    %v4146 = vunpack.c.h.b16 %v3815
    %v4147 = vunpack.c.l.b16 %v3816
    %v4148 = vunpack.c.h.b16 %v3816
    %v4149 = vunpack.c.l.b16 %v3817
    %v4150 = vunpack.c.h.b16 %v3817
    %v4151 = vunpack.c.l.b16 %v3818
    %v4152 = vunpack.c.h.b16 %v3818
    %v4153 = vunpack.c.l.b16 %v3819
    %v4154 = vunpack.c.h.b16 %v3819
    %v4155 = vunpack.c.l.b16 %v3820
    %v4156 = vunpack.c.h.b16 %v3820
    %v4157 = vunpack.c.l.b16 %v3821
    %v4158 = vunpack.c.h.b16 %v3821
    %v4159 = vunpack.c.l.b16 %v3822
    %v4160 = vunpack.c.h.b16 %v3822
    %v4161 = vunpack.c.l.b16 %v3823
    %v4162 = vunpack.c.h.b16 %v3823
    %v4163 = vunpack.c.l.b16 %v3824
    %v4164 = vunpack.c.h.b16 %v3824
    %v4165 = vunpack.c.l.b16 %v3825
    %v4166 = vunpack.c.h.b16 %v3825
    %v4167 = vunpack.c.l.b16 %v3826
    %v4168 = vunpack.c.h.b16 %v3826
    %v4169 = vunpack.c.l.b16 %v3827
    %v4170 = vunpack.c.h.b16 %v3827
    %v4171 = vunpack.c.l.b16 %v3828
    %v4172 = vunpack.c.h.b16 %v3828
    %v4173 = vunpack.c.l.b16 %v3829
    %v4174 = vunpack.c.h.b16 %v3829
    %v4175 = vunpack.c.l.b16 %v3830
    %v4176 = vunpack.c.h.b16 %v3830
    %v4177 = vunpack.c.l.b16 %v3831
    %v4178 = vunpack.c.h.b16 %v3831
    %v4179 = vunpack.c.l.b16 %v3832
    %v4180 = vunpack.c.h.b16 %v3832
    %v4181 = vunpack.c.l.b16 %v3833
    %v4182 = vunpack.c.h.b16 %v3833
    %v4183 = vunpack.c.l.b16 %v3834
    %v4184 = vunpack.c.h.b16 %v3834
    %v4185 = vunpack.c.l.b16 %v3835
    %v4186 = vunpack.c.h.b16 %v3835
    %v4187 = vunpack.c.l.b16 %v3836
    %v4188 = vunpack.c.h.b16 %v3836
    %v4189 = vunpack.c.l.b16 %v3837
    %v4190 = vunpack.c.h.b16 %v3837
    %v4191 = vunpack.c.l.b16 %v3838
    %v4192 = vunpack.c.h.b16 %v3838
    %v4193 = vunpack.c.l.b16 %v3839
    %v4194 = vunpack.c.h.b16 %v3839
    %v4195 = vunpack.c.l.b16 %v3840
    %v4196 = vunpack.c.h.b16 %v3840
    %v4197 = vunpack.c.l.b16 %v3841
    %v4198 = vunpack.c.h.b16 %v3841
    %v4199 = vunpack.c.l.b16 %v3842
    %v4200 = vunpack.c.h.b16 %v3842
    %v4201 = vunpack.c.l.b16 %v3843
    %v4202 = vunpack.c.h.b16 %v3843
    %v4203 = vunpack.c.l.b16 %v3844
    %v4204 = vunpack.c.h.b16 %v3844
    %v4205 = vunpack.c.l.b16 %v3845
    %v4206 = vunpack.c.h.b16 %v3845
    %v4207 = vunpack.c.l.b16 %v3846
    %v4208 = vunpack.c.h.b16 %v3846
    %v4209 = vunpack.c.l.b16 %v3847
    %v4210 = vunpack.c.h.b16 %v3847
    %v4211 = vunpack.c.l.b16 %v3848
    %v4212 = vunpack.c.h.b16 %v3848
    %v4213 = vunpack.c.l.b16 %v3849
    %v4214 = vunpack.c.h.b16 %v3849
    %v4215 = vunpack.c.l.b16 %v3850
    %v4216 = vunpack.c.h.b16 %v3850
    %v4217 = vunpack.c.l.b16 %v3851
    %v4218 = vunpack.c.h.b16 %v3851
    %v4219 = vunpack.c.l.b16 %v3852
    %v4220 = vunpack.c.h.b16 %v3852
    %v4221 = vunpack.c.l.b16 %v3853
    %v4222 = vunpack.c.h.b16 %v3853
    %v4223 = vunpack.c.l.b16 %v3854
    %v4224 = vunpack.c.h.b16 %v3854
    %v4225 = vunpack.c.l.b16 %v3855
    %v4226 = vunpack.c.h.b16 %v3855
    %v4227 = vunpack.c.l.b16 %v3856
    %v4228 = vunpack.c.h.b16 %v3856
    %v4229 = vunpack.c.l.b16 %v3857
    %v4230 = vunpack.c.h.b16 %v3857
    %v4231 = vunpack.c.l.b16 %v3858
    %v4232 = vunpack.c.h.b16 %v3858
    %v4233 = vunpack.c.l.b16 %v3859
    %v4234 = vunpack.c.h.b16 %v3859
    %v4235 = vunpack.c.l.b16 %v3860
    %v4236 = vunpack.c.h.b16 %v3860
    %v4237 = vunpack.c.l.b16 %v3861
    %v4238 = vunpack.c.h.b16 %v3861
    %v4239 = vunpack.c.l.b16 %v3862
    %v4240 = vunpack.c.h.b16 %v3862
    %v4241 = vunpack.c.l.b16 %v3863
    %v4242 = vunpack.c.h.b16 %v3863
    %v4243 = vunpack.c.l.b16 %v3864
    %v4244 = vunpack.c.h.b16 %v3864
    %v4245 = vunpack.c.l.b16 %v3865
    %v4246 = vunpack.c.h.b16 %v3865
    %v4247 = vunpack.c.l.b16 %v3866
    %v4248 = vunpack.c.h.b16 %v3866
    %v4249 = vunpack.c.l.b16 %v3867
    %v4250 = vunpack.c.h.b16 %v3867
    %v4251 = vunpack.c.l.b16 %v3868
    %v4252 = vunpack.c.h.b16 %v3868
    %v4253 = vunpack.c.l.b16 %v3869
    %v4254 = vunpack.c.h.b16 %v3869
    %v4255 = vunpack.c.l.b16 %v3870
    %v4256 = vunpack.c.h.b16 %v3870
    %v4257 = vunpack.c.l.b16 %v3871
    %v4258 = vunpack.c.h.b16 %v3871
    %v4259 = vunpack.c.l.b16 %v3872
    %v4260 = vunpack.c.h.b16 %v3872
    %v4261 = vunpack.c.l.b16 %v3873
    %v4262 = vunpack.c.h.b16 %v3873
    %v4263 = vunpack.c.l.b16 %v3874
    %v4264 = vunpack.c.h.b16 %v3874
    %v4265 = vunpack.c.l.b16 %v3875
    %v4266 = vunpack.c.h.b16 %v3875
    %v4267 = vunpack.c.l.b16 %v3876
    %v4268 = vunpack.c.h.b16 %v3876
    %v4269 = vunpack.c.l.b16 %v3877
    %v4270 = vunpack.c.h.b16 %v3877
    %v4271 = vunpack.c.l.b16 %v3878
    %v4272 = vunpack.c.h.b16 %v3878
    %v4273 = vunpack.c.l.b16 %v3879
    %v4274 = vunpack.c.h.b16 %v3879
    %v4275 = vunpack.c.l.b16 %v3880
    %v4276 = vunpack.c.h.b16 %v3880
    %v4277 = vunpack.c.l.b16 %v3881
    %v4278 = vunpack.c.h.b16 %v3881
    %v4279 = vunpack.c.l.b16 %v3882
    %v4280 = vunpack.c.h.b16 %v3882
    %v4281 = vunpack.c.l.b16 %v3883
    %v4282 = vunpack.c.h.b16 %v3883
    %v4283 = vunpack.c.l.b16 %v3884
    %v4284 = vunpack.c.h.b16 %v3884
    %v4285 = vunpack.c.l.b16 %v3885
    %v4286 = vunpack.c.h.b16 %v3885
    %v4287 = vunpack.c.l.b16 %v3886
    %v4288 = vunpack.c.h.b16 %v3886
    %v4289 = vunpack.c.l.b16 %v3887
    %v4290 = vunpack.c.h.b16 %v3887
    %v4291 = vunpack.c.l.b16 %v3888
    %v4292 = vunpack.c.h.b16 %v3888
    %v4293 = vunpack.c.l.b16 %v3889
    %v4294 = vunpack.c.h.b16 %v3889
    %v4295 = vunpack.c.l.b16 %v3890
    %v4296 = vunpack.c.h.b16 %v3890
    %v4297 = vpack.c.b16 %v4045, %v4041
    %v4298 = vpack.c.b16 %v4046, %v4042
    %v4299 = vpack.c.b16 %v4047, %v4043
    %v4300 = vpack.c.b16 %v4048, %v4044
    %v4301 = vpack.c.b16 %v4053, %v4049
    %v4302 = vpack.c.b16 %v4054, %v4050
    %v4303 = vpack.c.b16 %v4055, %v4051
    %v4304 = vpack.c.b16 %v4056, %v4052
    %v4305 = vpack.c.b16 %v4061, %v4057
    %v4306 = vpack.c.b16 %v4062, %v4058
    %v4307 = vpack.c.b16 %v4063, %v4059
    %v4308 = vpack.c.b16 %v4064, %v4060
    %v4309 = vpack.c.b16 %v4069, %v4065
    %v4310 = vpack.c.b16 %v4070, %v4066
    %v4311 = vpack.c.b16 %v4071, %v4067
    %v4312 = vpack.c.b16 %v4072, %v4068
    %v4313 = vpack.c.b16 %v4077, %v4073
    %v4314 = vpack.c.b16 %v4078, %v4074
    %v4315 = vpack.c.b16 %v4079, %v4075
    %v4316 = vpack.c.b16 %v4080, %v4076
    %v4317 = vpack.c.b16 %v4085, %v4081
    %v4318 = vpack.c.b16 %v4086, %v4082
    %v4319 = vpack.c.b16 %v4087, %v4083
    %v4320 = vpack.c.b16 %v4088, %v4084
    %v4321 = vpack.c.b16 %v4093, %v4089
    %v4322 = vpack.c.b16 %v4094, %v4090
    %v4323 = vpack.c.b16 %v4095, %v4091
    %v4324 = vpack.c.b16 %v4096, %v4092
    %v4325 = vpack.c.b16 %v4101, %v4097
    %v4326 = vpack.c.b16 %v4102, %v4098
    %v4327 = vpack.c.b16 %v4103, %v4099
    %v4328 = vpack.c.b16 %v4104, %v4100
    %v4329 = vpack.c.b16 %v4109, %v4105
    %v4330 = vpack.c.b16 %v4110, %v4106
    %v4331 = vpack.c.b16 %v4111, %v4107
    %v4332 = vpack.c.b16 %v4112, %v4108
    %v4333 = vpack.c.b16 %v4117, %v4113
    %v4334 = vpack.c.b16 %v4118, %v4114
    %v4335 = vpack.c.b16 %v4119, %v4115
    %v4336 = vpack.c.b16 %v4120, %v4116
    %v4337 = vpack.c.b16 %v4125, %v4121
    %v4338 = vpack.c.b16 %v4126, %v4122
    %v4339 = vpack.c.b16 %v4127, %v4123
    %v4340 = vpack.c.b16 %v4128, %v4124
    %v4341 = vpack.c.b16 %v4133, %v4129
    %v4342 = vpack.c.b16 %v4134, %v4130
    %v4343 = vpack.c.b16 %v4135, %v4131
    %v4344 = vpack.c.b16 %v4136, %v4132
    %v4345 = vpack.c.b16 %v4141, %v4137
    %v4346 = vpack.c.b16 %v4142, %v4138
    %v4347 = vpack.c.b16 %v4143, %v4139
    %v4348 = vpack.c.b16 %v4144, %v4140
    %v4349 = vpack.c.b16 %v4149, %v4145
    %v4350 = vpack.c.b16 %v4150, %v4146
    %v4351 = vpack.c.b16 %v4151, %v4147
    %v4352 = vpack.c.b16 %v4152, %v4148
    %v4353 = vpack.c.b16 %v4157, %v4153
    %v4354 = vpack.c.b16 %v4158, %v4154
    %v4355 = vpack.c.b16 %v4159, %v4155
    %v4356 = vpack.c.b16 %v4160, %v4156
    %v4357 = vpack.c.b16 %v4165, %v4161
    %v4358 = vpack.c.b16 %v4166, %v4162
    %v4359 = vpack.c.b16 %v4167, %v4163
    %v4360 = vpack.c.b16 %v4168, %v4164
    %v4361 = vpack.c.b16 %v4173, %v4169
    %v4362 = vpack.c.b16 %v4174, %v4170
    %v4363 = vpack.c.b16 %v4175, %v4171
    %v4364 = vpack.c.b16 %v4176, %v4172
    %v4365 = vpack.c.b16 %v4181, %v4177
    %v4366 = vpack.c.b16 %v4182, %v4178
    %v4367 = vpack.c.b16 %v4183, %v4179
    %v4368 = vpack.c.b16 %v4184, %v4180
    %v4369 = vpack.c.b16 %v4189, %v4185
    %v4370 = vpack.c.b16 %v4190, %v4186
    %v4371 = vpack.c.b16 %v4191, %v4187
    %v4372 = vpack.c.b16 %v4192, %v4188
    %v4373 = vpack.c.b16 %v4197, %v4193
    %v4374 = vpack.c.b16 %v4198, %v4194
    %v4375 = vpack.c.b16 %v4199, %v4195
    %v4376 = vpack.c.b16 %v4200, %v4196
    %v4377 = vpack.c.b16 %v4205, %v4201
    %v4378 = vpack.c.b16 %v4206, %v4202
    %v4379 = vpack.c.b16 %v4207, %v4203
    %v4380 = vpack.c.b16 %v4208, %v4204
    %v4381 = vpack.c.b16 %v4213, %v4209
    %v4382 = vpack.c.b16 %v4214, %v4210
    %v4383 = vpack.c.b16 %v4215, %v4211
    %v4384 = vpack.c.b16 %v4216, %v4212
    %v4385 = vpack.c.b16 %v4221, %v4217
    %v4386 = vpack.c.b16 %v4222, %v4218
    %v4387 = vpack.c.b16 %v4223, %v4219
    %v4388 = vpack.c.b16 %v4224, %v4220
    %v4389 = vpack.c.b16 %v4229, %v4225
    %v4390 = vpack.c.b16 %v4230, %v4226
    %v4391 = vpack.c.b16 %v4231, %v4227
    %v4392 = vpack.c.b16 %v4232, %v4228
    %v4393 = vpack.c.b16 %v4237, %v4233
    %v4394 = vpack.c.b16 %v4238, %v4234
    %v4395 = vpack.c.b16 %v4239, %v4235
    %v4396 = vpack.c.b16 %v4240, %v4236
    %v4397 = vpack.c.b16 %v4245, %v4241
    %v4398 = vpack.c.b16 %v4246, %v4242
    %v4399 = vpack.c.b16 %v4247, %v4243
    %v4400 = vpack.c.b16 %v4248, %v4244
    %v4401 = vpack.c.b16 %v4253, %v4249
    %v4402 = vpack.c.b16 %v4254, %v4250
    %v4403 = vpack.c.b16 %v4255, %v4251
    %v4404 = vpack.c.b16 %v4256, %v4252
    %v4405 = vpack.c.b16 %v4261, %v4257
    %v4406 = vpack.c.b16 %v4262, %v4258
    %v4407 = vpack.c.b16 %v4263, %v4259
    %v4408 = vpack.c.b16 %v4264, %v4260
    %v4409 = vpack.c.b16 %v4269, %v4265
    %v4410 = vpack.c.b16 %v4270, %v4266
    %v4411 = vpack.c.b16 %v4271, %v4267
    %v4412 = vpack.c.b16 %v4272, %v4268
    %v4413 = vpack.c.b16 %v4277, %v4273
    %v4414 = vpack.c.b16 %v4278, %v4274
    %v4415 = vpack.c.b16 %v4279, %v4275
    %v4416 = vpack.c.b16 %v4280, %v4276
    %v4417 = vpack.c.b16 %v4285, %v4281
    %v4418 = vpack.c.b16 %v4286, %v4282
    %v4419 = vpack.c.b16 %v4287, %v4283
    %v4420 = vpack.c.b16 %v4288, %v4284
    %v4421 = vpack.c.b16 %v4293, %v4289
    %v4422 = vpack.c.b16 %v4294, %v4290
    %v4423 = vpack.c.b16 %v4295, %v4291
    %v4424 = vpack.c.b16 %v4296, %v4292
    %4553 = vmatprep.subr.bf16.mxu0 %v4298
    %4554 = vmatpush1.bf16.msra.mxu0 %v4297
    %4555 = vmatprep.subr.bf16.mxu0 %v4302
    %4556 = vmatpush1.bf16.msra.mxu0 %v4301
    %4557 = vmatprep.subr.bf16.mxu0 %v4306
    %4558 = vmatpush1.bf16.msra.mxu0 %v4305
    %4559 = vmatprep.subr.bf16.mxu0 %v4310
    %4560 = vmatpush1.bf16.msra.mxu0 %v4309
    %4561 = vmatprep.subr.bf16.mxu0 %v4314
    %4562 = vmatpush1.bf16.msra.mxu0 %v4313
    %4563 = vmatprep.subr.bf16.mxu0 %v4318
    %4564 = vmatpush1.bf16.msra.mxu0 %v4317
    %4565 = vmatprep.subr.bf16.mxu0 %v4322
    %4566 = vmatpush1.bf16.msra.mxu0 %v4321
    %4567 = vmatprep.subr.bf16.mxu0 %v4326
    %4568 = vmatpush1.bf16.msra.mxu0 %v4325
    %4569 = vmatprep.subr.bf16.mxu0 %v4330
    %4570 = vmatpush1.bf16.msra.mxu0 %v4329
    %4571 = vmatprep.subr.bf16.mxu0 %v4334
    %4572 = vmatpush1.bf16.msra.mxu0 %v4333
    %4573 = vmatprep.subr.bf16.mxu0 %v4338
    %4574 = vmatpush1.bf16.msra.mxu0 %v4337
    %4575 = vmatprep.subr.bf16.mxu0 %v4342
    %4576 = vmatpush1.bf16.msra.mxu0 %v4341
    %4577 = vmatprep.subr.bf16.mxu0 %v4346
    %4578 = vmatpush1.bf16.msra.mxu0 %v4345
    %4579 = vmatprep.subr.bf16.mxu0 %v4350
    %4580 = vmatpush1.bf16.msra.mxu0 %v4349
    %4581 = vmatprep.subr.bf16.mxu0 %v4354
    %4582 = vmatpush1.bf16.msra.mxu0 %v4353
    %4583 = vmatprep.subr.bf16.mxu0 %v4358
    %4584 = vmatpush1.bf16.msra.mxu0 %v4357
    %4585 = vmatprep.mubr.bf16.mxu0 %v3760
    %4586 = vmatmul.mubr.bf16.gmra.mrb[0].mxu0 %v3759
    %v4587 = vpop.f32.mrb[0].mxu0
    %v4588 = vadd.f32 %v3896, %v4587
    %v4589 = vpop.f32.mrb[0].mxu0
    %v4590 = vadd.f32 %v3900, %v4589
    %v4591 = vpop.f32.mrb[0].mxu0
    %v4592 = vpop.f32.mrb[0].mxu0
    %4593 = vdwg.mxu0
    %4594 = vmatprep.subr.bf16.mxu0 %v4362
    %4595 = vmatpush1.bf16.msra.mxu0 %v4361
    %4596 = vmatprep.subr.bf16.mxu0 %v4366
    %4597 = vmatpush1.bf16.msra.mxu0 %v4365
    %4598 = vmatprep.subr.bf16.mxu0 %v4370
    %4599 = vmatpush1.bf16.msra.mxu0 %v4369
    %4600 = vmatprep.subr.bf16.mxu0 %v4374
    %4601 = vmatpush1.bf16.msra.mxu0 %v4373
    %4602 = vmatprep.subr.bf16.mxu0 %v4378
    %4603 = vmatpush1.bf16.msra.mxu0 %v4377
    %4604 = vmatprep.subr.bf16.mxu0 %v4382
    %4605 = vmatpush1.bf16.msra.mxu0 %v4381
    %4606 = vmatprep.subr.bf16.mxu0 %v4386
    %4607 = vmatpush1.bf16.msra.mxu0 %v4385
    %4608 = vmatprep.subr.bf16.mxu0 %v4390
    %4609 = vmatpush1.bf16.msra.mxu0 %v4389
    %4610 = vmatprep.subr.bf16.mxu0 %v4394
    %4611 = vmatpush1.bf16.msra.mxu0 %v4393
    %4612 = vmatprep.subr.bf16.mxu0 %v4398
    %4613 = vmatpush1.bf16.msra.mxu0 %v4397
    %4614 = vmatprep.subr.bf16.mxu0 %v4402
    %4615 = vmatpush1.bf16.msra.mxu0 %v4401
    %4616 = vmatprep.subr.bf16.mxu0 %v4406
    %4617 = vmatpush1.bf16.msra.mxu0 %v4405
    %4618 = vmatprep.subr.bf16.mxu0 %v4410
    %4619 = vmatpush1.bf16.msra.mxu0 %v4409
    %4620 = vmatprep.subr.bf16.mxu0 %v4414
    %4621 = vmatpush1.bf16.msra.mxu0 %v4413
    %4622 = vmatprep.subr.bf16.mxu0 %v4418
    %4623 = vmatpush1.bf16.msra.mxu0 %v4417
    %4624 = vmatprep.subr.bf16.mxu0 %v4422
    %4625 = vmatpush1.bf16.msra.mxu0 %v4421
    %4626 = vmatprep.mubr.bf16.mxu0 %v3762
    %4627 = vmatmul.mubr.bf16.gmra.mrb[0].mxu0 %v3761
    %v4628 = vpop.f32.mrb[0].mxu0
    %v4629 = vadd.f32 %v4588, %v4628
    %v4630 = vpop.f32.mrb[0].mxu0
    %v4631 = vadd.f32 %v4590, %v4630
    %v4632 = vpop.f32.mrb[0].mxu0
    %v4633 = vpop.f32.mrb[0].mxu0
    %4634 = vdwg.mxu0
    %4635 = vmatprep.subr.bf16.mxu0 %v4300
    %4636 = vmatpush1.bf16.msra.mxu0 %v4299
    %4637 = vmatprep.subr.bf16.mxu0 %v4304
    %4638 = vmatpush1.bf16.msra.mxu0 %v4303
    %4639 = vmatprep.subr.bf16.mxu0 %v4308
    %4640 = vmatpush1.bf16.msra.mxu0 %v4307
    %4641 = vmatprep.subr.bf16.mxu0 %v4312
    %4642 = vmatpush1.bf16.msra.mxu0 %v4311
    %4643 = vmatprep.subr.bf16.mxu0 %v4316
    %4644 = vmatpush1.bf16.msra.mxu0 %v4315
    %4645 = vmatprep.subr.bf16.mxu0 %v4320
    %4646 = vmatpush1.bf16.msra.mxu0 %v4319
    %4647 = vmatprep.subr.bf16.mxu0 %v4324
    %4648 = vmatpush1.bf16.msra.mxu0 %v4323
    %4649 = vmatprep.subr.bf16.mxu0 %v4328
    %4650 = vmatpush1.bf16.msra.mxu0 %v4327
    %4651 = vmatprep.subr.bf16.mxu0 %v4332
    %4652 = vmatpush1.bf16.msra.mxu0 %v4331
    %4653 = vmatprep.subr.bf16.mxu0 %v4336
    %4654 = vmatpush1.bf16.msra.mxu0 %v4335
    %4655 = vmatprep.subr.bf16.mxu0 %v4340
    %4656 = vmatpush1.bf16.msra.mxu0 %v4339
    %4657 = vmatprep.subr.bf16.mxu0 %v4344
    %4658 = vmatpush1.bf16.msra.mxu0 %v4343
    %4659 = vmatprep.subr.bf16.mxu0 %v4348
    %4660 = vmatpush1.bf16.msra.mxu0 %v4347
    %4661 = vmatprep.subr.bf16.mxu0 %v4352
    %4662 = vmatpush1.bf16.msra.mxu0 %v4351
    %4663 = vmatprep.subr.bf16.mxu0 %v4356
    %4664 = vmatpush1.bf16.msra.mxu0 %v4355
    %4665 = vmatprep.subr.bf16.mxu0 %v4360
    %4666 = vmatpush1.bf16.msra.mxu0 %v4359
    %4667 = vmatprep.mubr.bf16.mxu0 %v3760
    %4668 = vmatmul.mubr.bf16.gmra.mrb[0].mxu0 %v3759
    %v4669 = vpop.f32.mrb[0].mxu0
    %v4670 = vadd.f32 %v3904, %v4669
    %v4671 = vpop.f32.mrb[0].mxu0
    %v4672 = vadd.f32 %v3908, %v4671
    %v4673 = vpop.f32.mrb[0].mxu0
    %v4674 = vpop.f32.mrb[0].mxu0
    %4675 = vdwg.mxu0
    %4676 = vmatprep.subr.bf16.mxu0 %v4364
    %4677 = vmatpush1.bf16.msra.mxu0 %v4363
    %4678 = vmatprep.subr.bf16.mxu0 %v4368
    %4679 = vmatpush1.bf16.msra.mxu0 %v4367
    %4680 = vmatprep.subr.bf16.mxu0 %v4372
    %4681 = vmatpush1.bf16.msra.mxu0 %v4371
    %4682 = vmatprep.subr.bf16.mxu0 %v4376
    %4683 = vmatpush1.bf16.msra.mxu0 %v4375
    %4684 = vmatprep.subr.bf16.mxu0 %v4380
    %4685 = vmatpush1.bf16.msra.mxu0 %v4379
    %4686 = vmatprep.subr.bf16.mxu0 %v4384
    %4687 = vmatpush1.bf16.msra.mxu0 %v4383
    %4688 = vmatprep.subr.bf16.mxu0 %v4388
    %4689 = vmatpush1.bf16.msra.mxu0 %v4387
    %4690 = vmatprep.subr.bf16.mxu0 %v4392
    %4691 = vmatpush1.bf16.msra.mxu0 %v4391
    %4692 = vmatprep.subr.bf16.mxu0 %v4396
    %4693 = vmatpush1.bf16.msra.mxu0 %v4395
    %4694 = vmatprep.subr.bf16.mxu0 %v4400
    %4695 = vmatpush1.bf16.msra.mxu0 %v4399
    %4696 = vmatprep.subr.bf16.mxu0 %v4404
    %4697 = vmatpush1.bf16.msra.mxu0 %v4403
    %4698 = vmatprep.subr.bf16.mxu0 %v4408
    %4699 = vmatpush1.bf16.msra.mxu0 %v4407
    %4700 = vmatprep.subr.bf16.mxu0 %v4412
    %4701 = vmatpush1.bf16.msra.mxu0 %v4411
    %4702 = vmatprep.subr.bf16.mxu0 %v4416
    %4703 = vmatpush1.bf16.msra.mxu0 %v4415
    %4704 = vmatprep.subr.bf16.mxu0 %v4420
    %4705 = vmatpush1.bf16.msra.mxu0 %v4419
    %4706 = vmatprep.subr.bf16.mxu0 %v4424
    %4707 = vmatpush1.bf16.msra.mxu0 %v4423
    %4708 = vmatprep.mubr.bf16.mxu0 %v3762
    %4709 = vmatmul.mubr.bf16.gmra.mrb[0].mxu0 %v3761
    %v4710 = vpop.f32.mrb[0].mxu0
    %v4711 = vadd.f32 %v4670, %v4710
    %v4712 = vpop.f32.mrb[0].mxu0
    %v4713 = vadd.f32 %v4672, %v4712
    %v4714 = vpop.f32.mrb[0].mxu0
    %v4715 = vpop.f32.mrb[0].mxu0
    %4716 = vdwg.mxu0
    %vm4717 = vcmp.gt.f32.partialorder %v4629, 0.0
    %vm4718 = vcmp.gt.f32.partialorder %v4631, 0.0
    %vm4719 = vcmp.gt.f32.partialorder %v4711, 0.0
    %vm4720 = vcmp.gt.f32.partialorder %v4713, 0.0
    %v4721 = vmul.f32 %v4629, 0.01
    %v4722 = vmul.f32 %v4631, 0.01
    %v4723 = vmul.f32 %v4711, 0.01
    %v4724 = vmul.f32 %v4713, 0.01
    %v4725 = vsel %vm4717, %v4629, %v4721
    %v4726 = vsel %vm4718, %v4631, %v4722
    %v4727 = vsel %vm4719, %v4711, %v4723
    %v4728 = vsel %vm4720, %v4713, %v4724
    %v4729 = vld [vmem:[%s13] sm:$0xf]
    %v4730 = vunpack.c.l.bf16 %v4729
    %v4732 = vlaneseq
    %v4733 = vshrl.u32 %v4732, 7
    %v4734 = vsub.s32 0, %v4733
    %v4735 = vrot.slane %v4730, %v4734
    %v4736 = vlaneseq
    %v4737 = vshrl.u32 %v4736, 7
    %v4738 = vsub.s32 2, %v4737
    %v4739 = vrot.slane %v4730, %v4738
    %v4740 = vlaneseq
    %v4741 = vshrl.u32 %v4740, 7
    %v4742 = vsub.s32 4, %v4741
    %v4743 = vrot.slane %v4730, %v4742
    %v4744 = vlaneseq
    %v4745 = vshrl.u32 %v4744, 7
    %v4746 = vsub.s32 6, %v4745
    %v4747 = vrot.slane %v4730, %v4746
    %v4752 = vlaneseq
    %v4753 = vshrl.u32 %v4752, 7
    %v4754 = vsub.s32 0, %v4753
    %v4755 = vrot.slane %v4735, %v4754
    %v4756 = vlaneseq
    %v4757 = vshrl.u32 %v4756, 7
    %v4758 = vsub.s32 0, %v4757
    %v4759 = vrot.slane %v4739, %v4758
    %v4760 = vlaneseq
    %v4761 = vshrl.u32 %v4760, 7
    %v4762 = vsub.s32 0, %v4761
    %v4763 = vrot.slane %v4743, %v4762
    %v4764 = vlaneseq
    %v4765 = vshrl.u32 %v4764, 7
    %v4766 = vsub.s32 0, %v4765
    %v4767 = vrot.slane %v4747, %v4766
    %v4768 = vmul.f32 %v4725, %v4755
    %v4769 = vmul.f32 %v4726, %v4759
    %v4770 = vmul.f32 %v4727, %v4763
    %v4771 = vmul.f32 %v4728, %v4767
    %v4772 = vadd.f32 %v4768, %v4769
    %v4773 = vadd.f32 %v4772, %v4770
    %v4774 = vadd.f32 %v4773, %v4771
    %4775 = vadd.xlane.f32.xlu0 %v4774
    %v4776 = vpop.xlane.xlu0 %4775
    %v4777 = vld [vmem:[#allocation2] sm:$0x1]
    %v4779 = vlaneseq
    %v4780 = vshrl.u32 %v4779, 7
    %v4781 = vsub.s32 0, %v4780
    %v4782 = vrot.slane %v4777, %v4781
    %v4784 = vadd.f32 %v4776, %v4782
    %vm4785 = vcmask 7168
    %4786 = vst.msk [vmem:[%s15] sm:$0xff] %vm4785, %v4784
    // Predicated region
    $region82: #{critic_forward.1} parent=1 // pred_check
      _
    $region83: #{critic_forward.1} parent=1 // pred_check_branch
      %4788 = sbr.rel (0) target = $region85
    $region84: #{critic_forward.1} parent=1 // pred_region
      _
    $region85: #{critic_forward.1} parent=1 // pred_fallthru
      _
    // Predicated region
    $region86: #{critic_forward.1} parent=1 // pred_check
      _
    $region87: #{critic_forward.1} parent=1 // pred_check_branch
      %4790 = sbr.rel (0) target = $region89
    $region88: #{critic_forward.1} parent=1 // pred_region
      _
    $region89: #{critic_forward.1} parent=1 // pred_fallthru
      _
    %4791 = vsyncpa [#allocation4], 1
    %4792 = vsyncpa [#allocation6], 1
    %4793 = vsyncpa [#allocation9], 1

</llo_original>
